<compile_context>
chip_gen: v7x
topology: tpu7x:2x2x1
jax: 0.10.0
libtpu: 0.0.40
codegen_flags: <defaults>
</compile_context>

<pallas_src>
import math
import functools

import jax
import jax.numpy as jnp
from jax.experimental import pallas as pl
from jax.experimental.pallas import tpu as pltpu


def _round_up(x, m):
    return (x + m - 1) // m * m


# ----------------------------------------------------------------------------
# ShallowCNN block: 3x3 conv (stride 1, pad 1) + BatchNorm(eval) + tanh,
# lowered to a row-tiled im2col GEMM (NHWC layout).
# ----------------------------------------------------------------------------
def _conv_bn_tanh_kernel(p_ref, w_ref, scale_ref, bias_ref, o_ref):
    y = jnp.dot(p_ref[...], w_ref[...], preferred_element_type=jnp.float32)
    o_ref[...] = jnp.tanh(y * scale_ref[...] + bias_ref[...])


def conv_bn_tanh(x_nhwc, w_conv, b_conv, gamma, beta, mean, var, eps=1e-5):
    N, H, W, Cin = x_nhwc.shape
    Cout = w_conv.shape[0]

    # im2col (NHWC keeps the K-axis contiguous; no 5-D transpose through HBM).
    # TODO(synk): build im2col inside the kernel from a padded VMEM tile to avoid
    # materializing the 9x patches array in HBM for very large images.
    pad = jnp.pad(x_nhwc, ((0, 0), (1, 1), (1, 1), (0, 0)))
    cols = [pad[:, ky:ky + H, kx:kx + W, :] for ky in range(3) for kx in range(3)]
    patches = jnp.stack(cols, axis=-1)                       # [N, H, W, Cin, 9]
    M, K = N * H * W, Cin * 9
    patches = patches.reshape(M, K)
    w2d = w_conv.reshape(Cout, K).T                          # [K, Cout]  (Cin,ky,kx)

    # Fold eval-mode BatchNorm into per-channel scale / bias.
    scale = gamma / jnp.sqrt(var + eps)
    bias_eff = (b_conv - mean) * scale + beta

    # Row-tiled GEMM: pipelined, "parallel" grid (megacore-shardable on v7x),
    # bounded VMEM footprint regardless of image size.
    tile_m = min(256, _round_up(M, 8))
    m_pad = _round_up(M, tile_m)
    if m_pad != M:
        patches = jnp.pad(patches, ((0, m_pad - M), (0, 0)))
    grid_m = m_pad // tile_m

    out2d = pl.pallas_call(
        _conv_bn_tanh_kernel,
        out_shape=jax.ShapeDtypeStruct((m_pad, Cout), jnp.float32),
        grid_spec=pltpu.PrefetchScalarGridSpec(
            num_scalar_prefetch=0,
            grid=(grid_m,),
            in_specs=[
                pl.BlockSpec((tile_m, K), lambda i: (i, 0)),
                pl.BlockSpec((K, Cout), lambda i: (0, 0)),
                pl.BlockSpec((1, Cout), lambda i: (0, 0)),
                pl.BlockSpec((1, Cout), lambda i: (0, 0)),
            ],
            out_specs=pl.BlockSpec((tile_m, Cout), lambda i: (i, 0)),
        ),
        compiler_params=pltpu.CompilerParams(
            dimension_semantics=("parallel",),
            vmem_limit_bytes=32 * 1024 * 1024,
        ),
    )(patches, w2d, scale.reshape(1, Cout), bias_eff.reshape(1, Cout))
    return out2d[:M].reshape(N, H, W, Cout)


def maxpool2x2_nhwc(x):
    # MaxPool2d(kernel_size=2, stride=2); tiny reduction kept as JAX glue.
    N, H, W, C = x.shape
    return x.reshape(N, H // 2, 2, W // 2, 2, C).max(axis=(2, 4))


# ----------------------------------------------------------------------------
# Fused transformer stack: PE add + num_layers shared-weight encoder layers in
# ONE kernel.  grid=(num_layers,), activation carried in VMEM scratch.
# ----------------------------------------------------------------------------
def _make_transformer_kernel(nhead, num_layers):
    def kernel(x_ref, pe_ref,
               wqkv_ref, bqkv_ref, wo_ref, bo_ref,
               g1_ref, be1_ref,
               w1_ref, fb1_ref, w2_ref, fb2_ref,
               g2_ref, be2_ref,
               out_ref, attn_ref, feat_sc):
        layer = pl.program_id(0)
        B, S, E = feat_sc.shape
        hd = E // nhead
        inv_sqrt = 1.0 / math.sqrt(hd)

        # Layer 0: load features and fuse the positional-encoding add.
        @pl.when(layer == 0)
        def _():
            feat_sc[...] = x_ref[...] + pe_ref[...][None, :, :]

        x = feat_sc[...]                         # [B, S, E]
        xf = x.reshape(B * S, E)                 # flattened token slab

        # --- self attention -------------------------------------------------
        # Fused in-projection: one [B*S, E] x [E, 3E] MXU pass.
        qkv = jnp.dot(xf, wqkv_ref[...],
                      preferred_element_type=jnp.float32) + bqkv_ref[...]
        qkv3 = qkv.reshape(B, S, 3 * E)
        wo = wo_ref[...]

        a_out = jnp.zeros((B * S, E), jnp.float32)
        attn_acc = jnp.zeros((B, S, S), jnp.float32)   # cheap; stored only on last layer
        for h in range(nhead):                   # static head loop, batched over B
            qh = qkv3[:, :, h * hd:(h + 1) * hd]
            kh = qkv3[:, :, E + h * hd:E + (h + 1) * hd]
            vh = qkv3[:, :, 2 * E + h * hd:2 * E + (h + 1) * hd]

            sc = jnp.einsum('bsd,btd->bst', qh, kh,
                            preferred_element_type=jnp.float32) * inv_sqrt
            sc = sc - jnp.max(sc, axis=-1, keepdims=True)
            p = jnp.exp(sc)
            p = p * pl.reciprocal(jnp.sum(p, axis=-1, keepdims=True), approx=True)
            attn_acc = attn_acc + p

            ctx = jnp.einsum('bst,btd->bsd', p, vh,
                             preferred_element_type=jnp.float32)       # [B, S, hd]
            # Accumulate through the matching W_o slice (== concat(heads) @ W_o).
            a_out = a_out + jnp.dot(ctx.reshape(B * S, hd), wo[h * hd:(h + 1) * hd, :],
                                    preferred_element_type=jnp.float32)
        a_out = a_out + bo_ref[...]

        # residual + LayerNorm1 (post-norm)
        y = xf + a_out
        mu = jnp.mean(y, axis=-1, keepdims=True)
        var = jnp.mean((y - mu) ** 2, axis=-1, keepdims=True)
        y = (y - mu) * jax.lax.rsqrt(var + 1e-5) * g1_ref[...] + be1_ref[...]

        # FFN (ReLU) + residual + LayerNorm2
        h1 = jnp.maximum(
            jnp.dot(y, w1_ref[...], preferred_element_type=jnp.float32) + fb1_ref[...],
            0.0)
        h2 = jnp.dot(h1, w2_ref[...], preferred_element_type=jnp.float32) + fb2_ref[...]
        z = y + h2
        mu2 = jnp.mean(z, axis=-1, keepdims=True)
        var2 = jnp.mean((z - mu2) ** 2, axis=-1, keepdims=True)
        z = (z - mu2) * jax.lax.rsqrt(var2 + 1e-5) * g2_ref[...] + be2_ref[...]

        # Carry activation to the next layer (VMEM-resident).
        feat_sc[...] = z.reshape(B, S, E)

        # Only the last layer's outputs are materialized to HBM.
        @pl.when(layer == num_layers - 1)
        def _():
            out_ref[...] = z.reshape(B, S, E)
            attn_ref[...] = attn_acc * (1.0 / nhead)

    return kernel


def transformer_stack(feat_bse, pe, layer_params, *, nhead, num_layers):
    B, S, E = feat_bse.shape

    def fullspec(arr):
        nd = arr.ndim
        return pl.BlockSpec(arr.shape, lambda l, _nd=nd: (0,) * _nd)

    in_specs = [fullspec(feat_bse), fullspec(pe)] + [fullspec(p) for p in layer_params]
    out_specs = (pl.BlockSpec((B, S, E), lambda l: (0, 0, 0)),
                 pl.BlockSpec((B, S, S), lambda l: (0, 0, 0)))

    out, attn = pl.pallas_call(
        _make_transformer_kernel(nhead, num_layers),
        out_shape=(jax.ShapeDtypeStruct((B, S, E), jnp.float32),
                   jax.ShapeDtypeStruct((B, S, S), jnp.float32)),
        grid_spec=pltpu.PrefetchScalarGridSpec(
            num_scalar_prefetch=0,
            grid=(num_layers,),
            in_specs=in_specs,
            out_specs=out_specs,
            scratch_shapes=[pltpu.VMEM((B, S, E), jnp.float32)],
        ),
        compiler_params=pltpu.CompilerParams(
            dimension_semantics=("arbitrary",),          # layer loop carries state
            vmem_limit_bytes=32 * 1024 * 1024,           # safe on v5e/v6e/v7x
        ),
    )(feat_bse, pe, *layer_params)
    return out, attn


# ----------------------------------------------------------------------------
# Sinusoidal PositionEncoding (dropout disabled in eval mode).
# ----------------------------------------------------------------------------
def sinusoidal_pe(max_len, d_model):
    pos = jnp.arange(max_len, dtype=jnp.float32)[:, None]
    i = jnp.arange(0, d_model, 2, dtype=jnp.float32)[None, :]
    div = jnp.exp(-(jnp.log(10000.0)) * i / d_model)
    pe = jnp.zeros((max_len, d_model), jnp.float32)
    pe = pe.at[:, 0::2].set(jnp.sin(pos * div))
    pe = pe.at[:, 1::2].set(jnp.cos(pos * div))
    return pe


# ----------------------------------------------------------------------------
# Full ResTransformer forward (use_resnet=False, adaptive_pe=False,
# seperable_ffn=False path), eval mode.
# ----------------------------------------------------------------------------
def res_transformer_forward(images, params, *, img_h, img_w, nhead, num_layers):
    # ShallowCNN in NHWC (single cheap input transpose).
    x = images.transpose(0, 2, 3, 1)                     # NCHW -> NHWC
    x = conv_bn_tanh(x, *params["conv1"])
    x = maxpool2x2_nhwc(x)
    x = conv_bn_tanh(x, *params["conv2"])
    x = maxpool2x2_nhwc(x)                               # [N, H/4, W/4, E]
    N, h, w, E = x.shape
    S = h * w

    # NHWC reshape gives [B, S, E] directly, matching 'n c h w -> n c (h w) -> s n c'
    # up to the batch-major layout used inside the kernel (permutation-equivalent).
    feat = x.reshape(N, S, E)
    pe = params["pe"][:S]                                # PE add fused into layer 0

    out, attn = transformer_stack(feat, pe, params["layer"],
                                  nhead=nhead, num_layers=num_layers)

    # 's b e -> b e s' -> 'b e (h w) -> b e h w'
    feature = out.transpose(0, 2, 1).reshape(N, E, img_h // 4, img_w // 4)
    return feature, attn


# ----------------------------------------------------------------------------
# Deterministic synthetic parameter initialization.
# ----------------------------------------------------------------------------
def init_params(key, *, ch_in, ch_mid, model_dim, ffn_dim, max_len):
    ks = jax.random.split(key, 24)
    rnd = lambda k, shape, s=0.1: s * jax.random.normal(k, shape, jnp.float32)

    conv1 = (rnd(ks[0], (ch_mid, ch_in, 3, 3)),
             rnd(ks[1], (ch_mid,)),
             1.0 + 0.1 * jax.random.normal(ks[2], (ch_mid,), jnp.float32),   # gamma
             rnd(ks[3], (ch_mid,)),                                           # beta
             rnd(ks[4], (ch_mid,)),                                           # running_mean
             1.0 + 0.1 * jnp.abs(jax.random.normal(ks[5], (ch_mid,), jnp.float32)))  # running_var

    conv2 = (rnd(ks[6], (model_dim, ch_mid, 3, 3)),
             rnd(ks[7], (model_dim,)),
             1.0 + 0.1 * jax.random.normal(ks[8], (model_dim,), jnp.float32),
             rnd(ks[9], (model_dim,)),
             rnd(ks[10], (model_dim,)),
             1.0 + 0.1 * jnp.abs(jax.random.normal(ks[11], (model_dim,), jnp.float32)))

    E, F = model_dim, ffn_dim
    layer = (
        rnd(ks[12], (E, 3 * E)), rnd(ks[13], (1, 3 * E)),            # fused W_qkv, b_qkv
        rnd(ks[14], (E, E)),     rnd(ks[15], (1, E)),                # W_o, b_o
        jnp.ones((1, E), jnp.float32), jnp.zeros((1, E), jnp.float32),  # LN1 gamma/beta
        rnd(ks[16], (E, F)),     rnd(ks[17], (1, F)),                # FFN linear1
        rnd(ks[18], (F, E)),     rnd(ks[19], (1, E)),                # FFN linear2
        jnp.ones((1, E), jnp.float32), jnp.zeros((1, E), jnp.float32),  # LN2 gamma/beta
    )
    return {"conv1": conv1, "conv2": conv2, "layer": layer,
            "pe": sinusoidal_pe(max_len, E)}


if __name__ == "__main__":
    IMG_H = IMG_W = 16          # -> feature map 4x4, seq len 16
    BATCH = 2
    CH_IN = 1                   # rgb=False
    CH_MID = 8
    MODEL_DIM = 32
    NHEAD = 4
    FFN_DIM = 64
    NUM_LAYERS = 3

    key = jax.random.PRNGKey(0)
    pkey, xkey = jax.random.split(key)
    params = init_params(pkey, ch_in=CH_IN, ch_mid=CH_MID, model_dim=MODEL_DIM,
                         ffn_dim=FFN_DIM, max_len=(IMG_W // 4) * (IMG_H // 4))
    images = jax.random.normal(xkey, (BATCH, CH_IN, IMG_H, IMG_W), jnp.float32)

    fwd = jax.jit(functools.partial(res_transformer_forward,
                                    img_h=IMG_H, img_w=IMG_W,
                                    nhead=NHEAD, num_layers=NUM_LAYERS))
    feature, attn_weight = fwd(images, params)
    jax.block_until_ready((feature, attn_weight))

    assert feature.shape == (BATCH, MODEL_DIM, IMG_H // 4, IMG_W // 4)
    S = (IMG_H // 4) * (IMG_W // 4)
    assert attn_weight.shape == (BATCH, S, S)
    assert bool(jnp.all(jnp.isfinite(feature))) and bool(jnp.all(jnp.isfinite(attn_weight)))
    print("KERNEL_OK")
</pallas_src>

<mosaic_0001>
module attributes {stable_mosaic.version = 11 : i64} {
  func.func @_conv_bn_tanh_kernel(%arg0: i32, %arg1: memref<256x9xf32, #tpu.memory_space<vmem>>, %arg2: memref<9x8xf32, #tpu.memory_space<vmem>>, %arg3: memref<1x8xf32, #tpu.memory_space<vmem>>, %arg4: memref<1x8xf32, #tpu.memory_space<vmem>>, %arg5: memref<256x8xf32, #tpu.memory_space<vmem>>) attributes {dimension_semantics = [#tpu.dimension_semantics<parallel>], iteration_bounds = array<i64: 2>, scalar_prefetch = 0 : i64, scratch_operands = 0 : i64, tpu.core_type = #tpu.core_type<tc>, window_params = [{transform_indices = @transform_0, window_bounds = array<i64: 256, 9>}, {pipeline_mode = #tpu.pipeline_mode<synchronous>, transform_indices = @transform_1, window_bounds = array<i64: 9, 8>}, {pipeline_mode = #tpu.pipeline_mode<synchronous>, transform_indices = @transform_2, window_bounds = array<i64: 1, 8>}, {pipeline_mode = #tpu.pipeline_mode<synchronous>, transform_indices = @transform_3, window_bounds = array<i64: 1, 8>}, {transform_indices = @transform_4, window_bounds = array<i64: 256, 8>}]} {
    %c0 = arith.constant 0 : index
    %c0_0 = arith.constant 0 : index
    %0 = vector.load %arg1[%c0, %c0_0] : memref<256x9xf32, #tpu.memory_space<vmem>>, vector<256x9xf32>
    %c0_1 = arith.constant 0 : index
    %c0_2 = arith.constant 0 : index
    %1 = vector.load %arg2[%c0_1, %c0_2] : memref<9x8xf32, #tpu.memory_space<vmem>>, vector<9x8xf32>
    %cst = arith.constant dense<0.000000e+00> : vector<256x8xf32>
    %2 = tpu.matmul %0, %1, %cst {dimension_numbers = #tpu.dot_dimension_numbers<[1], [0], [0], [1], [0, 0, 1, 1], [], []>} : vector<256x9xf32>, vector<9x8xf32>, vector<256x8xf32> -> vector<256x8xf32>
    %c0_3 = arith.constant 0 : index
    %c0_4 = arith.constant 0 : index
    %3 = vector.load %arg3[%c0_3, %c0_4] : memref<1x8xf32, #tpu.memory_space<vmem>>, vector<1x8xf32>
    %4 = vector.broadcast %3 : vector<1x8xf32> to vector<256x8xf32>
    %5 = arith.mulf %2, %4 : vector<256x8xf32>
    %c0_5 = arith.constant 0 : index
    %c0_6 = arith.constant 0 : index
    %6 = vector.load %arg4[%c0_5, %c0_6] : memref<1x8xf32, #tpu.memory_space<vmem>>, vector<1x8xf32>
    %7 = vector.broadcast %6 : vector<1x8xf32> to vector<256x8xf32>
    %8 = arith.addf %5, %7 : vector<256x8xf32>
    %9 = math.tanh %8 : vector<256x8xf32>
    %c0_7 = arith.constant 0 : index
    %c0_8 = arith.constant 0 : index
    %10 = vector.load %arg5[%c0_7, %c0_8] : memref<256x8xf32, #tpu.memory_space<vmem>>, vector<256x8xf32>
    tpu.vector_store %arg5[%c0_7, %c0_8], %9 {strides = array<i32>} : memref<256x8xf32, #tpu.memory_space<vmem>>, vector<256x8xf32>,
    return
  }
  func.func @transform_0(%arg0: i32) -> (i32, i32) {
    %c0_i32 = arith.constant 0 : i32
    %c0_i32_0 = arith.constant 0 : i32
    return %arg0, %c0_i32 : i32, i32
  }
  func.func @transform_1(%arg0: i32) -> (i32, i32) {
    %c0_i32 = arith.constant 0 : i32
    %c0_i32_0 = arith.constant 0 : i32
    %c0_i32_1 = arith.constant 0 : i32
    return %c0_i32, %c0_i32_0 : i32, i32
  }
  func.func @transform_2(%arg0: i32) -> (i32, i32) {
    %c0_i32 = arith.constant 0 : i32
    %c0_i32_0 = arith.constant 0 : i32
    %c0_i32_1 = arith.constant 0 : i32
    return %c0_i32, %c0_i32_0 : i32, i32
  }
  func.func @transform_3(%arg0: i32) -> (i32, i32) {
    %c0_i32 = arith.constant 0 : i32
    %c0_i32_0 = arith.constant 0 : i32
    %c0_i32_1 = arith.constant 0 : i32
    return %c0_i32, %c0_i32_0 : i32, i32
  }
  func.func @transform_4(%arg0: i32) -> (i32, i32) {
    %c0_i32 = arith.constant 0 : i32
    %c0_i32_0 = arith.constant 0 : i32
    return %arg0, %c0_i32 : i32, i32
  }
}

module attributes {stable_mosaic.version = 11 : i64} {
  func.func @_conv_bn_tanh_kernel(%arg0: i32, %arg1: memref<128x72xf32, #tpu.memory_space<vmem>>, %arg2: memref<72x32xf32, #tpu.memory_space<vmem>>, %arg3: memref<1x32xf32, #tpu.memory_space<vmem>>, %arg4: memref<1x32xf32, #tpu.memory_space<vmem>>, %arg5: memref<128x32xf32, #tpu.memory_space<vmem>>) attributes {dimension_semantics = [#tpu.dimension_semantics<parallel>], iteration_bounds = array<i64: 1>, scalar_prefetch = 0 : i64, scratch_operands = 0 : i64, tpu.core_type = #tpu.core_type<tc>, window_params = [{transform_indices = @transform_0, window_bounds = array<i64: 128, 72>}, {pipeline_mode = #tpu.pipeline_mode<synchronous>, transform_indices = @transform_1, window_bounds = array<i64: 72, 32>}, {pipeline_mode = #tpu.pipeline_mode<synchronous>, transform_indices = @transform_2, window_bounds = array<i64: 1, 32>}, {pipeline_mode = #tpu.pipeline_mode<synchronous>, transform_indices = @transform_3, window_bounds = array<i64: 1, 32>}, {transform_indices = @transform_4, window_bounds = array<i64: 128, 32>}]} {
    %c0 = arith.constant 0 : index
    %c0_0 = arith.constant 0 : index
    %0 = vector.load %arg1[%c0, %c0_0] : memref<128x72xf32, #tpu.memory_space<vmem>>, vector<128x72xf32>
    %c0_1 = arith.constant 0 : index
    %c0_2 = arith.constant 0 : index
    %1 = vector.load %arg2[%c0_1, %c0_2] : memref<72x32xf32, #tpu.memory_space<vmem>>, vector<72x32xf32>
    %cst = arith.constant dense<0.000000e+00> : vector<128x32xf32>
    %2 = tpu.matmul %0, %1, %cst {dimension_numbers = #tpu.dot_dimension_numbers<[1], [0], [0], [1], [0, 0, 1, 1], [], []>} : vector<128x72xf32>, vector<72x32xf32>, vector<128x32xf32> -> vector<128x32xf32>
    %c0_3 = arith.constant 0 : index
    %c0_4 = arith.constant 0 : index
    %3 = vector.load %arg3[%c0_3, %c0_4] : memref<1x32xf32, #tpu.memory_space<vmem>>, vector<1x32xf32>
    %4 = vector.broadcast %3 : vector<1x32xf32> to vector<128x32xf32>
    %5 = arith.mulf %2, %4 : vector<128x32xf32>
    %c0_5 = arith.constant 0 : index
    %c0_6 = arith.constant 0 : index
    %6 = vector.load %arg4[%c0_5, %c0_6] : memref<1x32xf32, #tpu.memory_space<vmem>>, vector<1x32xf32>
    %7 = vector.broadcast %6 : vector<1x32xf32> to vector<128x32xf32>
    %8 = arith.addf %5, %7 : vector<128x32xf32>
    %9 = math.tanh %8 : vector<128x32xf32>
    %c0_7 = arith.constant 0 : index
    %c0_8 = arith.constant 0 : index
    %10 = vector.load %arg5[%c0_7, %c0_8] : memref<128x32xf32, #tpu.memory_space<vmem>>, vector<128x32xf32>
    tpu.vector_store %arg5[%c0_7, %c0_8], %9 {strides = array<i32>} : memref<128x32xf32, #tpu.memory_space<vmem>>, vector<128x32xf32>,
    return
  }
  func.func @transform_0(%arg0: i32) -> (i32, i32) {
    %c0_i32 = arith.constant 0 : i32
    %c0_i32_0 = arith.constant 0 : i32
    return %arg0, %c0_i32 : i32, i32
  }
  func.func @transform_1(%arg0: i32) -> (i32, i32) {
    %c0_i32 = arith.constant 0 : i32
    %c0_i32_0 = arith.constant 0 : i32
    %c0_i32_1 = arith.constant 0 : i32
    return %c0_i32, %c0_i32_0 : i32, i32
  }
  func.func @transform_2(%arg0: i32) -> (i32, i32) {
    %c0_i32 = arith.constant 0 : i32
    %c0_i32_0 = arith.constant 0 : i32
    %c0_i32_1 = arith.constant 0 : i32
    return %c0_i32, %c0_i32_0 : i32, i32
  }
  func.func @transform_3(%arg0: i32) -> (i32, i32) {
    %c0_i32 = arith.constant 0 : i32
    %c0_i32_0 = arith.constant 0 : i32
    %c0_i32_1 = arith.constant 0 : i32
    return %c0_i32, %c0_i32_0 : i32, i32
  }
  func.func @transform_4(%arg0: i32) -> (i32, i32) {
    %c0_i32 = arith.constant 0 : i32
    %c0_i32_0 = arith.constant 0 : i32
    return %arg0, %c0_i32 : i32, i32
  }
}

module attributes {stable_mosaic.version = 11 : i64} {
  func.func @kernel(%arg0: i32, %arg1: memref<2x16x32xf32, #tpu.memory_space<vmem>>, %arg2: memref<16x32xf32, #tpu.memory_space<vmem>>, %arg3: memref<32x96xf32, #tpu.memory_space<vmem>>, %arg4: memref<1x96xf32, #tpu.memory_space<vmem>>, %arg5: memref<32x32xf32, #tpu.memory_space<vmem>>, %arg6: memref<1x32xf32, #tpu.memory_space<vmem>>, %arg7: memref<1x32xf32, #tpu.memory_space<vmem>>, %arg8: memref<1x32xf32, #tpu.memory_space<vmem>>, %arg9: memref<32x64xf32, #tpu.memory_space<vmem>>, %arg10: memref<1x64xf32, #tpu.memory_space<vmem>>, %arg11: memref<64x32xf32, #tpu.memory_space<vmem>>, %arg12: memref<1x32xf32, #tpu.memory_space<vmem>>, %arg13: memref<1x32xf32, #tpu.memory_space<vmem>>, %arg14: memref<1x32xf32, #tpu.memory_space<vmem>>, %arg15: memref<2x16x32xf32, #tpu.memory_space<vmem>>, %arg16: memref<2x16x16xf32, #tpu.memory_space<vmem>>, %arg17: memref<2x16x32xf32, #tpu.memory_space<vmem>>) attributes {dimension_semantics = [#tpu.dimension_semantics<arbitrary>], iteration_bounds = array<i64: 3>, scalar_prefetch = 0 : i64, scratch_operands = 1 : i64, tpu.core_type = #tpu.core_type<tc>, window_params = [{pipeline_mode = #tpu.pipeline_mode<synchronous>, transform_indices = @transform_0, window_bounds = array<i64: 2, 16, 32>}, {pipeline_mode = #tpu.pipeline_mode<synchronous>, transform_indices = @transform_1, window_bounds = array<i64: 16, 32>}, {pipeline_mode = #tpu.pipeline_mode<synchronous>, transform_indices = @transform_2, window_bounds = array<i64: 32, 96>}, {pipeline_mode = #tpu.pipeline_mode<synchronous>, transform_indices = @transform_3, window_bounds = array<i64: 1, 96>}, {pipeline_mode = #tpu.pipeline_mode<synchronous>, transform_indices = @transform_4, window_bounds = array<i64: 32, 32>}, {pipeline_mode = #tpu.pipeline_mode<synchronous>, transform_indices = @transform_5, window_bounds = array<i64: 1, 32>}, {pipeline_mode = #tpu.pipeline_mode<synchronous>, transform_indices = @transform_6, window_bounds = array<i64: 1, 32>}, {pipeline_mode = #tpu.pipeline_mode<synchronous>, transform_indices = @transform_7, window_bounds = array<i64: 1, 32>}, {pipeline_mode = #tpu.pipeline_mode<synchronous>, transform_indices = @transform_8, window_bounds = array<i64: 32, 64>}, {pipeline_mode = #tpu.pipeline_mode<synchronous>, transform_indices = @transform_9, window_bounds = array<i64: 1, 64>}, {pipeline_mode = #tpu.pipeline_mode<synchronous>, transform_indices = @transform_10, window_bounds = array<i64: 64, 32>}, {pipeline_mode = #tpu.pipeline_mode<synchronous>, transform_indices = @transform_11, window_bounds = array<i64: 1, 32>}, {pipeline_mode = #tpu.pipeline_mode<synchronous>, transform_indices = @transform_12, window_bounds = array<i64: 1, 32>}, {pipeline_mode = #tpu.pipeline_mode<synchronous>, transform_indices = @transform_13, window_bounds = array<i64: 1, 32>}, {pipeline_mode = #tpu.pipeline_mode<synchronous>, transform_indices = @transform_14, window_bounds = array<i64: 2, 16, 32>}, {pipeline_mode = #tpu.pipeline_mode<synchronous>, transform_indices = @transform_15, window_bounds = array<i64: 2, 16, 16>}]} {
    %c0_i32 = arith.constant 0 : i32
    %0 = arith.cmpi eq, %arg0, %c0_i32 : i32
    %1 = arith.extui %0 : i1 to i32
    %c0_i32_0 = arith.constant 0 : i32
    %2 = arith.cmpi ne, %1, %c0_i32_0 : i32
    scf.if %2 {
      %c0_70 = arith.constant 0 : index
      %c0_71 = arith.constant 0 : index
      %c0_72 = arith.constant 0 : index
      %172 = vector.load %arg1[%c0_70, %c0_71, %c0_72] : memref<2x16x32xf32, #tpu.memory_space<vmem>>, vector<2x16x32xf32>
      %c0_73 = arith.constant 0 : index
      %c0_74 = arith.constant 0 : index
      %173 = vector.load %arg2[%c0_73, %c0_74] : memref<16x32xf32, #tpu.memory_space<vmem>>, vector<16x32xf32>
      %174 = vector.shape_cast %173 : vector<16x32xf32> to vector<1x16x32xf32>
      %175 = vector.broadcast %174 : vector<1x16x32xf32> to vector<2x16x32xf32>
      %176 = arith.addf %172, %175 : vector<2x16x32xf32>
      %c0_75 = arith.constant 0 : index
      %c0_76 = arith.constant 0 : index
      %c0_77 = arith.constant 0 : index
      %177 = vector.load %arg17[%c0_75, %c0_76, %c0_77] : memref<2x16x32xf32, #tpu.memory_space<vmem>>, vector<2x16x32xf32>
      tpu.vector_store %arg17[%c0_75, %c0_76, %c0_77], %176 {strides = array<i32>} : memref<2x16x32xf32, #tpu.memory_space<vmem>>, vector<2x16x32xf32>,
    } else {
    }
    %c0 = arith.constant 0 : index
    %c0_1 = arith.constant 0 : index
    %c0_2 = arith.constant 0 : index
    %3 = vector.load %arg17[%c0, %c0_1, %c0_2] : memref<2x16x32xf32, #tpu.memory_space<vmem>>, vector<2x16x32xf32>
    %4 = vector.shape_cast %3 : vector<2x16x32xf32> to vector<32x32xf32>
    %c0_3 = arith.constant 0 : index
    %c0_4 = arith.constant 0 : index
    %5 = vector.load %arg3[%c0_3, %c0_4] : memref<32x96xf32, #tpu.memory_space<vmem>>, vector<32x96xf32>
    %cst = arith.constant dense<0.000000e+00> : vector<32x96xf32>
    %6 = tpu.matmul %4, %5, %cst {dimension_numbers = #tpu.dot_dimension_numbers<[1], [0], [0], [1], [0, 0, 1, 1], [], []>} : vector<32x32xf32>, vector<32x96xf32>, vector<32x96xf32> -> vector<32x96xf32>
    %c0_5 = arith.constant 0 : index
    %c0_6 = arith.constant 0 : index
    %7 = vector.load %arg4[%c0_5, %c0_6] : memref<1x96xf32, #tpu.memory_space<vmem>>, vector<1x96xf32>
    %8 = vector.broadcast %7 : vector<1x96xf32> to vector<32x96xf32>
    %9 = arith.addf %6, %8 : vector<32x96xf32>
    %10 = vector.shape_cast %9 : vector<32x96xf32> to vector<2x16x96xf32>
    %c0_7 = arith.constant 0 : index
    %c0_8 = arith.constant 0 : index
    %11 = vector.load %arg5[%c0_7, %c0_8] : memref<32x32xf32, #tpu.memory_space<vmem>>, vector<32x32xf32>
    %cst_9 = arith.constant 0.000000e+00 : f32
    %12 = vector.broadcast %cst_9 : f32 to vector<32x32xf32>
    %cst_10 = arith.constant 0.000000e+00 : f32
    %13 = vector.broadcast %cst_10 : f32 to vector<2x16x16xf32>
    %14 = vector.extract_strided_slice %10 {offsets = [0, 0, 0], sizes = [2, 16, 8], strides = [1, 1, 1]} : vector<2x16x96xf32> to vector<2x16x8xf32>
    %15 = vector.extract_strided_slice %10 {offsets = [0, 0, 32], sizes = [2, 16, 8], strides = [1, 1, 1]} : vector<2x16x96xf32> to vector<2x16x8xf32>
    %16 = vector.extract_strided_slice %10 {offsets = [0, 0, 64], sizes = [2, 16, 8], strides = [1, 1, 1]} : vector<2x16x96xf32> to vector<2x16x8xf32>
    "tpu.trace_start"() <{level = 10 : i32, message = "bsd,btd->bst"}> : () -> ()
    %cst_11 = arith.constant dense<0.000000e+00> : vector<2x16x16xf32>
    %17 = tpu.matmul %14, %15, %cst_11 {dimension_numbers = #tpu.dot_dimension_numbers<[2], [2], [1], [1], [0, 0, 0, 1, 1, 1], [0], [0]>} : vector<2x16x8xf32>, vector<2x16x8xf32>, vector<2x16x16xf32> -> vector<2x16x16xf32>
    "tpu.trace_stop"() : () -> ()
    %cst_12 = arith.constant 0.353553385 : f32
    %18 = vector.broadcast %cst_12 : f32 to vector<2x16x16xf32>
    %19 = arith.mulf %17, %18 : vector<2x16x16xf32>
    %cst_13 = arith.constant dense<0xFF800000> : vector<2x16xf32>
    %20 = vector.multi_reduction <maximumf>, %19, %cst_13 [2] : vector<2x16x16xf32> to vector<2x16xf32>
    %21 = vector.shape_cast %20 : vector<2x16xf32> to vector<2x16x1xf32>
    %22 = vector.broadcast %21 : vector<2x16x1xf32> to vector<2x16x16xf32>
    %23 = arith.subf %19, %22 : vector<2x16x16xf32>
    %24 = math.exp %23 : vector<2x16x16xf32>
    %cst_14 = arith.constant dense<0.000000e+00> : vector<2x16xf32>
    %25 = vector.multi_reduction <add>, %24, %cst_14 [2] : vector<2x16x16xf32> to vector<2x16xf32>
    %26 = vector.shape_cast %25 : vector<2x16xf32> to vector<2x16x1xf32>
    %27 = tpu.reciprocal %26 {approx = true} : vector<2x16x1xf32> -> vector<2x16x1xf32>
    %28 = vector.broadcast %27 : vector<2x16x1xf32> to vector<2x16x16xf32>
    %29 = arith.mulf %24, %28 : vector<2x16x16xf32>
    %30 = arith.addf %13, %29 : vector<2x16x16xf32>
    "tpu.trace_start"() <{level = 10 : i32, message = "bst,btd->bsd"}> : () -> ()
    %cst_15 = arith.constant dense<0.000000e+00> : vector<2x16x8xf32>
    %31 = tpu.matmul %29, %16, %cst_15 {dimension_numbers = #tpu.dot_dimension_numbers<[2], [1], [1], [2], [0, 0, 0, 1, 1, 2], [0], [0]>} : vector<2x16x16xf32>, vector<2x16x8xf32>, vector<2x16x8xf32> -> vector<2x16x8xf32>
    "tpu.trace_stop"() : () -> ()
    %32 = vector.shape_cast %31 : vector<2x16x8xf32> to vector<32x8xf32>
    %33 = vector.extract_strided_slice %11 {offsets = [0, 0], sizes = [8, 32], strides = [1, 1]} : vector<32x32xf32> to vector<8x32xf32>
    %cst_16 = arith.constant dense<0.000000e+00> : vector<32x32xf32>
    %34 = tpu.matmul %32, %33, %cst_16 {dimension_numbers = #tpu.dot_dimension_numbers<[1], [0], [0], [1], [0, 0, 1, 1], [], []>} : vector<32x8xf32>, vector<8x32xf32>, vector<32x32xf32> -> vector<32x32xf32>
    %35 = arith.addf %12, %34 : vector<32x32xf32>
    %36 = vector.extract_strided_slice %10 {offsets = [0, 0, 8], sizes = [2, 16, 8], strides = [1, 1, 1]} : vector<2x16x96xf32> to vector<2x16x8xf32>
    %37 = vector.extract_strided_slice %10 {offsets = [0, 0, 40], sizes = [2, 16, 8], strides = [1, 1, 1]} : vector<2x16x96xf32> to vector<2x16x8xf32>
    %38 = vector.extract_strided_slice %10 {offsets = [0, 0, 72], sizes = [2, 16, 8], strides = [1, 1, 1]} : vector<2x16x96xf32> to vector<2x16x8xf32>
    "tpu.trace_start"() <{level = 10 : i32, message = "bsd,btd->bst"}> : () -> ()
    %cst_17 = arith.constant dense<0.000000e+00> : vector<2x16x16xf32>
    %39 = tpu.matmul %36, %37, %cst_17 {dimension_numbers = #tpu.dot_dimension_numbers<[2], [2], [1], [1], [0, 0, 0, 1, 1, 1], [0], [0]>} : vector<2x16x8xf32>, vector<2x16x8xf32>, vector<2x16x16xf32> -> vector<2x16x16xf32>
    "tpu.trace_stop"() : () -> ()
    %cst_18 = arith.constant 0.353553385 : f32
    %40 = vector.broadcast %cst_18 : f32 to vector<2x16x16xf32>
    %41 = arith.mulf %39, %40 : vector<2x16x16xf32>
    %cst_19 = arith.constant dense<0xFF800000> : vector<2x16xf32>
    %42 = vector.multi_reduction <maximumf>, %41, %cst_19 [2] : vector<2x16x16xf32> to vector<2x16xf32>
    %43 = vector.shape_cast %42 : vector<2x16xf32> to vector<2x16x1xf32>
    %44 = vector.broadcast %43 : vector<2x16x1xf32> to vector<2x16x16xf32>
    %45 = arith.subf %41, %44 : vector<2x16x16xf32>
    %46 = math.exp %45 : vector<2x16x16xf32>
    %cst_20 = arith.constant dense<0.000000e+00> : vector<2x16xf32>
    %47 = vector.multi_reduction <add>, %46, %cst_20 [2] : vector<2x16x16xf32> to vector<2x16xf32>
    %48 = vector.shape_cast %47 : vector<2x16xf32> to vector<2x16x1xf32>
    %49 = tpu.reciprocal %48 {approx = true} : vector<2x16x1xf32> -> vector<2x16x1xf32>
    %50 = vector.broadcast %49 : vector<2x16x1xf32> to vector<2x16x16xf32>
    %51 = arith.mulf %46, %50 : vector<2x16x16xf32>
    %52 = arith.addf %30, %51 : vector<2x16x16xf32>
    "tpu.trace_start"() <{level = 10 : i32, message = "bst,btd->bsd"}> : () -> ()
    %cst_21 = arith.constant dense<0.000000e+00> : vector<2x16x8xf32>
    %53 = tpu.matmul %51, %38, %cst_21 {dimension_numbers = #tpu.dot_dimension_numbers<[2], [1], [1], [2], [0, 0, 0, 1, 1, 2], [0], [0]>} : vector<2x16x16xf32>, vector<2x16x8xf32>, vector<2x16x8xf32> -> vector<2x16x8xf32>
    "tpu.trace_stop"() : () -> ()
    %54 = vector.shape_cast %53 : vector<2x16x8xf32> to vector<32x8xf32>
    %55 = vector.extract_strided_slice %11 {offsets = [8, 0], sizes = [8, 32], strides = [1, 1]} : vector<32x32xf32> to vector<8x32xf32>
    %cst_22 = arith.constant dense<0.000000e+00> : vector<32x32xf32>
    %56 = tpu.matmul %54, %55, %cst_22 {dimension_numbers = #tpu.dot_dimension_numbers<[1], [0], [0], [1], [0, 0, 1, 1], [], []>} : vector<32x8xf32>, vector<8x32xf32>, vector<32x32xf32> -> vector<32x32xf32>
    %57 = arith.addf %35, %56 : vector<32x32xf32>
    %58 = vector.extract_strided_slice %10 {offsets = [0, 0, 16], sizes = [2, 16, 8], strides = [1, 1, 1]} : vector<2x16x96xf32> to vector<2x16x8xf32>
    %59 = vector.extract_strided_slice %10 {offsets = [0, 0, 48], sizes = [2, 16, 8], strides = [1, 1, 1]} : vector<2x16x96xf32> to vector<2x16x8xf32>
    %60 = vector.extract_strided_slice %10 {offsets = [0, 0, 80], sizes = [2, 16, 8], strides = [1, 1, 1]} : vector<2x16x96xf32> to vector<2x16x8xf32>
    "tpu.trace_start"() <{level = 10 : i32, message = "bsd,btd->bst"}> : () -> ()
    %cst_23 = arith.constant dense<0.000000e+00> : vector<2x16x16xf32>
    %61 = tpu.matmul %58, %59, %cst_23 {dimension_numbers = #tpu.dot_dimension_numbers<[2], [2], [1], [1], [0, 0, 0, 1, 1, 1], [0], [0]>} : vector<2x16x8xf32>, vector<2x16x8xf32>, vector<2x16x16xf32> -> vector<2x16x16xf32>
    "tpu.trace_stop"() : () -> ()
    %cst_24 = arith.constant 0.353553385 : f32
    %62 = vector.broadcast %cst_24 : f32 to vector<2x16x16xf32>
    %63 = arith.mulf %61, %62 : vector<2x16x16xf32>
    %cst_25 = arith.constant dense<0xFF800000> : vector<2x16xf32>
    %64 = vector.multi_reduction <maximumf>, %63, %cst_25 [2] : vector<2x16x16xf32> to vector<2x16xf32>
    %65 = vector.shape_cast %64 : vector<2x16xf32> to vector<2x16x1xf32>
    %66 = vector.broadcast %65 : vector<2x16x1xf32> to vector<2x16x16xf32>
    %67 = arith.subf %63, %66 : vector<2x16x16xf32>
    %68 = math.exp %67 : vector<2x16x16xf32>
    %cst_26 = arith.constant dense<0.000000e+00> : vector<2x16xf32>
    %69 = vector.multi_reduction <add>, %68, %cst_26 [2] : vector<2x16x16xf32> to vector<2x16xf32>
    %70 = vector.shape_cast %69 : vector<2x16xf32> to vector<2x16x1xf32>
    %71 = tpu.reciprocal %70 {approx = true} : vector<2x16x1xf32> -> vector<2x16x1xf32>
    %72 = vector.broadcast %71 : vector<2x16x1xf32> to vector<2x16x16xf32>
    %73 = arith.mulf %68, %72 : vector<2x16x16xf32>
    %74 = arith.addf %52, %73 : vector<2x16x16xf32>
    "tpu.trace_start"() <{level = 10 : i32, message = "bst,btd->bsd"}> : () -> ()
    %cst_27 = arith.constant dense<0.000000e+00> : vector<2x16x8xf32>
    %75 = tpu.matmul %73, %60, %cst_27 {dimension_numbers = #tpu.dot_dimension_numbers<[2], [1], [1], [2], [0, 0, 0, 1, 1, 2], [0], [0]>} : vector<2x16x16xf32>, vector<2x16x8xf32>, vector<2x16x8xf32> -> vector<2x16x8xf32>
    "tpu.trace_stop"() : () -> ()
    %76 = vector.shape_cast %75 : vector<2x16x8xf32> to vector<32x8xf32>
    %77 = vector.extract_strided_slice %11 {offsets = [16, 0], sizes = [8, 32], strides = [1, 1]} : vector<32x32xf32> to vector<8x32xf32>
    %cst_28 = arith.constant dense<0.000000e+00> : vector<32x32xf32>
    %78 = tpu.matmul %76, %77, %cst_28 {dimension_numbers = #tpu.dot_dimension_numbers<[1], [0], [0], [1], [0, 0, 1, 1], [], []>} : vector<32x8xf32>, vector<8x32xf32>, vector<32x32xf32> -> vector<32x32xf32>
    %79 = arith.addf %57, %78 : vector<32x32xf32>
    %80 = vector.extract_strided_slice %10 {offsets = [0, 0, 24], sizes = [2, 16, 8], strides = [1, 1, 1]} : vector<2x16x96xf32> to vector<2x16x8xf32>
    %81 = vector.extract_strided_slice %10 {offsets = [0, 0, 56], sizes = [2, 16, 8], strides = [1, 1, 1]} : vector<2x16x96xf32> to vector<2x16x8xf32>
    %82 = vector.extract_strided_slice %10 {offsets = [0, 0, 88], sizes = [2, 16, 8], strides = [1, 1, 1]} : vector<2x16x96xf32> to vector<2x16x8xf32>
    "tpu.trace_start"() <{level = 10 : i32, message = "bsd,btd->bst"}> : () -> ()
    %cst_29 = arith.constant dense<0.000000e+00> : vector<2x16x16xf32>
    %83 = tpu.matmul %80, %81, %cst_29 {dimension_numbers = #tpu.dot_dimension_numbers<[2], [2], [1], [1], [0, 0, 0, 1, 1, 1], [0], [0]>} : vector<2x16x8xf32>, vector<2x16x8xf32>, vector<2x16x16xf32> -> vector<2x16x16xf32>
    "tpu.trace_stop"() : () -> ()
    %cst_30 = arith.constant 0.353553385 : f32
    %84 = vector.broadcast %cst_30 : f32 to vector<2x16x16xf32>
    %85 = arith.mulf %83, %84 : vector<2x16x16xf32>
    %cst_31 = arith.constant dense<0xFF800000> : vector<2x16xf32>
    %86 = vector.multi_reduction <maximumf>, %85, %cst_31 [2] : vector<2x16x16xf32> to vector<2x16xf32>
    %87 = vector.shape_cast %86 : vector<2x16xf32> to vector<2x16x1xf32>
    %88 = vector.broadcast %87 : vector<2x16x1xf32> to vector<2x16x16xf32>
    %89 = arith.subf %85, %88 : vector<2x16x16xf32>
    %90 = math.exp %89 : vector<2x16x16xf32>
    %cst_32 = arith.constant dense<0.000000e+00> : vector<2x16xf32>
    %91 = vector.multi_reduction <add>, %90, %cst_32 [2] : vector<2x16x16xf32> to vector<2x16xf32>
    %92 = vector.shape_cast %91 : vector<2x16xf32> to vector<2x16x1xf32>
    %93 = tpu.reciprocal %92 {approx = true} : vector<2x16x1xf32> -> vector<2x16x1xf32>
    %94 = vector.broadcast %93 : vector<2x16x1xf32> to vector<2x16x16xf32>
    %95 = arith.mulf %90, %94 : vector<2x16x16xf32>
    %96 = arith.addf %74, %95 : vector<2x16x16xf32>
    "tpu.trace_start"() <{level = 10 : i32, message = "bst,btd->bsd"}> : () -> ()
    %cst_33 = arith.constant dense<0.000000e+00> : vector<2x16x8xf32>
    %97 = tpu.matmul %95, %82, %cst_33 {dimension_numbers = #tpu.dot_dimension_numbers<[2], [1], [1], [2], [0, 0, 0, 1, 1, 2], [0], [0]>} : vector<2x16x16xf32>, vector<2x16x8xf32>, vector<2x16x8xf32> -> vector<2x16x8xf32>
    "tpu.trace_stop"() : () -> ()
    %98 = vector.shape_cast %97 : vector<2x16x8xf32> to vector<32x8xf32>
    %99 = vector.extract_strided_slice %11 {offsets = [24, 0], sizes = [8, 32], strides = [1, 1]} : vector<32x32xf32> to vector<8x32xf32>
    %cst_34 = arith.constant dense<0.000000e+00> : vector<32x32xf32>
    %100 = tpu.matmul %98, %99, %cst_34 {dimension_numbers = #tpu.dot_dimension_numbers<[1], [0], [0], [1], [0, 0, 1, 1], [], []>} : vector<32x8xf32>, vector<8x32xf32>, vector<32x32xf32> -> vector<32x32xf32>
    %101 = arith.addf %79, %100 : vector<32x32xf32>
    %c0_35 = arith.constant 0 : index
    %c0_36 = arith.constant 0 : index
    %102 = vector.load %arg6[%c0_35, %c0_36] : memref<1x32xf32, #tpu.memory_space<vmem>>, vector<1x32xf32>
    %103 = vector.broadcast %102 : vector<1x32xf32> to vector<32x32xf32>
    %104 = arith.addf %101, %103 : vector<32x32xf32>
    %105 = arith.addf %4, %104 : vector<32x32xf32>
    %cst_37 = arith.constant dense<0.000000e+00> : vector<32xf32>
    %106 = vector.multi_reduction <add>, %105, %cst_37 [1] : vector<32x32xf32> to vector<32xf32>
    %107 = vector.shape_cast %106 : vector<32xf32> to vector<32x1xf32>
    %cst_38 = arith.constant 3.200000e+01 : f32
    %108 = vector.broadcast %cst_38 : f32 to vector<32x1xf32>
    %109 = arith.divf %107, %108 : vector<32x1xf32>
    %110 = vector.broadcast %109 : vector<32x1xf32> to vector<32x32xf32>
    %111 = arith.subf %105, %110 : vector<32x32xf32>
    %112 = arith.mulf %111, %111 : vector<32x32xf32>
    %cst_39 = arith.constant dense<0.000000e+00> : vector<32xf32>
    %113 = vector.multi_reduction <add>, %112, %cst_39 [1] : vector<32x32xf32> to vector<32xf32>
    %114 = vector.shape_cast %113 : vector<32xf32> to vector<32x1xf32>
    %cst_40 = arith.constant 3.200000e+01 : f32
    %115 = vector.broadcast %cst_40 : f32 to vector<32x1xf32>
    %116 = arith.divf %114, %115 : vector<32x1xf32>
    %117 = vector.broadcast %109 : vector<32x1xf32> to vector<32x32xf32>
    %118 = arith.subf %105, %117 : vector<32x32xf32>
    %cst_41 = arith.constant 9.99999974E-6 : f32
    %119 = vector.broadcast %cst_41 : f32 to vector<32x1xf32>
    %120 = arith.addf %116, %119 : vector<32x1xf32>
    %121 = math.rsqrt %120 : vector<32x1xf32>
    %122 = vector.broadcast %121 : vector<32x1xf32> to vector<32x32xf32>
    %123 = arith.mulf %118, %122 : vector<32x32xf32>
    %c0_42 = arith.constant 0 : index
    %c0_43 = arith.constant 0 : index
    %124 = vector.load %arg7[%c0_42, %c0_43] : memref<1x32xf32, #tpu.memory_space<vmem>>, vector<1x32xf32>
    %125 = vector.broadcast %124 : vector<1x32xf32> to vector<32x32xf32>
    %126 = arith.mulf %123, %125 : vector<32x32xf32>
    %c0_44 = arith.constant 0 : index
    %c0_45 = arith.constant 0 : index
    %127 = vector.load %arg8[%c0_44, %c0_45] : memref<1x32xf32, #tpu.memory_space<vmem>>, vector<1x32xf32>
    %128 = vector.broadcast %127 : vector<1x32xf32> to vector<32x32xf32>
    %129 = arith.addf %126, %128 : vector<32x32xf32>
    %c0_46 = arith.constant 0 : index
    %c0_47 = arith.constant 0 : index
    %130 = vector.load %arg9[%c0_46, %c0_47] : memref<32x64xf32, #tpu.memory_space<vmem>>, vector<32x64xf32>
    %cst_48 = arith.constant dense<0.000000e+00> : vector<32x64xf32>
    %131 = tpu.matmul %129, %130, %cst_48 {dimension_numbers = #tpu.dot_dimension_numbers<[1], [0], [0], [1], [0, 0, 1, 1], [], []>} : vector<32x32xf32>, vector<32x64xf32>, vector<32x64xf32> -> vector<32x64xf32>
    %c0_49 = arith.constant 0 : index
    %c0_50 = arith.constant 0 : index
    %132 = vector.load %arg10[%c0_49, %c0_50] : memref<1x64xf32, #tpu.memory_space<vmem>>, vector<1x64xf32>
    %133 = vector.broadcast %132 : vector<1x64xf32> to vector<32x64xf32>
    %134 = arith.addf %131, %133 : vector<32x64xf32>
    %cst_51 = arith.constant 0.000000e+00 : f32
    %135 = vector.broadcast %cst_51 : f32 to vector<32x64xf32>
    %136 = arith.maximumf %134, %135 : vector<32x64xf32>
    %c0_52 = arith.constant 0 : index
    %c0_53 = arith.constant 0 : index
    %137 = vector.load %arg11[%c0_52, %c0_53] : memref<64x32xf32, #tpu.memory_space<vmem>>, vector<64x32xf32>
    %cst_54 = arith.constant dense<0.000000e+00> : vector<32x32xf32>
    %138 = tpu.matmul %136, %137, %cst_54 {dimension_numbers = #tpu.dot_dimension_numbers<[1], [0], [0], [1], [0, 0, 1, 1], [], []>} : vector<32x64xf32>, vector<64x32xf32>, vector<32x32xf32> -> vector<32x32xf32>
    %c0_55 = arith.constant 0 : index
    %c0_56 = arith.constant 0 : index
    %139 = vector.load %arg12[%c0_55, %c0_56] : memref<1x32xf32, #tpu.memory_space<vmem>>, vector<1x32xf32>
    %140 = vector.broadcast %139 : vector<1x32xf32> to vector<32x32xf32>
    %141 = arith.addf %138, %140 : vector<32x32xf32>
    %142 = arith.addf %129, %141 : vector<32x32xf32>
    %cst_57 = arith.constant dense<0.000000e+00> : vector<32xf32>
    %143 = vector.multi_reduction <add>, %142, %cst_57 [1] : vector<32x32xf32> to vector<32xf32>
    %144 = vector.shape_cast %143 : vector<32xf32> to vector<32x1xf32>
    %cst_58 = arith.constant 3.200000e+01 : f32
    %145 = vector.broadcast %cst_58 : f32 to vector<32x1xf32>
    %146 = arith.divf %144, %145 : vector<32x1xf32>
    %147 = vector.broadcast %146 : vector<32x1xf32> to vector<32x32xf32>
    %148 = arith.subf %142, %147 : vector<32x32xf32>
    %149 = arith.mulf %148, %148 : vector<32x32xf32>
    %cst_59 = arith.constant dense<0.000000e+00> : vector<32xf32>
    %150 = vector.multi_reduction <add>, %149, %cst_59 [1] : vector<32x32xf32> to vector<32xf32>
    %151 = vector.shape_cast %150 : vector<32xf32> to vector<32x1xf32>
    %cst_60 = arith.constant 3.200000e+01 : f32
    %152 = vector.broadcast %cst_60 : f32 to vector<32x1xf32>
    %153 = arith.divf %151, %152 : vector<32x1xf32>
    %154 = vector.broadcast %146 : vector<32x1xf32> to vector<32x32xf32>
    %155 = arith.subf %142, %154 : vector<32x32xf32>
    %cst_61 = arith.constant 9.99999974E-6 : f32
    %156 = vector.broadcast %cst_61 : f32 to vector<32x1xf32>
    %157 = arith.addf %153, %156 : vector<32x1xf32>
    %158 = math.rsqrt %157 : vector<32x1xf32>
    %159 = vector.broadcast %158 : vector<32x1xf32> to vector<32x32xf32>
    %160 = arith.mulf %155, %159 : vector<32x32xf32>
    %c0_62 = arith.constant 0 : index
    %c0_63 = arith.constant 0 : index
    %161 = vector.load %arg13[%c0_62, %c0_63] : memref<1x32xf32, #tpu.memory_space<vmem>>, vector<1x32xf32>
    %162 = vector.broadcast %161 : vector<1x32xf32> to vector<32x32xf32>
    %163 = arith.mulf %160, %162 : vector<32x32xf32>
    %c0_64 = arith.constant 0 : index
    %c0_65 = arith.constant 0 : index
    %164 = vector.load %arg14[%c0_64, %c0_65] : memref<1x32xf32, #tpu.memory_space<vmem>>, vector<1x32xf32>
    %165 = vector.broadcast %164 : vector<1x32xf32> to vector<32x32xf32>
    %166 = arith.addf %163, %165 : vector<32x32xf32>
    %167 = vector.shape_cast %166 : vector<32x32xf32> to vector<2x16x32xf32>
    %c0_66 = arith.constant 0 : index
    %c0_67 = arith.constant 0 : index
    %c0_68 = arith.constant 0 : index
    %168 = vector.load %arg17[%c0_66, %c0_67, %c0_68] : memref<2x16x32xf32, #tpu.memory_space<vmem>>, vector<2x16x32xf32>
    tpu.vector_store %arg17[%c0_66, %c0_67, %c0_68], %167 {strides = array<i32>} : memref<2x16x32xf32, #tpu.memory_space<vmem>>, vector<2x16x32xf32>,
    %c2_i32 = arith.constant 2 : i32
    %169 = arith.cmpi eq, %arg0, %c2_i32 : i32
    %170 = arith.extui %169 : i1 to i32
    %c0_i32_69 = arith.constant 0 : i32
    %171 = arith.cmpi ne, %170, %c0_i32_69 : i32
    scf.if %171 {
      %172 = vector.shape_cast %166 : vector<32x32xf32> to vector<2x16x32xf32>
      %c0_70 = arith.constant 0 : index
      %c0_71 = arith.constant 0 : index
      %c0_72 = arith.constant 0 : index
      %173 = vector.load %arg15[%c0_70, %c0_71, %c0_72] : memref<2x16x32xf32, #tpu.memory_space<vmem>>, vector<2x16x32xf32>
      tpu.vector_store %arg15[%c0_70, %c0_71, %c0_72], %172 {strides = array<i32>} : memref<2x16x32xf32, #tpu.memory_space<vmem>>, vector<2x16x32xf32>,
      %cst_73 = arith.constant 2.500000e-01 : f32
      %174 = vector.broadcast %cst_73 : f32 to vector<2x16x16xf32>
      %175 = arith.mulf %96, %174 : vector<2x16x16xf32>
      %c0_74 = arith.constant 0 : index
      %c0_75 = arith.constant 0 : index
      %c0_76 = arith.constant 0 : index
      %176 = vector.load %arg16[%c0_74, %c0_75, %c0_76] : memref<2x16x16xf32, #tpu.memory_space<vmem>>, vector<2x16x16xf32>
      tpu.vector_store %arg16[%c0_74, %c0_75, %c0_76], %175 {strides = array<i32>} : memref<2x16x16xf32, #tpu.memory_space<vmem>>, vector<2x16x16xf32>,
    } else {
    }
    return
  }
  func.func @transform_0(%arg0: i32) -> (i32, i32, i32) {
    %c0_i32 = arith.constant 0 : i32
    %c0_i32_0 = arith.constant 0 : i32
    %c0_i32_1 = arith.constant 0 : i32
    %c0_i32_2 = arith.constant 0 : i32
    return %c0_i32, %c0_i32_0, %c0_i32_1 : i32, i32, i32
  }
  func.func @transform_1(%arg0: i32) -> (i32, i32) {
    %c0_i32 = arith.constant 0 : i32
    %c0_i32_0 = arith.constant 0 : i32
    %c0_i32_1 = arith.constant 0 : i32
    return %c0_i32, %c0_i32_0 : i32, i32
  }
  func.func @transform_2(%arg0: i32) -> (i32, i32) {
    %c0_i32 = arith.constant 0 : i32
    %c0_i32_0 = arith.constant 0 : i32
    %c0_i32_1 = arith.constant 0 : i32
    return %c0_i32, %c0_i32_0 : i32, i32
  }
  func.func @transform_3(%arg0: i32) -> (i32, i32) {
    %c0_i32 = arith.constant 0 : i32
    %c0_i32_0 = arith.constant 0 : i32
    %c0_i32_1 = arith.constant 0 : i32
    return %c0_i32, %c0_i32_0 : i32, i32
  }
  func.func @transform_4(%arg0: i32) -> (i32, i32) {
    %c0_i32 = arith.constant 0 : i32
    %c0_i32_0 = arith.constant 0 : i32
    %c0_i32_1 = arith.constant 0 : i32
    return %c0_i32, %c0_i32_0 : i32, i32
  }
  func.func @transform_5(%arg0: i32) -> (i32, i32) {
    %c0_i32 = arith.constant 0 : i32
    %c0_i32_0 = arith.constant 0 : i32
    %c0_i32_1 = arith.constant 0 : i32
    return %c0_i32, %c0_i32_0 : i32, i32
  }
  func.func @transform_6(%arg0: i32) -> (i32, i32) {
    %c0_i32 = arith.constant 0 : i32
    %c0_i32_0 = arith.constant 0 : i32
    %c0_i32_1 = arith.constant 0 : i32
    return %c0_i32, %c0_i32_0 : i32, i32
  }
  func.func @transform_7(%arg0: i32) -> (i32, i32) {
    %c0_i32 = arith.constant 0 : i32
    %c0_i32_0 = arith.constant 0 : i32
    %c0_i32_1 = arith.constant 0 : i32
    return %c0_i32, %c0_i32_0 : i32, i32
  }
  func.func @transform_8(%arg0: i32) -> (i32, i32) {
    %c0_i32 = arith.constant 0 : i32
    %c0_i32_0 = arith.constant 0 : i32
    %c0_i32_1 = arith.constant 0 : i32
    return %c0_i32, %c0_i32_0 : i32, i32
  }
  func.func @transform_9(%arg0: i32) -> (i32, i32) {
    %c0_i32 = arith.constant 0 : i32
    %c0_i32_0 = arith.constant 0 : i32
    %c0_i32_1 = arith.constant 0 : i32
    return %c0_i32, %c0_i32_0 : i32, i32
  }
  func.func @transform_10(%arg0: i32) -> (i32, i32) {
    %c0_i32 = arith.constant 0 : i32
    %c0_i32_0 = arith.constant 0 : i32
    %c0_i32_1 = arith.constant 0 : i32
    return %c0_i32, %c0_i32_0 : i32, i32
  }
  func.func @transform_11(%arg0: i32) -> (i32, i32) {
    %c0_i32 = arith.constant 0 : i32
    %c0_i32_0 = arith.constant 0 : i32
    %c0_i32_1 = arith.constant 0 : i32
    return %c0_i32, %c0_i32_0 : i32, i32
  }
  func.func @transform_12(%arg0: i32) -> (i32, i32) {
    %c0_i32 = arith.constant 0 : i32
    %c0_i32_0 = arith.constant 0 : i32
    %c0_i32_1 = arith.constant 0 : i32
    return %c0_i32, %c0_i32_0 : i32, i32
  }
  func.func @transform_13(%arg0: i32) -> (i32, i32) {
    %c0_i32 = arith.constant 0 : i32
    %c0_i32_0 = arith.constant 0 : i32
    %c0_i32_1 = arith.constant 0 : i32
    return %c0_i32, %c0_i32_0 : i32, i32
  }
  func.func @transform_14(%arg0: i32) -> (i32, i32, i32) {
    %c0_i32 = arith.constant 0 : i32
    %c0_i32_0 = arith.constant 0 : i32
    %c0_i32_1 = arith.constant 0 : i32
    %c0_i32_2 = arith.constant 0 : i32
    return %c0_i32, %c0_i32_0, %c0_i32_1 : i32, i32, i32
  }
  func.func @transform_15(%arg0: i32) -> (i32, i32, i32) {
    %c0_i32 = arith.constant 0 : i32
    %c0_i32_0 = arith.constant 0 : i32
    %c0_i32_1 = arith.constant 0 : i32
    %c0_i32_2 = arith.constant 0 : i32
    return %c0_i32, %c0_i32_0, %c0_i32_1 : i32, i32, i32
  }
}

</mosaic_0001>

<llo_original>
// kernel: res_transformer_forward.3
$region0: #{res_transformer_forward.3}
  #allocation0 [shape = 'u32[]', space=smem, size = 0x4, offset = 0x4, fixed_abs, tag = 'smem constant byte address 0x4 - core index']
  #allocation1 [shape = 'u32[144,128]{1,0:T(1,128)}', space=vmem, size = 0x12000, scoped, tag = 'internal scratch']
  %s0 = inlined_call_operand.vmem [shape: f32[512,9], index: 0, kind: input, shape index: {}]
  %s1 = inlined_call_operand.vmem [shape: f32[9,8], index: 1, kind: input, shape index: {}]
  %s2 = inlined_call_operand.vmem [shape: f32[1,8], index: 2, kind: input, shape index: {}]
  %s3 = inlined_call_operand.vmem [shape: f32[1,8], index: 3, kind: input, shape index: {}]
  %s4 = inlined_call_operand.vmem [shape: f32[512,8], index: 4, kind: output, shape index: {}]
  %s5 = sld [smem:[#allocation0]]
  $region49: #{res_transformer_forward.3} parent=0
    _
  %s7 = ssub.s32 1, %s5
  %s8 = scalar_select 0, %s7, %s5
  loop: start=0, step=1, limit=4
  $region2: #{res_transformer_forward.3} parent=0 // loop_pre_header
    _
  $region3: #{res_transformer_forward.3} parent=0 // loop_header
    %s10 = sphi 0, %s14
    %p11 = scmp.ge.s32.totalorder %s10, 4
    %s20 = sphi 0, %s22
    %s23 = sphi 0, %s20
    %s24 = sphi 0, %s23
    %s40 = sphi 0, %s24
    %s44 = sphi 0, %s44
    %s46 = sphi 0, %s44
    %s47 = sphi 0, %s46
    %s61 = sphi 0, %s47
    %s65 = sphi 0, %s65
    %s67 = sphi 0, %s65
    %s68 = sphi 0, %s67
    %s82 = sphi 0, %s68
    %s86 = sphi 0, %s86
    %s88 = sphi 0, %s86
    %s89 = sphi 0, %s88
    %s103 = sphi 0, %s89
    %s109 = sphi 0, %s111
    %s112 = sphi 0, %s109
    %s113 = sphi 0, %s112
    %s129 = sphi 0, %s113
  $region4: #{res_transformer_forward.3} parent=0 // loop_header_branch
    %13 = sbr.rel (%p11) target = $region8
  $region5: #{res_transformer_forward.3} parent=0 // loop_body
    %s15 = ssub.s32 %s10, 1
    %s16 = ssub.s32 %s10, 2
    %s17 = sadd.s32 %s10, 1
    %s18 = ssub.s32 %s10, %s17
    %p19 = scmp.eq.s32.totalorder %s18, 0
    %s21 = sadd.s32 %s20, 1
    %s22 = scalar_select %p19, %s20, %s21
    %p25 = pneg %p19
    %p26 = scmp.eq.s32.totalorder %s10, 1
    %p27 = por %p25, %p26
    %p28 = scmp.ne.s32.totalorder %s20, %s23
    %p29 = scmp.eq.s32.totalorder %s10, 0
    %p30 = por %p28, %p29
    %p31 = scmp.ne.s32.totalorder %s20, %s23
    %p32 = scmp.eq.s32.totalorder %s15, 1
    %p33 = por %p31, %p32
    %p34 = scmp.ne.s32.totalorder %s23, %s24
    %p35 = scmp.eq.s32.totalorder %s15, 0
    %p36 = por %p34, %p35
    %p37 = scmp.ne.s32.totalorder %s23, %s24
    %p38 = scmp.eq.s32.totalorder %s16, 1
    %p39 = por %p37, %p38
    %p41 = scmp.ne.s32.totalorder %s24, %s40
    %p42 = scmp.eq.s32.totalorder %s16, 0
    %p43 = por %p41, %p42
    %s45 = sadd.s32 %s44, 1
    %p48 = scmp.eq.s32.totalorder %s10, 1
    %p49 = scmp.ne.s32.totalorder %s44, %s46
    %p50 = scmp.eq.s32.totalorder %s10, 0
    %p51 = por %p49, %p50
    %p52 = scmp.ne.s32.totalorder %s44, %s46
    %p53 = scmp.eq.s32.totalorder %s15, 1
    %p54 = por %p52, %p53
    %p55 = scmp.ne.s32.totalorder %s46, %s47
    %p56 = scmp.eq.s32.totalorder %s15, 0
    %p57 = por %p55, %p56
    %p58 = scmp.ne.s32.totalorder %s46, %s47
    %p59 = scmp.eq.s32.totalorder %s16, 1
    %p60 = por %p58, %p59
    %p62 = scmp.ne.s32.totalorder %s47, %s61
    %p63 = scmp.eq.s32.totalorder %s16, 0
    %p64 = por %p62, %p63
    %s66 = sadd.s32 %s65, 1
    %p69 = scmp.eq.s32.totalorder %s10, 1
    %p70 = scmp.ne.s32.totalorder %s65, %s67
    %p71 = scmp.eq.s32.totalorder %s10, 0
    %p72 = por %p70, %p71
    %p73 = scmp.ne.s32.totalorder %s65, %s67
    %p74 = scmp.eq.s32.totalorder %s15, 1
    %p75 = por %p73, %p74
    %p76 = scmp.ne.s32.totalorder %s67, %s68
    %p77 = scmp.eq.s32.totalorder %s15, 0
    %p78 = por %p76, %p77
    %p79 = scmp.ne.s32.totalorder %s67, %s68
    %p80 = scmp.eq.s32.totalorder %s16, 1
    %p81 = por %p79, %p80
    %p83 = scmp.ne.s32.totalorder %s68, %s82
    %p84 = scmp.eq.s32.totalorder %s16, 0
    %p85 = por %p83, %p84
    %s87 = sadd.s32 %s86, 1
    %p90 = scmp.eq.s32.totalorder %s10, 1
    %p91 = scmp.ne.s32.totalorder %s86, %s88
    %p92 = scmp.eq.s32.totalorder %s10, 0
    %p93 = por %p91, %p92
    %p94 = scmp.ne.s32.totalorder %s86, %s88
    %p95 = scmp.eq.s32.totalorder %s15, 1
    %p96 = por %p94, %p95
    %p97 = scmp.ne.s32.totalorder %s88, %s89
    %p98 = scmp.eq.s32.totalorder %s15, 0
    %p99 = por %p97, %p98
    %p100 = scmp.ne.s32.totalorder %s88, %s89
    %p101 = scmp.eq.s32.totalorder %s16, 1
    %p102 = por %p100, %p101
    %p104 = scmp.ne.s32.totalorder %s89, %s103
    %p105 = scmp.eq.s32.totalorder %s16, 0
    %p106 = por %p104, %p105
    %s107 = ssub.s32 %s10, %s17
    %p108 = scmp.eq.s32.totalorder %s107, 0
    %s110 = sadd.s32 %s109, 1
    %s111 = scalar_select %p108, %s109, %s110
    %p114 = pneg %p108
    %p115 = scmp.eq.s32.totalorder %s10, 1
    %p116 = por %p114, %p115
    %p117 = scmp.ne.s32.totalorder %s109, %s112
    %p118 = scmp.eq.s32.totalorder %s10, 0
    %p119 = por %p117, %p118
    %p120 = scmp.ne.s32.totalorder %s109, %s112
    %p121 = scmp.eq.s32.totalorder %s15, 1
    %p122 = por %p120, %p121
    %p123 = scmp.ne.s32.totalorder %s112, %s113
    %p124 = scmp.eq.s32.totalorder %s15, 0
    %p125 = por %p123, %p124
    %p126 = scmp.ne.s32.totalorder %s112, %s113
    %p127 = scmp.eq.s32.totalorder %s16, 1
    %p128 = por %p126, %p127
    %p130 = scmp.ne.s32.totalorder %s113, %s129
    %p131 = scmp.eq.s32.totalorder %s16, 0
    %p132 = por %p130, %p131
    %p133 = scmp.le.s32.totalorder 1, %s10
    %p134 = scmp.lt.s32.totalorder %s10, 3
    %p135 = pnand %p133, %p134
    %p136 = pneg %p135
    // Predicated region
    $region9: #{res_transformer_forward.3} parent=5 // pred_check
      _
    $region10: #{res_transformer_forward.3} parent=5 // pred_check_branch
      %138 = sbr.rel (%p135) target = $region12
    $region11: #{res_transformer_forward.3} parent=5 // pred_region
      %s139 = ssub.s32 %s10, 1
      // Predicated region
      $region13: #{res_transformer_forward.3} parent=11 // pred_check
        %p140 = pneg %p57
      $region14: #{res_transformer_forward.3} parent=11 // pred_check_branch
        %142 = sbr.rel (%p140) target = $region16
      $region15: #{res_transformer_forward.3} parent=11 // pred_region
        _
      $region16: #{res_transformer_forward.3} parent=11 // pred_fallthru
        _
      // Predicated region
      $region17: #{res_transformer_forward.3} parent=11 // pred_check
        %p143 = pneg %p78
      $region18: #{res_transformer_forward.3} parent=11 // pred_check_branch
        %145 = sbr.rel (%p143) target = $region20
      $region19: #{res_transformer_forward.3} parent=11 // pred_region
        _
      $region20: #{res_transformer_forward.3} parent=11 // pred_fallthru
        _
      // Predicated region
      $region21: #{res_transformer_forward.3} parent=11 // pred_check
        %p146 = pneg %p99
      $region22: #{res_transformer_forward.3} parent=11 // pred_check_branch
        %148 = sbr.rel (%p146) target = $region24
      $region23: #{res_transformer_forward.3} parent=11 // pred_region
        _
      $region24: #{res_transformer_forward.3} parent=11 // pred_fallthru
        _
    $region12: #{res_transformer_forward.3} parent=5 // pred_fallthru
      _
    %p149 = scmp.lt.s32.totalorder %s10, 2
    // Predicated region
    $region25: #{res_transformer_forward.3} parent=5 // pred_check
      %p150 = pneg %p149
    $region26: #{res_transformer_forward.3} parent=5 // pred_check_branch
      %152 = sbr.rel (%p150) target = $region28
    $region27: #{res_transformer_forward.3} parent=5 // pred_region
      // Predicated region
      $region29: #{res_transformer_forward.3} parent=27 // pred_check
        %p153 = pneg %p30
      $region30: #{res_transformer_forward.3} parent=27 // pred_check_branch
        %155 = sbr.rel (%p153) target = $region32
      $region31: #{res_transformer_forward.3} parent=27 // pred_region
        %s156 = smul.u32 32, %s10
        %p157 = scmp.lt.s32.totalorder %s156, 63
        %s158 = scalar_select %p157, %s156, 63
        %s159 = smul.addr %s158, 8
        %s160 = scalar_lea.vmem %s0, %s159
        %s161 = smul.u32 32, %s10
      $region32: #{res_transformer_forward.3} parent=27 // pred_fallthru
        _
    $region28: #{res_transformer_forward.3} parent=5 // pred_fallthru
      _
    %p162 = scmp.le.s32.totalorder 1, %s10
    %p163 = scmp.lt.s32.totalorder %s10, 3
    %p164 = pnand %p162, %p163
    %p165 = pneg %p164
    // Predicated region
    $region33: #{res_transformer_forward.3} parent=5 // pred_check
      _
    $region34: #{res_transformer_forward.3} parent=5 // pred_check_branch
      %167 = sbr.rel (%p164) target = $region36
    $region35: #{res_transformer_forward.3} parent=5 // pred_region
      %s168 = ssub.s32 %s10, 1
      %s169 = smul.u32 32, %s15
      %p170 = scmp.lt.s32.totalorder %s169, 63
      %s171 = scalar_select %p170, %s169, 63
      %s172 = smul.addr %s171, 8
      %s173 = scalar_lea.vmem %s0, %s172
      %p174 = pneg %p36
      %p175 = pneg %p33
      %p176 = pneg %p57
      %p177 = pneg %p54
      %p178 = pneg %p78
      %p179 = pneg %p75
      %p180 = pneg %p99
      %p181 = pneg %p96
      %p182 = pneg %p125
      %p183 = pneg %p122
      %s184 = smul.u32 32, %s15
      %p185 = scmp.lt.s32.totalorder %s184, 63
      %s186 = scalar_select %p185, %s184, 63
      %s187 = smul.addr %s186, 8
      %s188 = scalar_lea.vmem %s4, %s187
      %s189 = smul.u32 32, %s15
      %p190 = scmp.lt.s32.totalorder %s189, 63
      %s191 = scalar_select %p190, %s189, 63
      %s192 = smul.addr %s191, 8
      %s193 = scalar_lea.vmem %s0, %s192
      %s194 = smul.u32 32, %s15
      %s195 = smul.u32 32, %s15
      %p196 = scmp.lt.s32.totalorder %s195, 63
      %s197 = scalar_select %p196, %s195, 63
      %s198 = smul.addr %s197, 8
      %s199 = scalar_lea.vmem %s4, %s198
      %s200 = smul.u32 32, %s15
      %v201 = vld [vmem:[%s193] sm:$0xff]
      %v202 = vld [vmem:[%s193 + $0x8] sm:$0xff]
      %v203 = vld [vmem:[%s193 + $0x10] sm:$0xff]
      %v204 = vld [vmem:[%s193 + $0x18] sm:$0xff]
      %v205 = vld [vmem:[%s193 + $0x20] sm:$0xff]
      %v206 = vld [vmem:[%s193 + $0x28] sm:$0xff]
      %v207 = vld [vmem:[%s193 + $0x30] sm:$0xff]
      %v208 = vld [vmem:[%s193 + $0x38] sm:$0xff]
      %v209 = vld [vmem:[%s193 + $0x40] sm:$0xff]
      %v210 = vld [vmem:[%s193 + $0x48] sm:$0xff]
      %v211 = vld [vmem:[%s193 + $0x50] sm:$0xff]
      %v212 = vld [vmem:[%s193 + $0x58] sm:$0xff]
      %v213 = vld [vmem:[%s193 + $0x60] sm:$0xff]
      %v214 = vld [vmem:[%s193 + $0x68] sm:$0xff]
      %v215 = vld [vmem:[%s193 + $0x70] sm:$0xff]
      %v216 = vld [vmem:[%s193 + $0x78] sm:$0xff]
      %v217 = vld [vmem:[%s193 + $0x80] sm:$0xff]
      %v218 = vld [vmem:[%s193 + $0x88] sm:$0xff]
      %v219 = vld [vmem:[%s193 + $0x90] sm:$0xff]
      %v220 = vld [vmem:[%s193 + $0x98] sm:$0xff]
      %v221 = vld [vmem:[%s193 + $0xa0] sm:$0xff]
      %v222 = vld [vmem:[%s193 + $0xa8] sm:$0xff]
      %v223 = vld [vmem:[%s193 + $0xb0] sm:$0xff]
      %v224 = vld [vmem:[%s193 + $0xb8] sm:$0xff]
      %v225 = vld [vmem:[%s193 + $0xc0] sm:$0xff]
      %v226 = vld [vmem:[%s193 + $0xc8] sm:$0xff]
      %v227 = vld [vmem:[%s193 + $0xd0] sm:$0xff]
      %v228 = vld [vmem:[%s193 + $0xd8] sm:$0xff]
      %v229 = vld [vmem:[%s193 + $0xe0] sm:$0xff]
      %v230 = vld [vmem:[%s193 + $0xe8] sm:$0xff]
      %v231 = vld [vmem:[%s193 + $0xf0] sm:$0xff]
      %v232 = vld [vmem:[%s193 + $0xf8] sm:$0xff]
      %v233 = vld [vmem:[%s1] sm:$0xff]
      %v234 = vld [vmem:[%s1 + $0x8] sm:$0x1]
      %vm235 = vcmask 72704
      %v237 = vsel %vm235, %v201, 0
      %v240 = vsel %vm235, %v202, 0
      %v243 = vsel %vm235, %v203, 0
      %v246 = vsel %vm235, %v204, 0
      %v249 = vsel %vm235, %v205, 0
      %v252 = vsel %vm235, %v206, 0
      %v255 = vsel %vm235, %v207, 0
      %v258 = vsel %vm235, %v208, 0
      %v261 = vsel %vm235, %v209, 0
      %v264 = vsel %vm235, %v210, 0
      %v267 = vsel %vm235, %v211, 0
      %v270 = vsel %vm235, %v212, 0
      %v273 = vsel %vm235, %v213, 0
      %v276 = vsel %vm235, %v214, 0
      %v279 = vsel %vm235, %v215, 0
      %v282 = vsel %vm235, %v216, 0
      %v285 = vsel %vm235, %v217, 0
      %v288 = vsel %vm235, %v218, 0
      %v291 = vsel %vm235, %v219, 0
      %v294 = vsel %vm235, %v220, 0
      %v297 = vsel %vm235, %v221, 0
      %v300 = vsel %vm235, %v222, 0
      %v303 = vsel %vm235, %v223, 0
      %v306 = vsel %vm235, %v224, 0
      %v309 = vsel %vm235, %v225, 0
      %v312 = vsel %vm235, %v226, 0
      %v315 = vsel %vm235, %v227, 0
      %v318 = vsel %vm235, %v228, 0
      %v321 = vsel %vm235, %v229, 0
      %v324 = vsel %vm235, %v230, 0
      %v327 = vsel %vm235, %v231, 0
      %v330 = vsel %vm235, %v232, 0
      %vm332 = vcmask 1040384
      %v334 = vsel %vm332, %v234, 0
      %336 = vmatprep.subr.mxu0 0.0
      %337 = vmatpush1.msra.mxu0 %v233
      %338 = vmatprep.subr.mxu0 0.0
      %339 = vmatpush1.msra.mxu0 %v334
      %340 = vmatprep.subr.mxu0 0.0
      %341 = vmatpush1.msra.mxu0 0.0
      %342 = vmatprep.subr.mxu0 0.0
      %343 = vmatpush1.msra.mxu0 0.0
      %344 = vmatprep.subr.mxu0 0.0
      %345 = vmatpush1.msra.mxu0 0.0
      %346 = vmatprep.subr.mxu0 0.0
      %347 = vmatpush1.msra.mxu0 0.0
      %348 = vmatprep.subr.mxu0 0.0
      %349 = vmatpush1.msra.mxu0 0.0
      %350 = vmatprep.subr.mxu0 0.0
      %351 = vmatpush1.msra.mxu0 0.0
      %352 = vmatprep.subr.mxu0 0.0
      %353 = vmatpush1.msra.mxu0 0.0
      %354 = vmatprep.subr.mxu0 0.0
      %355 = vmatpush1.msra.mxu0 0.0
      %356 = vmatprep.subr.mxu0 0.0
      %357 = vmatpush1.msra.mxu0 0.0
      %358 = vmatprep.subr.mxu0 0.0
      %359 = vmatpush1.msra.mxu0 0.0
      %360 = vmatprep.subr.mxu0 0.0
      %361 = vmatpush1.msra.mxu0 0.0
      %362 = vmatprep.subr.mxu0 0.0
      %363 = vmatpush1.msra.mxu0 0.0
      %364 = vmatprep.subr.mxu0 0.0
      %365 = vmatpush1.msra.mxu0 0.0
      %366 = vmatprep.subr.mxu0 0.0
      %367 = vmatpush1.msra.mxu0 0.0
      %368 = vmatprep.subr.mxu0 0.0
      %369 = vmatpush1.msra.mxu0 0.0
      %370 = vmatprep.subr.mxu0 0.0
      %371 = vmatpush1.msra.mxu0 0.0
      %372 = vmatprep.subr.mxu0 0.0
      %373 = vmatpush1.msra.mxu0 0.0
      %374 = vmatprep.subr.mxu0 0.0
      %375 = vmatpush1.msra.mxu0 0.0
      %376 = vmatprep.subr.mxu0 0.0
      %377 = vmatpush1.msra.mxu0 0.0
      %378 = vmatprep.subr.mxu0 0.0
      %379 = vmatpush1.msra.mxu0 0.0
      %380 = vmatprep.subr.mxu0 0.0
      %381 = vmatpush1.msra.mxu0 0.0
      %382 = vmatprep.subr.mxu0 0.0
      %383 = vmatpush1.msra.mxu0 0.0
      %384 = vmatprep.subr.mxu0 0.0
      %385 = vmatpush1.msra.mxu0 0.0
      %386 = vmatprep.subr.mxu0 0.0
      %387 = vmatpush1.msra.mxu0 0.0
      %388 = vmatprep.subr.mxu0 0.0
      %389 = vmatpush1.msra.mxu0 0.0
      %390 = vmatprep.subr.mxu0 0.0
      %391 = vmatpush1.msra.mxu0 0.0
      %392 = vmatprep.subr.mxu0 0.0
      %393 = vmatpush1.msra.mxu0 0.0
      %394 = vmatprep.subr.mxu0 0.0
      %395 = vmatpush1.msra.mxu0 0.0
      %396 = vmatprep.subr.mxu0 0.0
      %397 = vmatpush1.msra.mxu0 0.0
      %398 = vmatprep.subr.mxu0 0.0
      %399 = vmatpush1.msra.mxu0 0.0
      %400 = vmatprep.mubr.f32.mxu0 0.0
      %401 = vmatmul.mubr.f32.gmra.mrb[0].mxu0 %v237
      %v402 = vpop.f32.mrb[0].mxu0
      %v403 = vadd.f32 0.0, %v402
      %v404 = vpop.f32.mrb[0].mxu0
      %405 = vmatprep.mubr.f32.mxu0 0.0
      %406 = vmatmul.mubr.f32.gmra.mrb[0].mxu0 %v240
      %v407 = vpop.f32.mrb[0].mxu0
      %v408 = vadd.f32 0.0, %v407
      %v409 = vpop.f32.mrb[0].mxu0
      %410 = vmatprep.mubr.f32.mxu0 0.0
      %411 = vmatmul.mubr.f32.gmra.mrb[0].mxu0 %v243
      %v412 = vpop.f32.mrb[0].mxu0
      %v413 = vadd.f32 0.0, %v412
      %v414 = vpop.f32.mrb[0].mxu0
      %415 = vmatprep.mubr.f32.mxu0 0.0
      %416 = vmatmul.mubr.f32.gmra.mrb[0].mxu0 %v246
      %v417 = vpop.f32.mrb[0].mxu0
      %v418 = vadd.f32 0.0, %v417
      %v419 = vpop.f32.mrb[0].mxu0
      %420 = vmatprep.mubr.f32.mxu0 0.0
      %421 = vmatmul.mubr.f32.gmra.mrb[0].mxu0 %v249
      %v422 = vpop.f32.mrb[0].mxu0
      %v423 = vadd.f32 0.0, %v422
      %v424 = vpop.f32.mrb[0].mxu0
      %425 = vmatprep.mubr.f32.mxu0 0.0
      %426 = vmatmul.mubr.f32.gmra.mrb[0].mxu0 %v252
      %v427 = vpop.f32.mrb[0].mxu0
      %v428 = vadd.f32 0.0, %v427
      %v429 = vpop.f32.mrb[0].mxu0
      %430 = vmatprep.mubr.f32.mxu0 0.0
      %431 = vmatmul.mubr.f32.gmra.mrb[0].mxu0 %v255
      %v432 = vpop.f32.mrb[0].mxu0
      %v433 = vadd.f32 0.0, %v432
      %v434 = vpop.f32.mrb[0].mxu0
      %435 = vmatprep.mubr.f32.mxu0 0.0
      %436 = vmatmul.mubr.f32.gmra.mrb[0].mxu0 %v258
      %v437 = vpop.f32.mrb[0].mxu0
      %v438 = vadd.f32 0.0, %v437
      %v439 = vpop.f32.mrb[0].mxu0
      %440 = vmatprep.mubr.f32.mxu0 0.0
      %441 = vmatmul.mubr.f32.gmra.mrb[0].mxu0 %v261
      %v442 = vpop.f32.mrb[0].mxu0
      %v443 = vadd.f32 0.0, %v442
      %v444 = vpop.f32.mrb[0].mxu0
      %445 = vmatprep.mubr.f32.mxu0 0.0
      %446 = vmatmul.mubr.f32.gmra.mrb[0].mxu0 %v264
      %v447 = vpop.f32.mrb[0].mxu0
      %v448 = vadd.f32 0.0, %v447
      %v449 = vpop.f32.mrb[0].mxu0
      %450 = vmatprep.mubr.f32.mxu0 0.0
      %451 = vmatmul.mubr.f32.gmra.mrb[0].mxu0 %v267
      %v452 = vpop.f32.mrb[0].mxu0
      %v453 = vadd.f32 0.0, %v452
      %v454 = vpop.f32.mrb[0].mxu0
      %455 = vmatprep.mubr.f32.mxu0 0.0
      %456 = vmatmul.mubr.f32.gmra.mrb[0].mxu0 %v270
      %v457 = vpop.f32.mrb[0].mxu0
      %v458 = vadd.f32 0.0, %v457
      %v459 = vpop.f32.mrb[0].mxu0
      %460 = vmatprep.mubr.f32.mxu0 0.0
      %461 = vmatmul.mubr.f32.gmra.mrb[0].mxu0 %v273
      %v462 = vpop.f32.mrb[0].mxu0
      %v463 = vadd.f32 0.0, %v462
      %v464 = vpop.f32.mrb[0].mxu0
      %465 = vmatprep.mubr.f32.mxu0 0.0
      %466 = vmatmul.mubr.f32.gmra.mrb[0].mxu0 %v276
      %v467 = vpop.f32.mrb[0].mxu0
      %v468 = vadd.f32 0.0, %v467
      %v469 = vpop.f32.mrb[0].mxu0
      %470 = vmatprep.mubr.f32.mxu0 0.0
      %471 = vmatmul.mubr.f32.gmra.mrb[0].mxu0 %v279
      %v472 = vpop.f32.mrb[0].mxu0
      %v473 = vadd.f32 0.0, %v472
      %v474 = vpop.f32.mrb[0].mxu0
      %475 = vmatprep.mubr.f32.mxu0 0.0
      %476 = vmatmul.mubr.f32.gmra.mrb[0].mxu0 %v282
      %v477 = vpop.f32.mrb[0].mxu0
      %v478 = vadd.f32 0.0, %v477
      %v479 = vpop.f32.mrb[0].mxu0
      %480 = vmatprep.mubr.f32.mxu0 0.0
      %481 = vmatmul.mubr.f32.gmra.mrb[0].mxu0 %v285
      %v482 = vpop.f32.mrb[0].mxu0
      %v483 = vadd.f32 0.0, %v482
      %v484 = vpop.f32.mrb[0].mxu0
      %485 = vmatprep.mubr.f32.mxu0 0.0
      %486 = vmatmul.mubr.f32.gmra.mrb[0].mxu0 %v288
      %v487 = vpop.f32.mrb[0].mxu0
      %v488 = vadd.f32 0.0, %v487
      %v489 = vpop.f32.mrb[0].mxu0
      %490 = vmatprep.mubr.f32.mxu0 0.0
      %491 = vmatmul.mubr.f32.gmra.mrb[0].mxu0 %v291
      %v492 = vpop.f32.mrb[0].mxu0
      %v493 = vadd.f32 0.0, %v492
      %v494 = vpop.f32.mrb[0].mxu0
      %495 = vmatprep.mubr.f32.mxu0 0.0
      %496 = vmatmul.mubr.f32.gmra.mrb[0].mxu0 %v294
      %v497 = vpop.f32.mrb[0].mxu0
      %v498 = vadd.f32 0.0, %v497
      %v499 = vpop.f32.mrb[0].mxu0
      %500 = vmatprep.mubr.f32.mxu0 0.0
      %501 = vmatmul.mubr.f32.gmra.mrb[0].mxu0 %v297
      %v502 = vpop.f32.mrb[0].mxu0
      %v503 = vadd.f32 0.0, %v502
      %v504 = vpop.f32.mrb[0].mxu0
      %505 = vmatprep.mubr.f32.mxu0 0.0
      %506 = vmatmul.mubr.f32.gmra.mrb[0].mxu0 %v300
      %v507 = vpop.f32.mrb[0].mxu0
      %v508 = vadd.f32 0.0, %v507
      %v509 = vpop.f32.mrb[0].mxu0
      %510 = vmatprep.mubr.f32.mxu0 0.0
      %511 = vmatmul.mubr.f32.gmra.mrb[0].mxu0 %v303
      %v512 = vpop.f32.mrb[0].mxu0
      %v513 = vadd.f32 0.0, %v512
      %v514 = vpop.f32.mrb[0].mxu0
      %515 = vmatprep.mubr.f32.mxu0 0.0
      %516 = vmatmul.mubr.f32.gmra.mrb[0].mxu0 %v306
      %v517 = vpop.f32.mrb[0].mxu0
      %v518 = vadd.f32 0.0, %v517
      %v519 = vpop.f32.mrb[0].mxu0
      %520 = vmatprep.mubr.f32.mxu0 0.0
      %521 = vmatmul.mubr.f32.gmra.mrb[0].mxu0 %v309
      %v522 = vpop.f32.mrb[0].mxu0
      %v523 = vadd.f32 0.0, %v522
      %v524 = vpop.f32.mrb[0].mxu0
      %525 = vmatprep.mubr.f32.mxu0 0.0
      %526 = vmatmul.mubr.f32.gmra.mrb[0].mxu0 %v312
      %v527 = vpop.f32.mrb[0].mxu0
      %v528 = vadd.f32 0.0, %v527
      %v529 = vpop.f32.mrb[0].mxu0
      %530 = vmatprep.mubr.f32.mxu0 0.0
      %531 = vmatmul.mubr.f32.gmra.mrb[0].mxu0 %v315
      %v532 = vpop.f32.mrb[0].mxu0
      %v533 = vadd.f32 0.0, %v532
      %v534 = vpop.f32.mrb[0].mxu0
      %535 = vmatprep.mubr.f32.mxu0 0.0
      %536 = vmatmul.mubr.f32.gmra.mrb[0].mxu0 %v318
      %v537 = vpop.f32.mrb[0].mxu0
      %v538 = vadd.f32 0.0, %v537
      %v539 = vpop.f32.mrb[0].mxu0
      %540 = vmatprep.mubr.f32.mxu0 0.0
      %541 = vmatmul.mubr.f32.gmra.mrb[0].mxu0 %v321
      %v542 = vpop.f32.mrb[0].mxu0
      %v543 = vadd.f32 0.0, %v542
      %v544 = vpop.f32.mrb[0].mxu0
      %545 = vmatprep.mubr.f32.mxu0 0.0
      %546 = vmatmul.mubr.f32.gmra.mrb[0].mxu0 %v324
      %v547 = vpop.f32.mrb[0].mxu0
      %v548 = vadd.f32 0.0, %v547
      %v549 = vpop.f32.mrb[0].mxu0
      %550 = vmatprep.mubr.f32.mxu0 0.0
      %551 = vmatmul.mubr.f32.gmra.mrb[0].mxu0 %v327
      %v552 = vpop.f32.mrb[0].mxu0
      %v553 = vadd.f32 0.0, %v552
      %v554 = vpop.f32.mrb[0].mxu0
      %555 = vmatprep.mubr.f32.mxu0 0.0
      %556 = vmatmul.mubr.f32.gmra.mrb[0].mxu0 %v330
      %v557 = vpop.f32.mrb[0].mxu0
      %v558 = vadd.f32 0.0, %v557
      %v559 = vpop.f32.mrb[0].mxu0
      %560 = vdwg.mxu0
      %v561 = vld [vmem:[%s2] sm:$0x1]
      %v563 = vlaneseq
      %v564 = vshrl.u32 %v563, 7
      %v565 = vsub.s32 0, %v564
      %v566 = vrot.slane %v561, %v565
      %v568 = vmul.f32 %v403, %v566
      %v569 = vmul.f32 %v408, %v566
      %v570 = vmul.f32 %v413, %v566
      %v571 = vmul.f32 %v418, %v566
      %v572 = vmul.f32 %v423, %v566
      %v573 = vmul.f32 %v428, %v566
      %v574 = vmul.f32 %v433, %v566
      %v575 = vmul.f32 %v438, %v566
      %v576 = vmul.f32 %v443, %v566
      %v577 = vmul.f32 %v448, %v566
      %v578 = vmul.f32 %v453, %v566
      %v579 = vmul.f32 %v458, %v566
      %v580 = vmul.f32 %v463, %v566
      %v581 = vmul.f32 %v468, %v566
      %v582 = vmul.f32 %v473, %v566
      %v583 = vmul.f32 %v478, %v566
      %v584 = vmul.f32 %v483, %v566
      %v585 = vmul.f32 %v488, %v566
      %v586 = vmul.f32 %v493, %v566
      %v587 = vmul.f32 %v498, %v566
      %v588 = vmul.f32 %v503, %v566
      %v589 = vmul.f32 %v508, %v566
      %v590 = vmul.f32 %v513, %v566
      %v591 = vmul.f32 %v518, %v566
      %v592 = vmul.f32 %v523, %v566
      %v593 = vmul.f32 %v528, %v566
      %v594 = vmul.f32 %v533, %v566
      %v595 = vmul.f32 %v538, %v566
      %v596 = vmul.f32 %v543, %v566
      %v597 = vmul.f32 %v548, %v566
      %v598 = vmul.f32 %v553, %v566
      %v599 = vmul.f32 %v558, %v566
      %v600 = vld [vmem:[%s3] sm:$0x1]
      %v602 = vlaneseq
      %v603 = vshrl.u32 %v602, 7
      %v604 = vsub.s32 0, %v603
      %v605 = vrot.slane %v600, %v604
      %v607 = vadd.f32 %v568, %v605
      %v608 = vadd.f32 %v569, %v605
      %v609 = vadd.f32 %v570, %v605
      %v610 = vadd.f32 %v571, %v605
      %v611 = vadd.f32 %v572, %v605
      %v612 = vadd.f32 %v573, %v605
      %v613 = vadd.f32 %v574, %v605
      %v614 = vadd.f32 %v575, %v605
      %v615 = vadd.f32 %v576, %v605
      %v616 = vadd.f32 %v577, %v605
      %v617 = vadd.f32 %v578, %v605
      %v618 = vadd.f32 %v579, %v605
      %v619 = vadd.f32 %v580, %v605
      %v620 = vadd.f32 %v581, %v605
      %v621 = vadd.f32 %v582, %v605
      %v622 = vadd.f32 %v583, %v605
      %v623 = vadd.f32 %v584, %v605
      %v624 = vadd.f32 %v585, %v605
      %v625 = vadd.f32 %v586, %v605
      %v626 = vadd.f32 %v587, %v605
      %v627 = vadd.f32 %v588, %v605
      %v628 = vadd.f32 %v589, %v605
      %v629 = vadd.f32 %v590, %v605
      %v630 = vadd.f32 %v591, %v605
      %v631 = vadd.f32 %v592, %v605
      %v632 = vadd.f32 %v593, %v605
      %v633 = vadd.f32 %v594, %v605
      %v634 = vadd.f32 %v595, %v605
      %v635 = vadd.f32 %v596, %v605
      %v636 = vadd.f32 %v597, %v605
      %v637 = vadd.f32 %v598, %v605
      %v638 = vadd.f32 %v599, %v605
      %v639 = vtanh.pop %v607
      %v640 = vtanh.pop %v608
      %v641 = vtanh.pop %v609
      %v642 = vtanh.pop %v610
      %v643 = vtanh.pop %v611
      %v644 = vtanh.pop %v612
      %v645 = vtanh.pop %v613
      %v646 = vtanh.pop %v614
      %v647 = vtanh.pop %v615
      %v648 = vtanh.pop %v616
      %v649 = vtanh.pop %v617
      %v650 = vtanh.pop %v618
      %v651 = vtanh.pop %v619
      %v652 = vtanh.pop %v620
      %v653 = vtanh.pop %v621
      %v654 = vtanh.pop %v622
      %v655 = vtanh.pop %v623
      %v656 = vtanh.pop %v624
      %v657 = vtanh.pop %v625
      %v658 = vtanh.pop %v626
      %v659 = vtanh.pop %v627
      %v660 = vtanh.pop %v628
      %v661 = vtanh.pop %v629
      %v662 = vtanh.pop %v630
      %v663 = vtanh.pop %v631
      %v664 = vtanh.pop %v632
      %v665 = vtanh.pop %v633
      %v666 = vtanh.pop %v634
      %v667 = vtanh.pop %v635
      %v668 = vtanh.pop %v636
      %v669 = vtanh.pop %v637
      %v670 = vtanh.pop %v638
      %vm671 = vcmask 64512
      %672 = vst.msk [vmem:[%s199] sm:$0xff] %vm671, %v639
      %673 = vst.msk [vmem:[%s199 + $0x8] sm:$0xff] %vm671, %v640
      %674 = vst.msk [vmem:[%s199 + $0x10] sm:$0xff] %vm671, %v641
      %675 = vst.msk [vmem:[%s199 + $0x18] sm:$0xff] %vm671, %v642
      %676 = vst.msk [vmem:[%s199 + $0x20] sm:$0xff] %vm671, %v643
      %677 = vst.msk [vmem:[%s199 + $0x28] sm:$0xff] %vm671, %v644
      %678 = vst.msk [vmem:[%s199 + $0x30] sm:$0xff] %vm671, %v645
      %679 = vst.msk [vmem:[%s199 + $0x38] sm:$0xff] %vm671, %v646
      %680 = vst.msk [vmem:[%s199 + $0x40] sm:$0xff] %vm671, %v647
      %681 = vst.msk [vmem:[%s199 + $0x48] sm:$0xff] %vm671, %v648
      %682 = vst.msk [vmem:[%s199 + $0x50] sm:$0xff] %vm671, %v649
      %683 = vst.msk [vmem:[%s199 + $0x58] sm:$0xff] %vm671, %v650
      %684 = vst.msk [vmem:[%s199 + $0x60] sm:$0xff] %vm671, %v651
      %685 = vst.msk [vmem:[%s199 + $0x68] sm:$0xff] %vm671, %v652
      %686 = vst.msk [vmem:[%s199 + $0x70] sm:$0xff] %vm671, %v653
      %687 = vst.msk [vmem:[%s199 + $0x78] sm:$0xff] %vm671, %v654
      %688 = vst.msk [vmem:[%s199 + $0x80] sm:$0xff] %vm671, %v655
      %689 = vst.msk [vmem:[%s199 + $0x88] sm:$0xff] %vm671, %v656
      %690 = vst.msk [vmem:[%s199 + $0x90] sm:$0xff] %vm671, %v657
      %691 = vst.msk [vmem:[%s199 + $0x98] sm:$0xff] %vm671, %v658
      %692 = vst.msk [vmem:[%s199 + $0xa0] sm:$0xff] %vm671, %v659
      %693 = vst.msk [vmem:[%s199 + $0xa8] sm:$0xff] %vm671, %v660
      %694 = vst.msk [vmem:[%s199 + $0xb0] sm:$0xff] %vm671, %v661
      %695 = vst.msk [vmem:[%s199 + $0xb8] sm:$0xff] %vm671, %v662
      %696 = vst.msk [vmem:[%s199 + $0xc0] sm:$0xff] %vm671, %v663
      %697 = vst.msk [vmem:[%s199 + $0xc8] sm:$0xff] %vm671, %v664
      %698 = vst.msk [vmem:[%s199 + $0xd0] sm:$0xff] %vm671, %v665
      %699 = vst.msk [vmem:[%s199 + $0xd8] sm:$0xff] %vm671, %v666
      %700 = vst.msk [vmem:[%s199 + $0xe0] sm:$0xff] %vm671, %v667
      %701 = vst.msk [vmem:[%s199 + $0xe8] sm:$0xff] %vm671, %v668
      %702 = vst.msk [vmem:[%s199 + $0xf0] sm:$0xff] %vm671, %v669
      %703 = vst.msk [vmem:[%s199 + $0xf8] sm:$0xff] %vm671, %v670
      %s704 = smul.u32 32, %s15
      %p705 = scmp.lt.s32.totalorder %s704, 63
      %s706 = scalar_select %p705, %s704, 63
      %s707 = smul.addr %s706, 8
      %s708 = scalar_lea.vmem %s4, %s707
      // Predicated region
      $region37: #{res_transformer_forward.3} parent=35 // pred_check
        %p709 = pneg %p122
      $region38: #{res_transformer_forward.3} parent=35 // pred_check_branch
        %711 = sbr.rel (%p709) target = $region40
      $region39: #{res_transformer_forward.3} parent=35 // pred_region
        %s712 = smul.u32 32, %s15
      $region40: #{res_transformer_forward.3} parent=35 // pred_fallthru
        _
    $region36: #{res_transformer_forward.3} parent=5 // pred_fallthru
      _
    %p713 = scmp.le.s32.totalorder 2, %s10
    // Predicated region
    $region41: #{res_transformer_forward.3} parent=5 // pred_check
      %p714 = pneg %p713
    $region42: #{res_transformer_forward.3} parent=5 // pred_check_branch
      %716 = sbr.rel (%p714) target = $region44
    $region43: #{res_transformer_forward.3} parent=5 // pred_region
      %s717 = ssub.s32 %s10, 2
      // Predicated region
      $region45: #{res_transformer_forward.3} parent=43 // pred_check
        %p718 = pneg %p128
      $region46: #{res_transformer_forward.3} parent=43 // pred_check_branch
        %720 = sbr.rel (%p718) target = $region48
      $region47: #{res_transformer_forward.3} parent=43 // pred_region
        %s721 = smul.u32 32, %s16
        %p722 = scmp.lt.s32.totalorder %s721, 63
        %s723 = scalar_select %p722, %s721, 63
        %s724 = smul.addr %s723, 8
        %s725 = scalar_lea.vmem %s4, %s724
      $region48: #{res_transformer_forward.3} parent=43 // pred_fallthru
        _
    $region44: #{res_transformer_forward.3} parent=5 // pred_fallthru
      _
  $region6: #{res_transformer_forward.3} parent=0 // loop_footer
    %s14 = sadd.s32 1, %s10
  $region7: #{res_transformer_forward.3} parent=0 // loop_footer_branch
    %9 = sbr.rel target = $region3
  $region8: #{res_transformer_forward.3} parent=0 // loop_exit
    _

// kernel: res_transformer_forward.4
$region0: #{res_transformer_forward.4}
  #allocation0 [shape = 'u32[]', space=smem, size = 0x4, offset = 0x4, fixed_abs, tag = 'smem constant byte address 0x4 - core index']
  #allocation1 [shape = 'u32[144,128]{1,0:T(1,128)}', space=vmem, size = 0x12000, scoped, tag = 'internal scratch']
  %s0 = inlined_call_operand.vmem [shape: f32[128,72], index: 0, kind: input, shape index: {}]
  %s1 = inlined_call_operand.vmem [shape: f32[72,32], index: 1, kind: input, shape index: {}]
  %s2 = inlined_call_operand.vmem [shape: f32[1,32], index: 2, kind: input, shape index: {}]
  %s3 = inlined_call_operand.vmem [shape: f32[1,32], index: 3, kind: input, shape index: {}]
  %s4 = inlined_call_operand.vmem [shape: f32[128,32], index: 4, kind: output, shape index: {}]
  %s5 = sld [smem:[#allocation0]]
  $region26: #{res_transformer_forward.4} parent=0
    _
  %s7 = ssub.s32 1, %s5
  %s8 = scalar_select 0, %s7, %s5
  // Predicated region
  $region2: #{res_transformer_forward.4} parent=0 // pred_check
    _
  $region3: #{res_transformer_forward.4} parent=0 // pred_check_branch
    %10 = sbr.rel (0) target = $region5
  $region4: #{res_transformer_forward.4} parent=0 // pred_region
    _
  $region5: #{res_transformer_forward.4} parent=0 // pred_fallthru
    _
  // Predicated region
  $region6: #{res_transformer_forward.4} parent=0 // pred_check
    _
  $region7: #{res_transformer_forward.4} parent=0 // pred_check_branch
    %12 = sbr.rel (0) target = $region9
  $region8: #{res_transformer_forward.4} parent=0 // pred_region
    _
  $region9: #{res_transformer_forward.4} parent=0 // pred_fallthru
    _
  // Predicated region
  $region10: #{res_transformer_forward.4} parent=0 // pred_check
    _
  $region11: #{res_transformer_forward.4} parent=0 // pred_check_branch
    %14 = sbr.rel (0) target = $region13
  $region12: #{res_transformer_forward.4} parent=0 // pred_region
    _
  $region13: #{res_transformer_forward.4} parent=0 // pred_fallthru
    _
  // Predicated region
  $region14: #{res_transformer_forward.4} parent=0 // pred_check
    _
  $region15: #{res_transformer_forward.4} parent=0 // pred_check_branch
    %16 = sbr.rel (0) target = $region17
  $region16: #{res_transformer_forward.4} parent=0 // pred_region
    _
  $region17: #{res_transformer_forward.4} parent=0 // pred_fallthru
    _
  %v17 = vld [vmem:[%s0] sm:$0xff]
  %v18 = vld [vmem:[%s0 + $0x8] sm:$0xff]
  %v19 = vld [vmem:[%s0 + $0x10] sm:$0xff]
  %v20 = vld [vmem:[%s0 + $0x18] sm:$0xff]
  %v21 = vld [vmem:[%s0 + $0x20] sm:$0xff]
  %v22 = vld [vmem:[%s0 + $0x28] sm:$0xff]
  %v23 = vld [vmem:[%s0 + $0x30] sm:$0xff]
  %v24 = vld [vmem:[%s0 + $0x38] sm:$0xff]
  %v25 = vld [vmem:[%s0 + $0x40] sm:$0xff]
  %v26 = vld [vmem:[%s0 + $0x48] sm:$0xff]
  %v27 = vld [vmem:[%s0 + $0x50] sm:$0xff]
  %v28 = vld [vmem:[%s0 + $0x58] sm:$0xff]
  %v29 = vld [vmem:[%s0 + $0x60] sm:$0xff]
  %v30 = vld [vmem:[%s0 + $0x68] sm:$0xff]
  %v31 = vld [vmem:[%s0 + $0x70] sm:$0xff]
  %v32 = vld [vmem:[%s0 + $0x78] sm:$0xff]
  %v33 = vld [vmem:[%s1] sm:$0xff]
  %v34 = vld [vmem:[%s1 + $0x8] sm:$0xff]
  %v35 = vld [vmem:[%s1 + $0x10] sm:$0xff]
  %v36 = vld [vmem:[%s1 + $0x18] sm:$0xff]
  %v37 = vld [vmem:[%s1 + $0x20] sm:$0xff]
  %v38 = vld [vmem:[%s1 + $0x28] sm:$0xff]
  %v39 = vld [vmem:[%s1 + $0x30] sm:$0xff]
  %v40 = vld [vmem:[%s1 + $0x38] sm:$0xff]
  %v41 = vld [vmem:[%s1 + $0x40] sm:$0xff]
  %vm42 = vcmask 588800
  %v44 = vsel %vm42, %v17, 0
  %v47 = vsel %vm42, %v18, 0
  %v50 = vsel %vm42, %v19, 0
  %v53 = vsel %vm42, %v20, 0
  %v56 = vsel %vm42, %v21, 0
  %v59 = vsel %vm42, %v22, 0
  %v62 = vsel %vm42, %v23, 0
  %v65 = vsel %vm42, %v24, 0
  %v68 = vsel %vm42, %v25, 0
  %v71 = vsel %vm42, %v26, 0
  %v74 = vsel %vm42, %v27, 0
  %v77 = vsel %vm42, %v28, 0
  %v80 = vsel %vm42, %v29, 0
  %v83 = vsel %vm42, %v30, 0
  %v86 = vsel %vm42, %v31, 0
  %v89 = vsel %vm42, %v32, 0
  %91 = vmatprep.subr.mxu0 0.0
  %92 = vmatpush1.msra.mxu0 %v33
  %93 = vmatprep.subr.mxu0 0.0
  %94 = vmatpush1.msra.mxu0 %v34
  %95 = vmatprep.subr.mxu0 0.0
  %96 = vmatpush1.msra.mxu0 %v35
  %97 = vmatprep.subr.mxu0 0.0
  %98 = vmatpush1.msra.mxu0 %v36
  %99 = vmatprep.subr.mxu0 0.0
  %100 = vmatpush1.msra.mxu0 %v37
  %101 = vmatprep.subr.mxu0 0.0
  %102 = vmatpush1.msra.mxu0 %v38
  %103 = vmatprep.subr.mxu0 0.0
  %104 = vmatpush1.msra.mxu0 %v39
  %105 = vmatprep.subr.mxu0 0.0
  %106 = vmatpush1.msra.mxu0 %v40
  %107 = vmatprep.subr.mxu0 0.0
  %108 = vmatpush1.msra.mxu0 %v41
  %109 = vmatprep.subr.mxu0 0.0
  %110 = vmatpush1.msra.mxu0 0.0
  %111 = vmatprep.subr.mxu0 0.0
  %112 = vmatpush1.msra.mxu0 0.0
  %113 = vmatprep.subr.mxu0 0.0
  %114 = vmatpush1.msra.mxu0 0.0
  %115 = vmatprep.subr.mxu0 0.0
  %116 = vmatpush1.msra.mxu0 0.0
  %117 = vmatprep.subr.mxu0 0.0
  %118 = vmatpush1.msra.mxu0 0.0
  %119 = vmatprep.subr.mxu0 0.0
  %120 = vmatpush1.msra.mxu0 0.0
  %121 = vmatprep.subr.mxu0 0.0
  %122 = vmatpush1.msra.mxu0 0.0
  %123 = vmatprep.subr.mxu0 0.0
  %124 = vmatpush1.msra.mxu0 0.0
  %125 = vmatprep.subr.mxu0 0.0
  %126 = vmatpush1.msra.mxu0 0.0
  %127 = vmatprep.subr.mxu0 0.0
  %128 = vmatpush1.msra.mxu0 0.0
  %129 = vmatprep.subr.mxu0 0.0
  %130 = vmatpush1.msra.mxu0 0.0
  %131 = vmatprep.subr.mxu0 0.0
  %132 = vmatpush1.msra.mxu0 0.0
  %133 = vmatprep.subr.mxu0 0.0
  %134 = vmatpush1.msra.mxu0 0.0
  %135 = vmatprep.subr.mxu0 0.0
  %136 = vmatpush1.msra.mxu0 0.0
  %137 = vmatprep.subr.mxu0 0.0
  %138 = vmatpush1.msra.mxu0 0.0
  %139 = vmatprep.subr.mxu0 0.0
  %140 = vmatpush1.msra.mxu0 0.0
  %141 = vmatprep.subr.mxu0 0.0
  %142 = vmatpush1.msra.mxu0 0.0
  %143 = vmatprep.subr.mxu0 0.0
  %144 = vmatpush1.msra.mxu0 0.0
  %145 = vmatprep.subr.mxu0 0.0
  %146 = vmatpush1.msra.mxu0 0.0
  %147 = vmatprep.subr.mxu0 0.0
  %148 = vmatpush1.msra.mxu0 0.0
  %149 = vmatprep.subr.mxu0 0.0
  %150 = vmatpush1.msra.mxu0 0.0
  %151 = vmatprep.subr.mxu0 0.0
  %152 = vmatpush1.msra.mxu0 0.0
  %153 = vmatprep.subr.mxu0 0.0
  %154 = vmatpush1.msra.mxu0 0.0
  %155 = vmatprep.mubr.f32.mxu0 0.0
  %156 = vmatmul.mubr.f32.gmra.mrb[0].mxu0 %v44
  %v157 = vpop.f32.mrb[0].mxu0
  %v158 = vadd.f32 0.0, %v157
  %v159 = vpop.f32.mrb[0].mxu0
  %160 = vmatprep.mubr.f32.mxu0 0.0
  %161 = vmatmul.mubr.f32.gmra.mrb[0].mxu0 %v47
  %v162 = vpop.f32.mrb[0].mxu0
  %v163 = vadd.f32 0.0, %v162
  %v164 = vpop.f32.mrb[0].mxu0
  %165 = vmatprep.mubr.f32.mxu0 0.0
  %166 = vmatmul.mubr.f32.gmra.mrb[0].mxu0 %v50
  %v167 = vpop.f32.mrb[0].mxu0
  %v168 = vadd.f32 0.0, %v167
  %v169 = vpop.f32.mrb[0].mxu0
  %170 = vmatprep.mubr.f32.mxu0 0.0
  %171 = vmatmul.mubr.f32.gmra.mrb[0].mxu0 %v53
  %v172 = vpop.f32.mrb[0].mxu0
  %v173 = vadd.f32 0.0, %v172
  %v174 = vpop.f32.mrb[0].mxu0
  %175 = vmatprep.mubr.f32.mxu0 0.0
  %176 = vmatmul.mubr.f32.gmra.mrb[0].mxu0 %v56
  %v177 = vpop.f32.mrb[0].mxu0
  %v178 = vadd.f32 0.0, %v177
  %v179 = vpop.f32.mrb[0].mxu0
  %180 = vmatprep.mubr.f32.mxu0 0.0
  %181 = vmatmul.mubr.f32.gmra.mrb[0].mxu0 %v59
  %v182 = vpop.f32.mrb[0].mxu0
  %v183 = vadd.f32 0.0, %v182
  %v184 = vpop.f32.mrb[0].mxu0
  %185 = vmatprep.mubr.f32.mxu0 0.0
  %186 = vmatmul.mubr.f32.gmra.mrb[0].mxu0 %v62
  %v187 = vpop.f32.mrb[0].mxu0
  %v188 = vadd.f32 0.0, %v187
  %v189 = vpop.f32.mrb[0].mxu0
  %190 = vmatprep.mubr.f32.mxu0 0.0
  %191 = vmatmul.mubr.f32.gmra.mrb[0].mxu0 %v65
  %v192 = vpop.f32.mrb[0].mxu0
  %v193 = vadd.f32 0.0, %v192
  %v194 = vpop.f32.mrb[0].mxu0
  %195 = vmatprep.mubr.f32.mxu0 0.0
  %196 = vmatmul.mubr.f32.gmra.mrb[0].mxu0 %v68
  %v197 = vpop.f32.mrb[0].mxu0
  %v198 = vadd.f32 0.0, %v197
  %v199 = vpop.f32.mrb[0].mxu0
  %200 = vmatprep.mubr.f32.mxu0 0.0
  %201 = vmatmul.mubr.f32.gmra.mrb[0].mxu0 %v71
  %v202 = vpop.f32.mrb[0].mxu0
  %v203 = vadd.f32 0.0, %v202
  %v204 = vpop.f32.mrb[0].mxu0
  %205 = vmatprep.mubr.f32.mxu0 0.0
  %206 = vmatmul.mubr.f32.gmra.mrb[0].mxu0 %v74
  %v207 = vpop.f32.mrb[0].mxu0
  %v208 = vadd.f32 0.0, %v207
  %v209 = vpop.f32.mrb[0].mxu0
  %210 = vmatprep.mubr.f32.mxu0 0.0
  %211 = vmatmul.mubr.f32.gmra.mrb[0].mxu0 %v77
  %v212 = vpop.f32.mrb[0].mxu0
  %v213 = vadd.f32 0.0, %v212
  %v214 = vpop.f32.mrb[0].mxu0
  %215 = vmatprep.mubr.f32.mxu0 0.0
  %216 = vmatmul.mubr.f32.gmra.mrb[0].mxu0 %v80
  %v217 = vpop.f32.mrb[0].mxu0
  %v218 = vadd.f32 0.0, %v217
  %v219 = vpop.f32.mrb[0].mxu0
  %220 = vmatprep.mubr.f32.mxu0 0.0
  %221 = vmatmul.mubr.f32.gmra.mrb[0].mxu0 %v83
  %v222 = vpop.f32.mrb[0].mxu0
  %v223 = vadd.f32 0.0, %v222
  %v224 = vpop.f32.mrb[0].mxu0
  %225 = vmatprep.mubr.f32.mxu0 0.0
  %226 = vmatmul.mubr.f32.gmra.mrb[0].mxu0 %v86
  %v227 = vpop.f32.mrb[0].mxu0
  %v228 = vadd.f32 0.0, %v227
  %v229 = vpop.f32.mrb[0].mxu0
  %230 = vmatprep.mubr.f32.mxu0 0.0
  %231 = vmatmul.mubr.f32.gmra.mrb[0].mxu0 %v89
  %v232 = vpop.f32.mrb[0].mxu0
  %v233 = vadd.f32 0.0, %v232
  %v234 = vpop.f32.mrb[0].mxu0
  %235 = vdwg.mxu0
  %v236 = vld [vmem:[%s2] sm:$0x1]
  %v238 = vlaneseq
  %v239 = vshrl.u32 %v238, 7
  %v240 = vsub.s32 0, %v239
  %v241 = vrot.slane %v236, %v240
  %v243 = vmul.f32 %v158, %v241
  %v244 = vmul.f32 %v163, %v241
  %v245 = vmul.f32 %v168, %v241
  %v246 = vmul.f32 %v173, %v241
  %v247 = vmul.f32 %v178, %v241
  %v248 = vmul.f32 %v183, %v241
  %v249 = vmul.f32 %v188, %v241
  %v250 = vmul.f32 %v193, %v241
  %v251 = vmul.f32 %v198, %v241
  %v252 = vmul.f32 %v203, %v241
  %v253 = vmul.f32 %v208, %v241
  %v254 = vmul.f32 %v213, %v241
  %v255 = vmul.f32 %v218, %v241
  %v256 = vmul.f32 %v223, %v241
  %v257 = vmul.f32 %v228, %v241
  %v258 = vmul.f32 %v233, %v241
  %v259 = vld [vmem:[%s3] sm:$0x1]
  %v261 = vlaneseq
  %v262 = vshrl.u32 %v261, 7
  %v263 = vsub.s32 0, %v262
  %v264 = vrot.slane %v259, %v263
  %v266 = vadd.f32 %v243, %v264
  %v267 = vadd.f32 %v244, %v264
  %v268 = vadd.f32 %v245, %v264
  %v269 = vadd.f32 %v246, %v264
  %v270 = vadd.f32 %v247, %v264
  %v271 = vadd.f32 %v248, %v264
  %v272 = vadd.f32 %v249, %v264
  %v273 = vadd.f32 %v250, %v264
  %v274 = vadd.f32 %v251, %v264
  %v275 = vadd.f32 %v252, %v264
  %v276 = vadd.f32 %v253, %v264
  %v277 = vadd.f32 %v254, %v264
  %v278 = vadd.f32 %v255, %v264
  %v279 = vadd.f32 %v256, %v264
  %v280 = vadd.f32 %v257, %v264
  %v281 = vadd.f32 %v258, %v264
  %v282 = vtanh.pop %v266
  %v283 = vtanh.pop %v267
  %v284 = vtanh.pop %v268
  %v285 = vtanh.pop %v269
  %v286 = vtanh.pop %v270
  %v287 = vtanh.pop %v271
  %v288 = vtanh.pop %v272
  %v289 = vtanh.pop %v273
  %v290 = vtanh.pop %v274
  %v291 = vtanh.pop %v275
  %v292 = vtanh.pop %v276
  %v293 = vtanh.pop %v277
  %v294 = vtanh.pop %v278
  %v295 = vtanh.pop %v279
  %v296 = vtanh.pop %v280
  %v297 = vtanh.pop %v281
  %vm298 = vcmask 261120
  %299 = vst.msk [vmem:[%s4] sm:$0xff] %vm298, %v282
  %300 = vst.msk [vmem:[%s4 + $0x8] sm:$0xff] %vm298, %v283
  %301 = vst.msk [vmem:[%s4 + $0x10] sm:$0xff] %vm298, %v284
  %302 = vst.msk [vmem:[%s4 + $0x18] sm:$0xff] %vm298, %v285
  %303 = vst.msk [vmem:[%s4 + $0x20] sm:$0xff] %vm298, %v286
  %304 = vst.msk [vmem:[%s4 + $0x28] sm:$0xff] %vm298, %v287
  %305 = vst.msk [vmem:[%s4 + $0x30] sm:$0xff] %vm298, %v288
  %306 = vst.msk [vmem:[%s4 + $0x38] sm:$0xff] %vm298, %v289
  %307 = vst.msk [vmem:[%s4 + $0x40] sm:$0xff] %vm298, %v290
  %308 = vst.msk [vmem:[%s4 + $0x48] sm:$0xff] %vm298, %v291
  %309 = vst.msk [vmem:[%s4 + $0x50] sm:$0xff] %vm298, %v292
  %310 = vst.msk [vmem:[%s4 + $0x58] sm:$0xff] %vm298, %v293
  %311 = vst.msk [vmem:[%s4 + $0x60] sm:$0xff] %vm298, %v294
  %312 = vst.msk [vmem:[%s4 + $0x68] sm:$0xff] %vm298, %v295
  %313 = vst.msk [vmem:[%s4 + $0x70] sm:$0xff] %vm298, %v296
  %314 = vst.msk [vmem:[%s4 + $0x78] sm:$0xff] %vm298, %v297
  // Predicated region
  $region18: #{res_transformer_forward.4} parent=0 // pred_check
    _
  $region19: #{res_transformer_forward.4} parent=0 // pred_check_branch
    %316 = sbr.rel (0) target = $region21
  $region20: #{res_transformer_forward.4} parent=0 // pred_region
    _
  $region21: #{res_transformer_forward.4} parent=0 // pred_fallthru
    _
  // Predicated region
  $region22: #{res_transformer_forward.4} parent=0 // pred_check
    _
  $region23: #{res_transformer_forward.4} parent=0 // pred_check_branch
    %318 = sbr.rel (0) target = $region25
  $region24: #{res_transformer_forward.4} parent=0 // pred_region
    _
  $region25: #{res_transformer_forward.4} parent=0 // pred_fallthru
    _

// kernel: res_transformer_forward.5
$region0: #{res_transformer_forward.5}
  #allocation0 [shape = 'u32[]', space=smem, size = 0x4, offset = 0x4, fixed_abs, tag = 'smem constant byte address 0x4 - core index']
  #allocation1 [shape = 'u32[144,128]{1,0:T(1,128)}', space=vmem, size = 0x12000, scoped, tag = 'internal scratch']
  #allocation2 [shape = 'f32[2,16,32]{2,1,0:T(8,128)}', space=vmem, size = 0x4000, scoped, tag = 'scratch operand']
  %s0 = inlined_call_operand.vmem [shape: f32[2,16,32], index: 0, kind: input, shape index: {}]
  %s1 = inlined_call_operand.vmem [shape: f32[16,32], index: 1, kind: input, shape index: {}]
  %s2 = inlined_call_operand.vmem [shape: f32[32,96], index: 2, kind: input, shape index: {}]
  %s3 = inlined_call_operand.vmem [shape: f32[1,96], index: 3, kind: input, shape index: {}]
  %s4 = inlined_call_operand.vmem [shape: f32[32,32], index: 4, kind: input, shape index: {}]
  %s5 = inlined_call_operand.vmem [shape: f32[1,32], index: 5, kind: input, shape index: {}]
  %s6 = inlined_call_operand.vmem [shape: f32[1,32], index: 6, kind: input, shape index: {}]
  %s7 = inlined_call_operand.vmem [shape: f32[1,32], index: 7, kind: input, shape index: {}]
  %s8 = inlined_call_operand.vmem [shape: f32[32,64], index: 8, kind: input, shape index: {}]
  %s9 = inlined_call_operand.vmem [shape: f32[1,64], index: 9, kind: input, shape index: {}]
  %s10 = inlined_call_operand.vmem [shape: f32[64,32], index: 10, kind: input, shape index: {}]
  %s11 = inlined_call_operand.vmem [shape: f32[1,32], index: 11, kind: input, shape index: {}]
  %s12 = inlined_call_operand.vmem [shape: f32[1,32], index: 12, kind: input, shape index: {}]
  %s13 = inlined_call_operand.vmem [shape: f32[1,32], index: 13, kind: input, shape index: {}]
  %s14 = inlined_call_operand.hbm [shape: f32[2,16,32], index: 14, kind: output, shape index: {0}]
  %s15 = inlined_call_operand.hbm [shape: f32[2,16,16], index: 15, kind: output, shape index: {1}]
  %16 = xla_tuple %s14, %s15
  %s17 = sld [smem:[#allocation0]]
  $region105: #{res_transformer_forward.5} parent=0
    _
  %s19 = ssub.s32 1, %s17
  %s20 = scalar_select 0, %s19, %s17
  $region1: #{res_transformer_forward.5} parent=0
    #allocation3 [shape = 'u8[16384]{0}', space=vmem, size = 0x4000, scoped, tag = 'output window, operand 0, single buffered']
    #allocation4 [shape = 's32[2]{0}', space=sflag, size = 0x8, scoped, tag = 'scoped memory for res_transformer_forward.5']
    #allocation5 [shape = 'u8[16384]{0}', space=vmem, size = 0x4000, scoped, tag = 'output window, operand 1, single buffered']
    #allocation6 [shape = 's32[1]{0}', space=sflag, size = 0x4, scoped, tag = 'scoped memory for res_transformer_forward.5']
    %21 = vsyncpa [#allocation4], 0
    %22 = vsyncpa [#allocation6], 0
    loop: start=0, step=1, limit=5
    $region2: #{res_transformer_forward.5} parent=1 // loop_pre_header
      _
    $region3: #{res_transformer_forward.5} parent=1 // loop_header
      %s24 = sphi 0, %s28
      %p25 = scmp.ge.s32.totalorder %s24, 5
      %s32 = sphi 0, %s32
      %s34 = sphi 0, %s32
      %s35 = sphi 0, %s34
      %s49 = sphi 0, %s35
      %s53 = sphi 0, %s53
      %s55 = sphi 0, %s53
      %s56 = sphi 0, %s55
      %s70 = sphi 0, %s56
      %s74 = sphi 0, %s74
      %s76 = sphi 0, %s74
      %s77 = sphi 0, %s76
      %s91 = sphi 0, %s77
      %s95 = sphi 0, %s95
      %s97 = sphi 0, %s95
      %s98 = sphi 0, %s97
      %s112 = sphi 0, %s98
      %s116 = sphi 0, %s116
      %s118 = sphi 0, %s116
      %s119 = sphi 0, %s118
      %s133 = sphi 0, %s119
      %s137 = sphi 0, %s137
      %s139 = sphi 0, %s137
      %s140 = sphi 0, %s139
      %s154 = sphi 0, %s140
      %s158 = sphi 0, %s158
      %s160 = sphi 0, %s158
      %s161 = sphi 0, %s160
      %s175 = sphi 0, %s161
      %s179 = sphi 0, %s179
      %s181 = sphi 0, %s179
      %s182 = sphi 0, %s181
      %s196 = sphi 0, %s182
      %s200 = sphi 0, %s200
      %s202 = sphi 0, %s200
      %s203 = sphi 0, %s202
      %s217 = sphi 0, %s203
      %s221 = sphi 0, %s221
      %s223 = sphi 0, %s221
      %s224 = sphi 0, %s223
      %s238 = sphi 0, %s224
      %s242 = sphi 0, %s242
      %s244 = sphi 0, %s242
      %s245 = sphi 0, %s244
      %s259 = sphi 0, %s245
      %s263 = sphi 0, %s263
      %s265 = sphi 0, %s263
      %s266 = sphi 0, %s265
      %s280 = sphi 0, %s266
      %s284 = sphi 0, %s284
      %s286 = sphi 0, %s284
      %s287 = sphi 0, %s286
      %s301 = sphi 0, %s287
      %s305 = sphi 0, %s305
      %s307 = sphi 0, %s305
      %s308 = sphi 0, %s307
      %s322 = sphi 0, %s308
      %s326 = sphi 0, %s326
      %s328 = sphi 0, %s326
      %s329 = sphi 0, %s328
      %s343 = sphi 0, %s329
      %s347 = sphi 0, %s347
      %s349 = sphi 0, %s347
      %s350 = sphi 0, %s349
      %s364 = sphi 0, %s350
    $region4: #{res_transformer_forward.5} parent=1 // loop_header_branch
      %27 = sbr.rel (%p25) target = $region8
    $region5: #{res_transformer_forward.5} parent=1 // loop_body
      %s29 = ssub.s32 %s24, 1
      %s30 = ssub.s32 %s24, 2
      %s31 = sadd.s32 %s24, 1
      %s33 = sadd.s32 %s32, 1
      %p36 = scmp.eq.s32.totalorder %s24, 2
      %p37 = scmp.ne.s32.totalorder %s32, %s34
      %p38 = scmp.eq.s32.totalorder %s24, 0
      %p39 = por %p37, %p38
      %p40 = scmp.ne.s32.totalorder %s32, %s34
      %p41 = scmp.eq.s32.totalorder %s29, 2
      %p42 = por %p40, %p41
      %p43 = scmp.ne.s32.totalorder %s34, %s35
      %p44 = scmp.eq.s32.totalorder %s29, 0
      %p45 = por %p43, %p44
      %p46 = scmp.ne.s32.totalorder %s34, %s35
      %p47 = scmp.eq.s32.totalorder %s30, 2
      %p48 = por %p46, %p47
      %p50 = scmp.ne.s32.totalorder %s35, %s49
      %p51 = scmp.eq.s32.totalorder %s30, 0
      %p52 = por %p50, %p51
      %s54 = sadd.s32 %s53, 1
      %p57 = scmp.eq.s32.totalorder %s24, 2
      %p58 = scmp.ne.s32.totalorder %s53, %s55
      %p59 = scmp.eq.s32.totalorder %s24, 0
      %p60 = por %p58, %p59
      %p61 = scmp.ne.s32.totalorder %s53, %s55
      %p62 = scmp.eq.s32.totalorder %s29, 2
      %p63 = por %p61, %p62
      %p64 = scmp.ne.s32.totalorder %s55, %s56
      %p65 = scmp.eq.s32.totalorder %s29, 0
      %p66 = por %p64, %p65
      %p67 = scmp.ne.s32.totalorder %s55, %s56
      %p68 = scmp.eq.s32.totalorder %s30, 2
      %p69 = por %p67, %p68
      %p71 = scmp.ne.s32.totalorder %s56, %s70
      %p72 = scmp.eq.s32.totalorder %s30, 0
      %p73 = por %p71, %p72
      %s75 = sadd.s32 %s74, 1
      %p78 = scmp.eq.s32.totalorder %s24, 2
      %p79 = scmp.ne.s32.totalorder %s74, %s76
      %p80 = scmp.eq.s32.totalorder %s24, 0
      %p81 = por %p79, %p80
      %p82 = scmp.ne.s32.totalorder %s74, %s76
      %p83 = scmp.eq.s32.totalorder %s29, 2
      %p84 = por %p82, %p83
      %p85 = scmp.ne.s32.totalorder %s76, %s77
      %p86 = scmp.eq.s32.totalorder %s29, 0
      %p87 = por %p85, %p86
      %p88 = scmp.ne.s32.totalorder %s76, %s77
      %p89 = scmp.eq.s32.totalorder %s30, 2
      %p90 = por %p88, %p89
      %p92 = scmp.ne.s32.totalorder %s77, %s91
      %p93 = scmp.eq.s32.totalorder %s30, 0
      %p94 = por %p92, %p93
      %s96 = sadd.s32 %s95, 1
      %p99 = scmp.eq.s32.totalorder %s24, 2
      %p100 = scmp.ne.s32.totalorder %s95, %s97
      %p101 = scmp.eq.s32.totalorder %s24, 0
      %p102 = por %p100, %p101
      %p103 = scmp.ne.s32.totalorder %s95, %s97
      %p104 = scmp.eq.s32.totalorder %s29, 2
      %p105 = por %p103, %p104
      %p106 = scmp.ne.s32.totalorder %s97, %s98
      %p107 = scmp.eq.s32.totalorder %s29, 0
      %p108 = por %p106, %p107
      %p109 = scmp.ne.s32.totalorder %s97, %s98
      %p110 = scmp.eq.s32.totalorder %s30, 2
      %p111 = por %p109, %p110
      %p113 = scmp.ne.s32.totalorder %s98, %s112
      %p114 = scmp.eq.s32.totalorder %s30, 0
      %p115 = por %p113, %p114
      %s117 = sadd.s32 %s116, 1
      %p120 = scmp.eq.s32.totalorder %s24, 2
      %p121 = scmp.ne.s32.totalorder %s116, %s118
      %p122 = scmp.eq.s32.totalorder %s24, 0
      %p123 = por %p121, %p122
      %p124 = scmp.ne.s32.totalorder %s116, %s118
      %p125 = scmp.eq.s32.totalorder %s29, 2
      %p126 = por %p124, %p125
      %p127 = scmp.ne.s32.totalorder %s118, %s119
      %p128 = scmp.eq.s32.totalorder %s29, 0
      %p129 = por %p127, %p128
      %p130 = scmp.ne.s32.totalorder %s118, %s119
      %p131 = scmp.eq.s32.totalorder %s30, 2
      %p132 = por %p130, %p131
      %p134 = scmp.ne.s32.totalorder %s119, %s133
      %p135 = scmp.eq.s32.totalorder %s30, 0
      %p136 = por %p134, %p135
      %s138 = sadd.s32 %s137, 1
      %p141 = scmp.eq.s32.totalorder %s24, 2
      %p142 = scmp.ne.s32.totalorder %s137, %s139
      %p143 = scmp.eq.s32.totalorder %s24, 0
      %p144 = por %p142, %p143
      %p145 = scmp.ne.s32.totalorder %s137, %s139
      %p146 = scmp.eq.s32.totalorder %s29, 2
      %p147 = por %p145, %p146
      %p148 = scmp.ne.s32.totalorder %s139, %s140
      %p149 = scmp.eq.s32.totalorder %s29, 0
      %p150 = por %p148, %p149
      %p151 = scmp.ne.s32.totalorder %s139, %s140
      %p152 = scmp.eq.s32.totalorder %s30, 2
      %p153 = por %p151, %p152
      %p155 = scmp.ne.s32.totalorder %s140, %s154
      %p156 = scmp.eq.s32.totalorder %s30, 0
      %p157 = por %p155, %p156
      %s159 = sadd.s32 %s158, 1
      %p162 = scmp.eq.s32.totalorder %s24, 2
      %p163 = scmp.ne.s32.totalorder %s158, %s160
      %p164 = scmp.eq.s32.totalorder %s24, 0
      %p165 = por %p163, %p164
      %p166 = scmp.ne.s32.totalorder %s158, %s160
      %p167 = scmp.eq.s32.totalorder %s29, 2
      %p168 = por %p166, %p167
      %p169 = scmp.ne.s32.totalorder %s160, %s161
      %p170 = scmp.eq.s32.totalorder %s29, 0
      %p171 = por %p169, %p170
      %p172 = scmp.ne.s32.totalorder %s160, %s161
      %p173 = scmp.eq.s32.totalorder %s30, 2
      %p174 = por %p172, %p173
      %p176 = scmp.ne.s32.totalorder %s161, %s175
      %p177 = scmp.eq.s32.totalorder %s30, 0
      %p178 = por %p176, %p177
      %s180 = sadd.s32 %s179, 1
      %p183 = scmp.eq.s32.totalorder %s24, 2
      %p184 = scmp.ne.s32.totalorder %s179, %s181
      %p185 = scmp.eq.s32.totalorder %s24, 0
      %p186 = por %p184, %p185
      %p187 = scmp.ne.s32.totalorder %s179, %s181
      %p188 = scmp.eq.s32.totalorder %s29, 2
      %p189 = por %p187, %p188
      %p190 = scmp.ne.s32.totalorder %s181, %s182
      %p191 = scmp.eq.s32.totalorder %s29, 0
      %p192 = por %p190, %p191
      %p193 = scmp.ne.s32.totalorder %s181, %s182
      %p194 = scmp.eq.s32.totalorder %s30, 2
      %p195 = por %p193, %p194
      %p197 = scmp.ne.s32.totalorder %s182, %s196
      %p198 = scmp.eq.s32.totalorder %s30, 0
      %p199 = por %p197, %p198
      %s201 = sadd.s32 %s200, 1
      %p204 = scmp.eq.s32.totalorder %s24, 2
      %p205 = scmp.ne.s32.totalorder %s200, %s202
      %p206 = scmp.eq.s32.totalorder %s24, 0
      %p207 = por %p205, %p206
      %p208 = scmp.ne.s32.totalorder %s200, %s202
      %p209 = scmp.eq.s32.totalorder %s29, 2
      %p210 = por %p208, %p209
      %p211 = scmp.ne.s32.totalorder %s202, %s203
      %p212 = scmp.eq.s32.totalorder %s29, 0
      %p213 = por %p211, %p212
      %p214 = scmp.ne.s32.totalorder %s202, %s203
      %p215 = scmp.eq.s32.totalorder %s30, 2
      %p216 = por %p214, %p215
      %p218 = scmp.ne.s32.totalorder %s203, %s217
      %p219 = scmp.eq.s32.totalorder %s30, 0
      %p220 = por %p218, %p219
      %s222 = sadd.s32 %s221, 1
      %p225 = scmp.eq.s32.totalorder %s24, 2
      %p226 = scmp.ne.s32.totalorder %s221, %s223
      %p227 = scmp.eq.s32.totalorder %s24, 0
      %p228 = por %p226, %p227
      %p229 = scmp.ne.s32.totalorder %s221, %s223
      %p230 = scmp.eq.s32.totalorder %s29, 2
      %p231 = por %p229, %p230
      %p232 = scmp.ne.s32.totalorder %s223, %s224
      %p233 = scmp.eq.s32.totalorder %s29, 0
      %p234 = por %p232, %p233
      %p235 = scmp.ne.s32.totalorder %s223, %s224
      %p236 = scmp.eq.s32.totalorder %s30, 2
      %p237 = por %p235, %p236
      %p239 = scmp.ne.s32.totalorder %s224, %s238
      %p240 = scmp.eq.s32.totalorder %s30, 0
      %p241 = por %p239, %p240
      %s243 = sadd.s32 %s242, 1
      %p246 = scmp.eq.s32.totalorder %s24, 2
      %p247 = scmp.ne.s32.totalorder %s242, %s244
      %p248 = scmp.eq.s32.totalorder %s24, 0
      %p249 = por %p247, %p248
      %p250 = scmp.ne.s32.totalorder %s242, %s244
      %p251 = scmp.eq.s32.totalorder %s29, 2
      %p252 = por %p250, %p251
      %p253 = scmp.ne.s32.totalorder %s244, %s245
      %p254 = scmp.eq.s32.totalorder %s29, 0
      %p255 = por %p253, %p254
      %p256 = scmp.ne.s32.totalorder %s244, %s245
      %p257 = scmp.eq.s32.totalorder %s30, 2
      %p258 = por %p256, %p257
      %p260 = scmp.ne.s32.totalorder %s245, %s259
      %p261 = scmp.eq.s32.totalorder %s30, 0
      %p262 = por %p260, %p261
      %s264 = sadd.s32 %s263, 1
      %p267 = scmp.eq.s32.totalorder %s24, 2
      %p268 = scmp.ne.s32.totalorder %s263, %s265
      %p269 = scmp.eq.s32.totalorder %s24, 0
      %p270 = por %p268, %p269
      %p271 = scmp.ne.s32.totalorder %s263, %s265
      %p272 = scmp.eq.s32.totalorder %s29, 2
      %p273 = por %p271, %p272
      %p274 = scmp.ne.s32.totalorder %s265, %s266
      %p275 = scmp.eq.s32.totalorder %s29, 0
      %p276 = por %p274, %p275
      %p277 = scmp.ne.s32.totalorder %s265, %s266
      %p278 = scmp.eq.s32.totalorder %s30, 2
      %p279 = por %p277, %p278
      %p281 = scmp.ne.s32.totalorder %s266, %s280
      %p282 = scmp.eq.s32.totalorder %s30, 0
      %p283 = por %p281, %p282
      %s285 = sadd.s32 %s284, 1
      %p288 = scmp.eq.s32.totalorder %s24, 2
      %p289 = scmp.ne.s32.totalorder %s284, %s286
      %p290 = scmp.eq.s32.totalorder %s24, 0
      %p291 = por %p289, %p290
      %p292 = scmp.ne.s32.totalorder %s284, %s286
      %p293 = scmp.eq.s32.totalorder %s29, 2
      %p294 = por %p292, %p293
      %p295 = scmp.ne.s32.totalorder %s286, %s287
      %p296 = scmp.eq.s32.totalorder %s29, 0
      %p297 = por %p295, %p296
      %p298 = scmp.ne.s32.totalorder %s286, %s287
      %p299 = scmp.eq.s32.totalorder %s30, 2
      %p300 = por %p298, %p299
      %p302 = scmp.ne.s32.totalorder %s287, %s301
      %p303 = scmp.eq.s32.totalorder %s30, 0
      %p304 = por %p302, %p303
      %s306 = sadd.s32 %s305, 1
      %p309 = scmp.eq.s32.totalorder %s24, 2
      %p310 = scmp.ne.s32.totalorder %s305, %s307
      %p311 = scmp.eq.s32.totalorder %s24, 0
      %p312 = por %p310, %p311
      %p313 = scmp.ne.s32.totalorder %s305, %s307
      %p314 = scmp.eq.s32.totalorder %s29, 2
      %p315 = por %p313, %p314
      %p316 = scmp.ne.s32.totalorder %s307, %s308
      %p317 = scmp.eq.s32.totalorder %s29, 0
      %p318 = por %p316, %p317
      %p319 = scmp.ne.s32.totalorder %s307, %s308
      %p320 = scmp.eq.s32.totalorder %s30, 2
      %p321 = por %p319, %p320
      %p323 = scmp.ne.s32.totalorder %s308, %s322
      %p324 = scmp.eq.s32.totalorder %s30, 0
      %p325 = por %p323, %p324
      %s327 = sadd.s32 %s326, 1
      %p330 = scmp.eq.s32.totalorder %s24, 2
      %p331 = scmp.ne.s32.totalorder %s326, %s328
      %p332 = scmp.eq.s32.totalorder %s24, 0
      %p333 = por %p331, %p332
      %p334 = scmp.ne.s32.totalorder %s326, %s328
      %p335 = scmp.eq.s32.totalorder %s29, 2
      %p336 = por %p334, %p335
      %p337 = scmp.ne.s32.totalorder %s328, %s329
      %p338 = scmp.eq.s32.totalorder %s29, 0
      %p339 = por %p337, %p338
      %p340 = scmp.ne.s32.totalorder %s328, %s329
      %p341 = scmp.eq.s32.totalorder %s30, 2
      %p342 = por %p340, %p341
      %p344 = scmp.ne.s32.totalorder %s329, %s343
      %p345 = scmp.eq.s32.totalorder %s30, 0
      %p346 = por %p344, %p345
      %s348 = sadd.s32 %s347, 1
      %p351 = scmp.eq.s32.totalorder %s24, 2
      %p352 = scmp.ne.s32.totalorder %s347, %s349
      %p353 = scmp.eq.s32.totalorder %s24, 0
      %p354 = por %p352, %p353
      %p355 = scmp.ne.s32.totalorder %s347, %s349
      %p356 = scmp.eq.s32.totalorder %s29, 2
      %p357 = por %p355, %p356
      %p358 = scmp.ne.s32.totalorder %s349, %s350
      %p359 = scmp.eq.s32.totalorder %s29, 0
      %p360 = por %p358, %p359
      %p361 = scmp.ne.s32.totalorder %s349, %s350
      %p362 = scmp.eq.s32.totalorder %s30, 2
      %p363 = por %p361, %p362
      %p365 = scmp.ne.s32.totalorder %s350, %s364
      %p366 = scmp.eq.s32.totalorder %s30, 0
      %p367 = por %p365, %p366
      %p368 = scmp.le.s32.totalorder 1, %s24
      %p369 = scmp.lt.s32.totalorder %s24, 4
      %p370 = pnand %p368, %p369
      %p371 = pneg %p370
      // Predicated region
      $region9: #{res_transformer_forward.5} parent=5 // pred_check
        _
      $region10: #{res_transformer_forward.5} parent=5 // pred_check_branch
        %373 = sbr.rel (%p370) target = $region12
      $region11: #{res_transformer_forward.5} parent=5 // pred_region
        %s374 = ssub.s32 %s24, 1
        // Predicated region
        $region13: #{res_transformer_forward.5} parent=11 // pred_check
          %p375 = pneg %p45
        $region14: #{res_transformer_forward.5} parent=11 // pred_check_branch
          %377 = sbr.rel (%p375) target = $region16
        $region15: #{res_transformer_forward.5} parent=11 // pred_region
          _
        $region16: #{res_transformer_forward.5} parent=11 // pred_fallthru
          _
        // Predicated region
        $region17: #{res_transformer_forward.5} parent=11 // pred_check
          %p378 = pneg %p66
        $region18: #{res_transformer_forward.5} parent=11 // pred_check_branch
          %380 = sbr.rel (%p378) target = $region20
        $region19: #{res_transformer_forward.5} parent=11 // pred_region
          _
        $region20: #{res_transformer_forward.5} parent=11 // pred_fallthru
          _
        // Predicated region
        $region21: #{res_transformer_forward.5} parent=11 // pred_check
          %p381 = pneg %p87
        $region22: #{res_transformer_forward.5} parent=11 // pred_check_branch
          %383 = sbr.rel (%p381) target = $region24
        $region23: #{res_transformer_forward.5} parent=11 // pred_region
          _
        $region24: #{res_transformer_forward.5} parent=11 // pred_fallthru
          _
        // Predicated region
        $region25: #{res_transformer_forward.5} parent=11 // pred_check
          %p384 = pneg %p108
        $region26: #{res_transformer_forward.5} parent=11 // pred_check_branch
          %386 = sbr.rel (%p384) target = $region28
        $region27: #{res_transformer_forward.5} parent=11 // pred_region
          _
        $region28: #{res_transformer_forward.5} parent=11 // pred_fallthru
          _
        // Predicated region
        $region29: #{res_transformer_forward.5} parent=11 // pred_check
          %p387 = pneg %p129
        $region30: #{res_transformer_forward.5} parent=11 // pred_check_branch
          %389 = sbr.rel (%p387) target = $region32
        $region31: #{res_transformer_forward.5} parent=11 // pred_region
          _
        $region32: #{res_transformer_forward.5} parent=11 // pred_fallthru
          _
        // Predicated region
        $region33: #{res_transformer_forward.5} parent=11 // pred_check
          %p390 = pneg %p150
        $region34: #{res_transformer_forward.5} parent=11 // pred_check_branch
          %392 = sbr.rel (%p390) target = $region36
        $region35: #{res_transformer_forward.5} parent=11 // pred_region
          _
        $region36: #{res_transformer_forward.5} parent=11 // pred_fallthru
          _
        // Predicated region
        $region37: #{res_transformer_forward.5} parent=11 // pred_check
          %p393 = pneg %p171
        $region38: #{res_transformer_forward.5} parent=11 // pred_check_branch
          %395 = sbr.rel (%p393) target = $region40
        $region39: #{res_transformer_forward.5} parent=11 // pred_region
          _
        $region40: #{res_transformer_forward.5} parent=11 // pred_fallthru
          _
        // Predicated region
        $region41: #{res_transformer_forward.5} parent=11 // pred_check
          %p396 = pneg %p192
        $region42: #{res_transformer_forward.5} parent=11 // pred_check_branch
          %398 = sbr.rel (%p396) target = $region44
        $region43: #{res_transformer_forward.5} parent=11 // pred_region
          _
        $region44: #{res_transformer_forward.5} parent=11 // pred_fallthru
          _
        // Predicated region
        $region45: #{res_transformer_forward.5} parent=11 // pred_check
          %p399 = pneg %p213
        $region46: #{res_transformer_forward.5} parent=11 // pred_check_branch
          %401 = sbr.rel (%p399) target = $region48
        $region47: #{res_transformer_forward.5} parent=11 // pred_region
          _
        $region48: #{res_transformer_forward.5} parent=11 // pred_fallthru
          _
        // Predicated region
        $region49: #{res_transformer_forward.5} parent=11 // pred_check
          %p402 = pneg %p234
        $region50: #{res_transformer_forward.5} parent=11 // pred_check_branch
          %404 = sbr.rel (%p402) target = $region52
        $region51: #{res_transformer_forward.5} parent=11 // pred_region
          _
        $region52: #{res_transformer_forward.5} parent=11 // pred_fallthru
          _
        // Predicated region
        $region53: #{res_transformer_forward.5} parent=11 // pred_check
          %p405 = pneg %p255
        $region54: #{res_transformer_forward.5} parent=11 // pred_check_branch
          %407 = sbr.rel (%p405) target = $region56
        $region55: #{res_transformer_forward.5} parent=11 // pred_region
          _
        $region56: #{res_transformer_forward.5} parent=11 // pred_fallthru
          _
        // Predicated region
        $region57: #{res_transformer_forward.5} parent=11 // pred_check
          %p408 = pneg %p276
        $region58: #{res_transformer_forward.5} parent=11 // pred_check_branch
          %410 = sbr.rel (%p408) target = $region60
        $region59: #{res_transformer_forward.5} parent=11 // pred_region
          _
        $region60: #{res_transformer_forward.5} parent=11 // pred_fallthru
          _
        // Predicated region
        $region61: #{res_transformer_forward.5} parent=11 // pred_check
          %p411 = pneg %p297
        $region62: #{res_transformer_forward.5} parent=11 // pred_check_branch
          %413 = sbr.rel (%p411) target = $region64
        $region63: #{res_transformer_forward.5} parent=11 // pred_region
          _
        $region64: #{res_transformer_forward.5} parent=11 // pred_fallthru
          _
        // Predicated region
        $region65: #{res_transformer_forward.5} parent=11 // pred_check
          %p414 = pneg %p318
        $region66: #{res_transformer_forward.5} parent=11 // pred_check_branch
          %416 = sbr.rel (%p414) target = $region68
        $region67: #{res_transformer_forward.5} parent=11 // pred_region
          _
        $region68: #{res_transformer_forward.5} parent=11 // pred_fallthru
          _
      $region12: #{res_transformer_forward.5} parent=5 // pred_fallthru
        _
      %p417 = scmp.lt.s32.totalorder %s24, 3
      // Predicated region
      $region69: #{res_transformer_forward.5} parent=5 // pred_check
        %p418 = pneg %p417
      $region70: #{res_transformer_forward.5} parent=5 // pred_check_branch
        %420 = sbr.rel (%p418) target = $region72
      $region71: #{res_transformer_forward.5} parent=5 // pred_region
        _
      $region72: #{res_transformer_forward.5} parent=5 // pred_fallthru
        _
      %p421 = scmp.le.s32.totalorder 1, %s24
      %p422 = scmp.lt.s32.totalorder %s24, 4
      %p423 = pnand %p421, %p422
      %p424 = pneg %p423
      // Predicated region
      $region73: #{res_transformer_forward.5} parent=5 // pred_check
        _
      $region74: #{res_transformer_forward.5} parent=5 // pred_check_branch
        %426 = sbr.rel (%p423) target = $region76
      $region75: #{res_transformer_forward.5} parent=5 // pred_region
        %s427 = ssub.s32 %s24, 1
        %p428 = pneg %p45
        %p429 = pneg %p42
        %p430 = pneg %p66
        %p431 = pneg %p63
        %p432 = pneg %p87
        %p433 = pneg %p84
        %p434 = pneg %p108
        %p435 = pneg %p105
        %p436 = pneg %p129
        %p437 = pneg %p126
        %p438 = pneg %p150
        %p439 = pneg %p147
        %p440 = pneg %p171
        %p441 = pneg %p168
        %p442 = pneg %p192
        %p443 = pneg %p189
        %p444 = pneg %p213
        %p445 = pneg %p210
        %p446 = pneg %p234
        %p447 = pneg %p231
        %p448 = pneg %p255
        %p449 = pneg %p252
        %p450 = pneg %p276
        %p451 = pneg %p273
        %p452 = pneg %p297
        %p453 = pneg %p294
        %p454 = pneg %p318
        %p455 = pneg %p315
        %p456 = pneg %p339
        %p457 = pneg %p336
        %p458 = pneg %p360
        %p459 = pneg %p357
        %p460 = scmp.eq.s32.totalorder %s29, 0
        // Predicated region
        $region77: #{res_transformer_forward.5} parent=75 // pred_check
          %p461 = pneg %p460
        $region78: #{res_transformer_forward.5} parent=75 // pred_check_branch
          %463 = sbr.rel (%p461) target = $region80
        $region79: #{res_transformer_forward.5} parent=75 // pred_region
          %v464 = vld [vmem:[%s0] sm:$0xff]
          %v465 = vld [vmem:[%s0 + $0x8] sm:$0xff]
          %v466 = vld [vmem:[%s0 + $0x10] sm:$0xff]
          %v467 = vld [vmem:[%s0 + $0x18] sm:$0xff]
          %v468 = vld [vmem:[%s1] sm:$0xff]
          %v469 = vld [vmem:[%s1 + $0x8] sm:$0xff]
          %v470 = vadd.f32 %v464, %v468
          %v471 = vadd.f32 %v465, %v469
          %v472 = vadd.f32 %v466, %v468
          %v473 = vadd.f32 %v467, %v469
          %vm474 = vcmask 261120
          %475 = vst.msk [vmem:[#allocation2] sm:$0xff] %vm474, %v470
          %476 = vst.msk [vmem:[#allocation2 + $0x8] sm:$0xff] %vm474, %v471
          %477 = vst.msk [vmem:[#allocation2 + $0x10] sm:$0xff] %vm474, %v472
          %478 = vst.msk [vmem:[#allocation2 + $0x18] sm:$0xff] %vm474, %v473
        $region80: #{res_transformer_forward.5} parent=75 // pred_fallthru
          _
        %v479 = vld [vmem:[#allocation2] sm:$0xff]
        %v480 = vld [vmem:[#allocation2 + $0x8] sm:$0xff]
        %v481 = vld [vmem:[#allocation2 + $0x10] sm:$0xff]
        %v482 = vld [vmem:[#allocation2 + $0x18] sm:$0xff]
        %v483 = vld [vmem:[%s2] sm:$0xff]
        %v484 = vld [vmem:[%s2 + $0x8] sm:$0xff]
        %v485 = vld [vmem:[%s2 + $0x10] sm:$0xff]
        %v486 = vld [vmem:[%s2 + $0x18] sm:$0xff]
        %v487 = vld [vmem:[%s3] sm:$0x1]
        %v489 = vlaneseq
        %v490 = vshrl.u32 %v489, 7
        %v491 = vsub.s32 0, %v490
        %v492 = vrot.slane %v487, %v491
        %vm494 = vcmask 261120
        %v496 = vsel %vm494, %v479, 0
        %v499 = vsel %vm494, %v480, 0
        %v502 = vsel %vm494, %v481, 0
        %v505 = vsel %vm494, %v482, 0
        %507 = vmatprep.subr.mxu0 0.0
        %508 = vmatpush1.msra.mxu0 %v483
        %509 = vmatprep.subr.mxu0 0.0
        %510 = vmatpush1.msra.mxu0 %v484
        %511 = vmatprep.subr.mxu0 0.0
        %512 = vmatpush1.msra.mxu0 %v485
        %513 = vmatprep.subr.mxu0 0.0
        %514 = vmatpush1.msra.mxu0 %v486
        %515 = vmatprep.subr.mxu0 0.0
        %516 = vmatpush1.msra.mxu0 0.0
        %517 = vmatprep.subr.mxu0 0.0
        %518 = vmatpush1.msra.mxu0 0.0
        %519 = vmatprep.subr.mxu0 0.0
        %520 = vmatpush1.msra.mxu0 0.0
        %521 = vmatprep.subr.mxu0 0.0
        %522 = vmatpush1.msra.mxu0 0.0
        %523 = vmatprep.subr.mxu0 0.0
        %524 = vmatpush1.msra.mxu0 0.0
        %525 = vmatprep.subr.mxu0 0.0
        %526 = vmatpush1.msra.mxu0 0.0
        %527 = vmatprep.subr.mxu0 0.0
        %528 = vmatpush1.msra.mxu0 0.0
        %529 = vmatprep.subr.mxu0 0.0
        %530 = vmatpush1.msra.mxu0 0.0
        %531 = vmatprep.subr.mxu0 0.0
        %532 = vmatpush1.msra.mxu0 0.0
        %533 = vmatprep.subr.mxu0 0.0
        %534 = vmatpush1.msra.mxu0 0.0
        %535 = vmatprep.subr.mxu0 0.0
        %536 = vmatpush1.msra.mxu0 0.0
        %537 = vmatprep.subr.mxu0 0.0
        %538 = vmatpush1.msra.mxu0 0.0
        %539 = vmatprep.subr.mxu0 0.0
        %540 = vmatpush1.msra.mxu0 0.0
        %541 = vmatprep.subr.mxu0 0.0
        %542 = vmatpush1.msra.mxu0 0.0
        %543 = vmatprep.subr.mxu0 0.0
        %544 = vmatpush1.msra.mxu0 0.0
        %545 = vmatprep.subr.mxu0 0.0
        %546 = vmatpush1.msra.mxu0 0.0
        %547 = vmatprep.subr.mxu0 0.0
        %548 = vmatpush1.msra.mxu0 0.0
        %549 = vmatprep.subr.mxu0 0.0
        %550 = vmatpush1.msra.mxu0 0.0
        %551 = vmatprep.subr.mxu0 0.0
        %552 = vmatpush1.msra.mxu0 0.0
        %553 = vmatprep.subr.mxu0 0.0
        %554 = vmatpush1.msra.mxu0 0.0
        %555 = vmatprep.subr.mxu0 0.0
        %556 = vmatpush1.msra.mxu0 0.0
        %557 = vmatprep.subr.mxu0 0.0
        %558 = vmatpush1.msra.mxu0 0.0
        %559 = vmatprep.subr.mxu0 0.0
        %560 = vmatpush1.msra.mxu0 0.0
        %561 = vmatprep.subr.mxu0 0.0
        %562 = vmatpush1.msra.mxu0 0.0
        %563 = vmatprep.subr.mxu0 0.0
        %564 = vmatpush1.msra.mxu0 0.0
        %565 = vmatprep.subr.mxu0 0.0
        %566 = vmatpush1.msra.mxu0 0.0
        %567 = vmatprep.subr.mxu0 0.0
        %568 = vmatpush1.msra.mxu0 0.0
        %569 = vmatprep.subr.mxu0 0.0
        %570 = vmatpush1.msra.mxu0 0.0
        %571 = vmatprep.mubr.f32.mxu0 0.0
        %572 = vmatmul.mubr.f32.gmra.mrb[0].mxu0 %v496
        %v573 = vpop.f32.mrb[0].mxu0
        %v574 = vadd.f32 %v492, %v573
        %v575 = vpop.f32.mrb[0].mxu0
        %576 = vmatprep.mubr.f32.mxu0 0.0
        %577 = vmatmul.mubr.f32.gmra.mrb[0].mxu0 %v499
        %v578 = vpop.f32.mrb[0].mxu0
        %v579 = vadd.f32 %v492, %v578
        %v580 = vpop.f32.mrb[0].mxu0
        %581 = vmatprep.mubr.f32.mxu0 0.0
        %582 = vmatmul.mubr.f32.gmra.mrb[0].mxu0 %v502
        %v583 = vpop.f32.mrb[0].mxu0
        %v584 = vadd.f32 %v492, %v583
        %v585 = vpop.f32.mrb[0].mxu0
        %586 = vmatprep.mubr.f32.mxu0 0.0
        %587 = vmatmul.mubr.f32.gmra.mrb[0].mxu0 %v505
        %v588 = vpop.f32.mrb[0].mxu0
        %v589 = vadd.f32 %v492, %v588
        %v590 = vpop.f32.mrb[0].mxu0
        %591 = vdwg.mxu0
        %v592 = vld [vmem:[%s4] sm:$0xff]
        %v593 = vld [vmem:[%s4 + $0x8] sm:$0xff]
        %v594 = vld [vmem:[%s4 + $0x10] sm:$0xff]
        %v595 = vld [vmem:[%s4 + $0x18] sm:$0xff]
        %598 = vrot.lane.b32.xlu0 %v574, 96
        %v599 = vpop.permute.xlu0 %598
        %600 = vrot.lane.b32.xlu0 %v579, 96
        %v601 = vpop.permute.xlu0 %600
        %vm602 = vcmask 64512
        %v603 = vsel %vm602, %v574, 0
        %v605 = vsel %vm602, %v579, 0
        %v607 = vsel %vm602, %v599, 0
        %v609 = vsel %vm602, %v601, 0
        %611 = vmatprep.subr.mxu0 0.0
        %612 = vmatpush1.xpose.msra.mxu0 %v607
        %613 = vmatprep.subr.mxu0 0.0
        %614 = vmatpush1.xpose.msra.mxu0 %v609
        %615 = vmatprep.subr.mxu0 0.0
        %616 = vmatpush1.xpose.msra.mxu0 0.0
        %617 = vmatprep.subr.mxu0 0.0
        %618 = vmatpush1.xpose.msra.mxu0 0.0
        %619 = vmatprep.subr.mxu0 0.0
        %620 = vmatpush1.xpose.msra.mxu0 0.0
        %621 = vmatprep.subr.mxu0 0.0
        %622 = vmatpush1.xpose.msra.mxu0 0.0
        %623 = vmatprep.subr.mxu0 0.0
        %624 = vmatpush1.xpose.msra.mxu0 0.0
        %625 = vmatprep.subr.mxu0 0.0
        %626 = vmatpush1.xpose.msra.mxu0 0.0
        %627 = vmatprep.subr.mxu0 0.0
        %628 = vmatpush1.xpose.msra.mxu0 0.0
        %629 = vmatprep.subr.mxu0 0.0
        %630 = vmatpush1.xpose.msra.mxu0 0.0
        %631 = vmatprep.subr.mxu0 0.0
        %632 = vmatpush1.xpose.msra.mxu0 0.0
        %633 = vmatprep.subr.mxu0 0.0
        %634 = vmatpush1.xpose.msra.mxu0 0.0
        %635 = vmatprep.subr.mxu0 0.0
        %636 = vmatpush1.xpose.msra.mxu0 0.0
        %637 = vmatprep.subr.mxu0 0.0
        %638 = vmatpush1.xpose.msra.mxu0 0.0
        %639 = vmatprep.subr.mxu0 0.0
        %640 = vmatpush1.xpose.msra.mxu0 0.0
        %641 = vmatprep.subr.mxu0 0.0
        %642 = vmatpush1.xpose.msra.mxu0 0.0
        %643 = vmatprep.subr.mxu0 0.0
        %644 = vmatpush1.xpose.msra.mxu0 0.0
        %645 = vmatprep.subr.mxu0 0.0
        %646 = vmatpush1.xpose.msra.mxu0 0.0
        %647 = vmatprep.subr.mxu0 0.0
        %648 = vmatpush1.xpose.msra.mxu0 0.0
        %649 = vmatprep.subr.mxu0 0.0
        %650 = vmatpush1.xpose.msra.mxu0 0.0
        %651 = vmatprep.subr.mxu0 0.0
        %652 = vmatpush1.xpose.msra.mxu0 0.0
        %653 = vmatprep.subr.mxu0 0.0
        %654 = vmatpush1.xpose.msra.mxu0 0.0
        %655 = vmatprep.subr.mxu0 0.0
        %656 = vmatpush1.xpose.msra.mxu0 0.0
        %657 = vmatprep.subr.mxu0 0.0
        %658 = vmatpush1.xpose.msra.mxu0 0.0
        %659 = vmatprep.subr.mxu0 0.0
        %660 = vmatpush1.xpose.msra.mxu0 0.0
        %661 = vmatprep.subr.mxu0 0.0
        %662 = vmatpush1.xpose.msra.mxu0 0.0
        %663 = vmatprep.subr.mxu0 0.0
        %664 = vmatpush1.xpose.msra.mxu0 0.0
        %665 = vmatprep.subr.mxu0 0.0
        %666 = vmatpush1.xpose.msra.mxu0 0.0
        %667 = vmatprep.subr.mxu0 0.0
        %668 = vmatpush1.xpose.msra.mxu0 0.0
        %669 = vmatprep.subr.mxu0 0.0
        %670 = vmatpush1.xpose.msra.mxu0 0.0
        %671 = vmatprep.subr.mxu0 0.0
        %672 = vmatpush1.xpose.msra.mxu0 0.0
        %673 = vmatprep.subr.mxu0 0.0
        %674 = vmatpush1.xpose.msra.mxu0 0.0
        %675 = vmatprep.mubr.f32.mxu0 0.0
        %676 = vmatmul.mubr.f32.gmra.mrb[0].mxu0 %v603
        %v677 = vpop.f32.mrb[0].mxu0
        %v678 = vadd.f32 0.0, %v677
        %v679 = vpop.f32.mrb[0].mxu0
        %680 = vmatprep.mubr.f32.mxu0 0.0
        %681 = vmatmul.mubr.f32.gmra.mrb[0].mxu0 %v605
        %v682 = vpop.f32.mrb[0].mxu0
        %v683 = vadd.f32 0.0, %v682
        %v684 = vpop.f32.mrb[0].mxu0
        %685 = vdwg.mxu0
        %688 = vrot.lane.b32.xlu0 %v584, 96
        %v689 = vpop.permute.xlu0 %688
        %690 = vrot.lane.b32.xlu0 %v589, 96
        %v691 = vpop.permute.xlu0 %690
        %v692 = vsel %vm602, %v584, 0
        %v694 = vsel %vm602, %v589, 0
        %v696 = vsel %vm602, %v689, 0
        %v698 = vsel %vm602, %v691, 0
        %700 = vmatprep.subr.mxu0 0.0
        %701 = vmatpush1.xpose.msra.mxu0 %v696
        %702 = vmatprep.subr.mxu0 0.0
        %703 = vmatpush1.xpose.msra.mxu0 %v698
        %704 = vmatprep.subr.mxu0 0.0
        %705 = vmatpush1.xpose.msra.mxu0 0.0
        %706 = vmatprep.subr.mxu0 0.0
        %707 = vmatpush1.xpose.msra.mxu0 0.0
        %708 = vmatprep.subr.mxu0 0.0
        %709 = vmatpush1.xpose.msra.mxu0 0.0
        %710 = vmatprep.subr.mxu0 0.0
        %711 = vmatpush1.xpose.msra.mxu0 0.0
        %712 = vmatprep.subr.mxu0 0.0
        %713 = vmatpush1.xpose.msra.mxu0 0.0
        %714 = vmatprep.subr.mxu0 0.0
        %715 = vmatpush1.xpose.msra.mxu0 0.0
        %716 = vmatprep.subr.mxu0 0.0
        %717 = vmatpush1.xpose.msra.mxu0 0.0
        %718 = vmatprep.subr.mxu0 0.0
        %719 = vmatpush1.xpose.msra.mxu0 0.0
        %720 = vmatprep.subr.mxu0 0.0
        %721 = vmatpush1.xpose.msra.mxu0 0.0
        %722 = vmatprep.subr.mxu0 0.0
        %723 = vmatpush1.xpose.msra.mxu0 0.0
        %724 = vmatprep.subr.mxu0 0.0
        %725 = vmatpush1.xpose.msra.mxu0 0.0
        %726 = vmatprep.subr.mxu0 0.0
        %727 = vmatpush1.xpose.msra.mxu0 0.0
        %728 = vmatprep.subr.mxu0 0.0
        %729 = vmatpush1.xpose.msra.mxu0 0.0
        %730 = vmatprep.subr.mxu0 0.0
        %731 = vmatpush1.xpose.msra.mxu0 0.0
        %732 = vmatprep.subr.mxu0 0.0
        %733 = vmatpush1.xpose.msra.mxu0 0.0
        %734 = vmatprep.subr.mxu0 0.0
        %735 = vmatpush1.xpose.msra.mxu0 0.0
        %736 = vmatprep.subr.mxu0 0.0
        %737 = vmatpush1.xpose.msra.mxu0 0.0
        %738 = vmatprep.subr.mxu0 0.0
        %739 = vmatpush1.xpose.msra.mxu0 0.0
        %740 = vmatprep.subr.mxu0 0.0
        %741 = vmatpush1.xpose.msra.mxu0 0.0
        %742 = vmatprep.subr.mxu0 0.0
        %743 = vmatpush1.xpose.msra.mxu0 0.0
        %744 = vmatprep.subr.mxu0 0.0
        %745 = vmatpush1.xpose.msra.mxu0 0.0
        %746 = vmatprep.subr.mxu0 0.0
        %747 = vmatpush1.xpose.msra.mxu0 0.0
        %748 = vmatprep.subr.mxu0 0.0
        %749 = vmatpush1.xpose.msra.mxu0 0.0
        %750 = vmatprep.subr.mxu0 0.0
        %751 = vmatpush1.xpose.msra.mxu0 0.0
        %752 = vmatprep.subr.mxu0 0.0
        %753 = vmatpush1.xpose.msra.mxu0 0.0
        %754 = vmatprep.subr.mxu0 0.0
        %755 = vmatpush1.xpose.msra.mxu0 0.0
        %756 = vmatprep.subr.mxu0 0.0
        %757 = vmatpush1.xpose.msra.mxu0 0.0
        %758 = vmatprep.subr.mxu0 0.0
        %759 = vmatpush1.xpose.msra.mxu0 0.0
        %760 = vmatprep.subr.mxu0 0.0
        %761 = vmatpush1.xpose.msra.mxu0 0.0
        %762 = vmatprep.subr.mxu0 0.0
        %763 = vmatpush1.xpose.msra.mxu0 0.0
        %764 = vmatprep.mubr.f32.mxu0 0.0
        %765 = vmatmul.mubr.f32.gmra.mrb[0].mxu0 %v692
        %v766 = vpop.f32.mrb[0].mxu0
        %v767 = vadd.f32 0.0, %v766
        %v768 = vpop.f32.mrb[0].mxu0
        %769 = vmatprep.mubr.f32.mxu0 0.0
        %770 = vmatmul.mubr.f32.gmra.mrb[0].mxu0 %v694
        %v771 = vpop.f32.mrb[0].mxu0
        %v772 = vadd.f32 0.0, %v771
        %v773 = vpop.f32.mrb[0].mxu0
        %774 = vdwg.mxu0
        %v775 = vmul.f32 %v678, 0.35355338
        %v776 = vmul.f32 %v683, 0.35355338
        %v777 = vmul.f32 %v767, 0.35355338
        %v778 = vmul.f32 %v772, 0.35355338
        %vm779 = vcmask 130048
        %v780 = vsel %vm779, %v775, -inf
        %781 = vmax.xlane.f32.xlu0 %v780
        %v782 = vpop.xlane.xlu0 %781
        %v783 = vsel %vm779, %v776, -inf
        %784 = vmax.xlane.f32.xlu0 %v783
        %v785 = vpop.xlane.xlu0 %784
        %v786 = vsel %vm779, %v777, -inf
        %787 = vmax.xlane.f32.xlu0 %v786
        %v788 = vpop.xlane.xlu0 %787
        %v789 = vsel %vm779, %v778, -inf
        %790 = vmax.xlane.f32.xlu0 %v789
        %v791 = vpop.xlane.xlu0 %790
        %v792 = vsub.f32 %v775, %v782
        %v793 = vsub.f32 %v776, %v785
        %v794 = vsub.f32 %v777, %v788
        %v795 = vsub.f32 %v778, %v791
        %v796 = vmul.f32 %v792, 1.442695
        %v797 = vpow.pop %v796
        %v798 = vmul.f32 %v793, 1.442695
        %v799 = vpow.pop %v798
        %v800 = vmul.f32 %v794, 1.442695
        %v801 = vpow.pop %v800
        %v802 = vmul.f32 %v795, 1.442695
        %v803 = vpow.pop %v802
        %v804 = vsel %vm779, %v797, 0.0
        %805 = vadd.xlane.f32.xlu0 %v804
        %v806 = vpop.xlane.xlu0 %805
        %v807 = vsel %vm779, %v799, 0.0
        %808 = vadd.xlane.f32.xlu0 %v807
        %v809 = vpop.xlane.xlu0 %808
        %v810 = vsel %vm779, %v801, 0.0
        %811 = vadd.xlane.f32.xlu0 %v810
        %v812 = vpop.xlane.xlu0 %811
        %v813 = vsel %vm779, %v803, 0.0
        %814 = vadd.xlane.f32.xlu0 %v813
        %v815 = vpop.xlane.xlu0 %814
        %v816 = vrcp.pop %v806
        %v817 = vrcp.pop %v809
        %v818 = vrcp.pop %v812
        %v819 = vrcp.pop %v815
        %v820 = vmul.f32 %v797, %v816
        %v821 = vmul.f32 %v799, %v817
        %v822 = vmul.f32 %v801, %v818
        %v823 = vmul.f32 %v803, %v819
        %v824 = vadd.f32 %v820, 0.0
        %v825 = vadd.f32 %v821, 0.0
        %v826 = vadd.f32 %v822, 0.0
        %v827 = vadd.f32 %v823, 0.0
        %828 = vrot.lane.b32.xlu0 %v574, 64
        %v829 = vpop.permute.xlu0 %828
        %830 = vrot.lane.b32.xlu0 %v579, 64
        %v831 = vpop.permute.xlu0 %830
        %v835 = vsel %vm779, %v820, 0
        %v838 = vsel %vm779, %v821, 0
        %840 = vmatprep.subr.mxu0 0.0
        %841 = vmatpush1.msra.mxu0 %v829
        %842 = vmatprep.subr.mxu0 0.0
        %843 = vmatpush1.msra.mxu0 %v831
        %844 = vmatprep.subr.mxu0 0.0
        %845 = vmatpush1.msra.mxu0 0.0
        %846 = vmatprep.subr.mxu0 0.0
        %847 = vmatpush1.msra.mxu0 0.0
        %848 = vmatprep.subr.mxu0 0.0
        %849 = vmatpush1.msra.mxu0 0.0
        %850 = vmatprep.subr.mxu0 0.0
        %851 = vmatpush1.msra.mxu0 0.0
        %852 = vmatprep.subr.mxu0 0.0
        %853 = vmatpush1.msra.mxu0 0.0
        %854 = vmatprep.subr.mxu0 0.0
        %855 = vmatpush1.msra.mxu0 0.0
        %856 = vmatprep.subr.mxu0 0.0
        %857 = vmatpush1.msra.mxu0 0.0
        %858 = vmatprep.subr.mxu0 0.0
        %859 = vmatpush1.msra.mxu0 0.0
        %860 = vmatprep.subr.mxu0 0.0
        %861 = vmatpush1.msra.mxu0 0.0
        %862 = vmatprep.subr.mxu0 0.0
        %863 = vmatpush1.msra.mxu0 0.0
        %864 = vmatprep.subr.mxu0 0.0
        %865 = vmatpush1.msra.mxu0 0.0
        %866 = vmatprep.subr.mxu0 0.0
        %867 = vmatpush1.msra.mxu0 0.0
        %868 = vmatprep.subr.mxu0 0.0
        %869 = vmatpush1.msra.mxu0 0.0
        %870 = vmatprep.subr.mxu0 0.0
        %871 = vmatpush1.msra.mxu0 0.0
        %872 = vmatprep.subr.mxu0 0.0
        %873 = vmatpush1.msra.mxu0 0.0
        %874 = vmatprep.subr.mxu0 0.0
        %875 = vmatpush1.msra.mxu0 0.0
        %876 = vmatprep.subr.mxu0 0.0
        %877 = vmatpush1.msra.mxu0 0.0
        %878 = vmatprep.subr.mxu0 0.0
        %879 = vmatpush1.msra.mxu0 0.0
        %880 = vmatprep.subr.mxu0 0.0
        %881 = vmatpush1.msra.mxu0 0.0
        %882 = vmatprep.subr.mxu0 0.0
        %883 = vmatpush1.msra.mxu0 0.0
        %884 = vmatprep.subr.mxu0 0.0
        %885 = vmatpush1.msra.mxu0 0.0
        %886 = vmatprep.subr.mxu0 0.0
        %887 = vmatpush1.msra.mxu0 0.0
        %888 = vmatprep.subr.mxu0 0.0
        %889 = vmatpush1.msra.mxu0 0.0
        %890 = vmatprep.subr.mxu0 0.0
        %891 = vmatpush1.msra.mxu0 0.0
        %892 = vmatprep.subr.mxu0 0.0
        %893 = vmatpush1.msra.mxu0 0.0
        %894 = vmatprep.subr.mxu0 0.0
        %895 = vmatpush1.msra.mxu0 0.0
        %896 = vmatprep.subr.mxu0 0.0
        %897 = vmatpush1.msra.mxu0 0.0
        %898 = vmatprep.subr.mxu0 0.0
        %899 = vmatpush1.msra.mxu0 0.0
        %900 = vmatprep.subr.mxu0 0.0
        %901 = vmatpush1.msra.mxu0 0.0
        %902 = vmatprep.subr.mxu0 0.0
        %903 = vmatpush1.msra.mxu0 0.0
        %904 = vmatprep.mubr.f32.mxu0 0.0
        %905 = vmatmul.mubr.f32.gmra.mrb[0].mxu0 %v835
        %v906 = vpop.f32.mrb[0].mxu0
        %v907 = vadd.f32 0.0, %v906
        %v908 = vpop.f32.mrb[0].mxu0
        %909 = vmatprep.mubr.f32.mxu0 0.0
        %910 = vmatmul.mubr.f32.gmra.mrb[0].mxu0 %v838
        %v911 = vpop.f32.mrb[0].mxu0
        %v912 = vadd.f32 0.0, %v911
        %v913 = vpop.f32.mrb[0].mxu0
        %914 = vdwg.mxu0
        %915 = vrot.lane.b32.xlu0 %v584, 64
        %v916 = vpop.permute.xlu0 %915
        %917 = vrot.lane.b32.xlu0 %v589, 64
        %v918 = vpop.permute.xlu0 %917
        %v922 = vsel %vm779, %v822, 0
        %v925 = vsel %vm779, %v823, 0
        %927 = vmatprep.subr.mxu0 0.0
        %928 = vmatpush1.msra.mxu0 %v916
        %929 = vmatprep.subr.mxu0 0.0
        %930 = vmatpush1.msra.mxu0 %v918
        %931 = vmatprep.subr.mxu0 0.0
        %932 = vmatpush1.msra.mxu0 0.0
        %933 = vmatprep.subr.mxu0 0.0
        %934 = vmatpush1.msra.mxu0 0.0
        %935 = vmatprep.subr.mxu0 0.0
        %936 = vmatpush1.msra.mxu0 0.0
        %937 = vmatprep.subr.mxu0 0.0
        %938 = vmatpush1.msra.mxu0 0.0
        %939 = vmatprep.subr.mxu0 0.0
        %940 = vmatpush1.msra.mxu0 0.0
        %941 = vmatprep.subr.mxu0 0.0
        %942 = vmatpush1.msra.mxu0 0.0
        %943 = vmatprep.subr.mxu0 0.0
        %944 = vmatpush1.msra.mxu0 0.0
        %945 = vmatprep.subr.mxu0 0.0
        %946 = vmatpush1.msra.mxu0 0.0
        %947 = vmatprep.subr.mxu0 0.0
        %948 = vmatpush1.msra.mxu0 0.0
        %949 = vmatprep.subr.mxu0 0.0
        %950 = vmatpush1.msra.mxu0 0.0
        %951 = vmatprep.subr.mxu0 0.0
        %952 = vmatpush1.msra.mxu0 0.0
        %953 = vmatprep.subr.mxu0 0.0
        %954 = vmatpush1.msra.mxu0 0.0
        %955 = vmatprep.subr.mxu0 0.0
        %956 = vmatpush1.msra.mxu0 0.0
        %957 = vmatprep.subr.mxu0 0.0
        %958 = vmatpush1.msra.mxu0 0.0
        %959 = vmatprep.subr.mxu0 0.0
        %960 = vmatpush1.msra.mxu0 0.0
        %961 = vmatprep.subr.mxu0 0.0
        %962 = vmatpush1.msra.mxu0 0.0
        %963 = vmatprep.subr.mxu0 0.0
        %964 = vmatpush1.msra.mxu0 0.0
        %965 = vmatprep.subr.mxu0 0.0
        %966 = vmatpush1.msra.mxu0 0.0
        %967 = vmatprep.subr.mxu0 0.0
        %968 = vmatpush1.msra.mxu0 0.0
        %969 = vmatprep.subr.mxu0 0.0
        %970 = vmatpush1.msra.mxu0 0.0
        %971 = vmatprep.subr.mxu0 0.0
        %972 = vmatpush1.msra.mxu0 0.0
        %973 = vmatprep.subr.mxu0 0.0
        %974 = vmatpush1.msra.mxu0 0.0
        %975 = vmatprep.subr.mxu0 0.0
        %976 = vmatpush1.msra.mxu0 0.0
        %977 = vmatprep.subr.mxu0 0.0
        %978 = vmatpush1.msra.mxu0 0.0
        %979 = vmatprep.subr.mxu0 0.0
        %980 = vmatpush1.msra.mxu0 0.0
        %981 = vmatprep.subr.mxu0 0.0
        %982 = vmatpush1.msra.mxu0 0.0
        %983 = vmatprep.subr.mxu0 0.0
        %984 = vmatpush1.msra.mxu0 0.0
        %985 = vmatprep.subr.mxu0 0.0
        %986 = vmatpush1.msra.mxu0 0.0
        %987 = vmatprep.subr.mxu0 0.0
        %988 = vmatpush1.msra.mxu0 0.0
        %989 = vmatprep.subr.mxu0 0.0
        %990 = vmatpush1.msra.mxu0 0.0
        %991 = vmatprep.mubr.f32.mxu0 0.0
        %992 = vmatmul.mubr.f32.gmra.mrb[0].mxu0 %v922
        %v993 = vpop.f32.mrb[0].mxu0
        %v994 = vadd.f32 0.0, %v993
        %v995 = vpop.f32.mrb[0].mxu0
        %996 = vmatprep.mubr.f32.mxu0 0.0
        %997 = vmatmul.mubr.f32.gmra.mrb[0].mxu0 %v925
        %v998 = vpop.f32.mrb[0].mxu0
        %v999 = vadd.f32 0.0, %v998
        %v1000 = vpop.f32.mrb[0].mxu0
        %1001 = vdwg.mxu0
        %1002 = vrot.lane.b32.xlu0 %v574, 120
        %v1003 = vpop.permute.xlu0 %1002
        %1004 = vrot.lane.b32.xlu0 %v579, 120
        %v1005 = vpop.permute.xlu0 %1004
        %1006 = vrot.lane.b32.xlu0 %v574, 88
        %v1007 = vpop.permute.xlu0 %1006
        %1008 = vrot.lane.b32.xlu0 %v579, 88
        %v1009 = vpop.permute.xlu0 %1008
        %v1010 = vsel %vm602, %v1003, 0
        %v1012 = vsel %vm602, %v1005, 0
        %v1014 = vsel %vm602, %v1007, 0
        %v1016 = vsel %vm602, %v1009, 0
        %1018 = vmatprep.subr.mxu0 0.0
        %1019 = vmatpush1.xpose.msra.mxu0 %v1014
        %1020 = vmatprep.subr.mxu0 0.0
        %1021 = vmatpush1.xpose.msra.mxu0 %v1016
        %1022 = vmatprep.subr.mxu0 0.0
        %1023 = vmatpush1.xpose.msra.mxu0 0.0
        %1024 = vmatprep.subr.mxu0 0.0
        %1025 = vmatpush1.xpose.msra.mxu0 0.0
        %1026 = vmatprep.subr.mxu0 0.0
        %1027 = vmatpush1.xpose.msra.mxu0 0.0
        %1028 = vmatprep.subr.mxu0 0.0
        %1029 = vmatpush1.xpose.msra.mxu0 0.0
        %1030 = vmatprep.subr.mxu0 0.0
        %1031 = vmatpush1.xpose.msra.mxu0 0.0
        %1032 = vmatprep.subr.mxu0 0.0
        %1033 = vmatpush1.xpose.msra.mxu0 0.0
        %1034 = vmatprep.subr.mxu0 0.0
        %1035 = vmatpush1.xpose.msra.mxu0 0.0
        %1036 = vmatprep.subr.mxu0 0.0
        %1037 = vmatpush1.xpose.msra.mxu0 0.0
        %1038 = vmatprep.subr.mxu0 0.0
        %1039 = vmatpush1.xpose.msra.mxu0 0.0
        %1040 = vmatprep.subr.mxu0 0.0
        %1041 = vmatpush1.xpose.msra.mxu0 0.0
        %1042 = vmatprep.subr.mxu0 0.0
        %1043 = vmatpush1.xpose.msra.mxu0 0.0
        %1044 = vmatprep.subr.mxu0 0.0
        %1045 = vmatpush1.xpose.msra.mxu0 0.0
        %1046 = vmatprep.subr.mxu0 0.0
        %1047 = vmatpush1.xpose.msra.mxu0 0.0
        %1048 = vmatprep.subr.mxu0 0.0
        %1049 = vmatpush1.xpose.msra.mxu0 0.0
        %1050 = vmatprep.subr.mxu0 0.0
        %1051 = vmatpush1.xpose.msra.mxu0 0.0
        %1052 = vmatprep.subr.mxu0 0.0
        %1053 = vmatpush1.xpose.msra.mxu0 0.0
        %1054 = vmatprep.subr.mxu0 0.0
        %1055 = vmatpush1.xpose.msra.mxu0 0.0
        %1056 = vmatprep.subr.mxu0 0.0
        %1057 = vmatpush1.xpose.msra.mxu0 0.0
        %1058 = vmatprep.subr.mxu0 0.0
        %1059 = vmatpush1.xpose.msra.mxu0 0.0
        %1060 = vmatprep.subr.mxu0 0.0
        %1061 = vmatpush1.xpose.msra.mxu0 0.0
        %1062 = vmatprep.subr.mxu0 0.0
        %1063 = vmatpush1.xpose.msra.mxu0 0.0
        %1064 = vmatprep.subr.mxu0 0.0
        %1065 = vmatpush1.xpose.msra.mxu0 0.0
        %1066 = vmatprep.subr.mxu0 0.0
        %1067 = vmatpush1.xpose.msra.mxu0 0.0
        %1068 = vmatprep.subr.mxu0 0.0
        %1069 = vmatpush1.xpose.msra.mxu0 0.0
        %1070 = vmatprep.subr.mxu0 0.0
        %1071 = vmatpush1.xpose.msra.mxu0 0.0
        %1072 = vmatprep.subr.mxu0 0.0
        %1073 = vmatpush1.xpose.msra.mxu0 0.0
        %1074 = vmatprep.subr.mxu0 0.0
        %1075 = vmatpush1.xpose.msra.mxu0 0.0
        %1076 = vmatprep.subr.mxu0 0.0
        %1077 = vmatpush1.xpose.msra.mxu0 0.0
        %1078 = vmatprep.subr.mxu0 0.0
        %1079 = vmatpush1.xpose.msra.mxu0 0.0
        %1080 = vmatprep.subr.mxu0 0.0
        %1081 = vmatpush1.xpose.msra.mxu0 0.0
        %1082 = vmatprep.mubr.f32.mxu0 0.0
        %1083 = vmatmul.mubr.f32.gmra.mrb[0].mxu0 %v1010
        %v1084 = vpop.f32.mrb[0].mxu0
        %v1085 = vadd.f32 0.0, %v1084
        %v1086 = vpop.f32.mrb[0].mxu0
        %1087 = vmatprep.mubr.f32.mxu0 0.0
        %1088 = vmatmul.mubr.f32.gmra.mrb[0].mxu0 %v1012
        %v1089 = vpop.f32.mrb[0].mxu0
        %v1090 = vadd.f32 0.0, %v1089
        %v1091 = vpop.f32.mrb[0].mxu0
        %1092 = vdwg.mxu0
        %1093 = vrot.lane.b32.xlu0 %v584, 120
        %v1094 = vpop.permute.xlu0 %1093
        %1095 = vrot.lane.b32.xlu0 %v589, 120
        %v1096 = vpop.permute.xlu0 %1095
        %1097 = vrot.lane.b32.xlu0 %v584, 88
        %v1098 = vpop.permute.xlu0 %1097
        %1099 = vrot.lane.b32.xlu0 %v589, 88
        %v1100 = vpop.permute.xlu0 %1099
        %v1101 = vsel %vm602, %v1094, 0
        %v1103 = vsel %vm602, %v1096, 0
        %v1105 = vsel %vm602, %v1098, 0
        %v1107 = vsel %vm602, %v1100, 0
        %1109 = vmatprep.subr.mxu0 0.0
        %1110 = vmatpush1.xpose.msra.mxu0 %v1105
        %1111 = vmatprep.subr.mxu0 0.0
        %1112 = vmatpush1.xpose.msra.mxu0 %v1107
        %1113 = vmatprep.subr.mxu0 0.0
        %1114 = vmatpush1.xpose.msra.mxu0 0.0
        %1115 = vmatprep.subr.mxu0 0.0
        %1116 = vmatpush1.xpose.msra.mxu0 0.0
        %1117 = vmatprep.subr.mxu0 0.0
        %1118 = vmatpush1.xpose.msra.mxu0 0.0
        %1119 = vmatprep.subr.mxu0 0.0
        %1120 = vmatpush1.xpose.msra.mxu0 0.0
        %1121 = vmatprep.subr.mxu0 0.0
        %1122 = vmatpush1.xpose.msra.mxu0 0.0
        %1123 = vmatprep.subr.mxu0 0.0
        %1124 = vmatpush1.xpose.msra.mxu0 0.0
        %1125 = vmatprep.subr.mxu0 0.0
        %1126 = vmatpush1.xpose.msra.mxu0 0.0
        %1127 = vmatprep.subr.mxu0 0.0
        %1128 = vmatpush1.xpose.msra.mxu0 0.0
        %1129 = vmatprep.subr.mxu0 0.0
        %1130 = vmatpush1.xpose.msra.mxu0 0.0
        %1131 = vmatprep.subr.mxu0 0.0
        %1132 = vmatpush1.xpose.msra.mxu0 0.0
        %1133 = vmatprep.subr.mxu0 0.0
        %1134 = vmatpush1.xpose.msra.mxu0 0.0
        %1135 = vmatprep.subr.mxu0 0.0
        %1136 = vmatpush1.xpose.msra.mxu0 0.0
        %1137 = vmatprep.subr.mxu0 0.0
        %1138 = vmatpush1.xpose.msra.mxu0 0.0
        %1139 = vmatprep.subr.mxu0 0.0
        %1140 = vmatpush1.xpose.msra.mxu0 0.0
        %1141 = vmatprep.subr.mxu0 0.0
        %1142 = vmatpush1.xpose.msra.mxu0 0.0
        %1143 = vmatprep.subr.mxu0 0.0
        %1144 = vmatpush1.xpose.msra.mxu0 0.0
        %1145 = vmatprep.subr.mxu0 0.0
        %1146 = vmatpush1.xpose.msra.mxu0 0.0
        %1147 = vmatprep.subr.mxu0 0.0
        %1148 = vmatpush1.xpose.msra.mxu0 0.0
        %1149 = vmatprep.subr.mxu0 0.0
        %1150 = vmatpush1.xpose.msra.mxu0 0.0
        %1151 = vmatprep.subr.mxu0 0.0
        %1152 = vmatpush1.xpose.msra.mxu0 0.0
        %1153 = vmatprep.subr.mxu0 0.0
        %1154 = vmatpush1.xpose.msra.mxu0 0.0
        %1155 = vmatprep.subr.mxu0 0.0
        %1156 = vmatpush1.xpose.msra.mxu0 0.0
        %1157 = vmatprep.subr.mxu0 0.0
        %1158 = vmatpush1.xpose.msra.mxu0 0.0
        %1159 = vmatprep.subr.mxu0 0.0
        %1160 = vmatpush1.xpose.msra.mxu0 0.0
        %1161 = vmatprep.subr.mxu0 0.0
        %1162 = vmatpush1.xpose.msra.mxu0 0.0
        %1163 = vmatprep.subr.mxu0 0.0
        %1164 = vmatpush1.xpose.msra.mxu0 0.0
        %1165 = vmatprep.subr.mxu0 0.0
        %1166 = vmatpush1.xpose.msra.mxu0 0.0
        %1167 = vmatprep.subr.mxu0 0.0
        %1168 = vmatpush1.xpose.msra.mxu0 0.0
        %1169 = vmatprep.subr.mxu0 0.0
        %1170 = vmatpush1.xpose.msra.mxu0 0.0
        %1171 = vmatprep.subr.mxu0 0.0
        %1172 = vmatpush1.xpose.msra.mxu0 0.0
        %1173 = vmatprep.mubr.f32.mxu0 0.0
        %1174 = vmatmul.mubr.f32.gmra.mrb[0].mxu0 %v1101
        %v1175 = vpop.f32.mrb[0].mxu0
        %v1176 = vadd.f32 0.0, %v1175
        %v1177 = vpop.f32.mrb[0].mxu0
        %1178 = vmatprep.mubr.f32.mxu0 0.0
        %1179 = vmatmul.mubr.f32.gmra.mrb[0].mxu0 %v1103
        %v1180 = vpop.f32.mrb[0].mxu0
        %v1181 = vadd.f32 0.0, %v1180
        %v1182 = vpop.f32.mrb[0].mxu0
        %1183 = vdwg.mxu0
        %v1184 = vmul.f32 %v1085, 0.35355338
        %v1185 = vmul.f32 %v1090, 0.35355338
        %v1186 = vmul.f32 %v1176, 0.35355338
        %v1187 = vmul.f32 %v1181, 0.35355338
        %v1188 = vsel %vm779, %v1184, -inf
        %1189 = vmax.xlane.f32.xlu0 %v1188
        %v1190 = vpop.xlane.xlu0 %1189
        %v1191 = vsel %vm779, %v1185, -inf
        %1192 = vmax.xlane.f32.xlu0 %v1191
        %v1193 = vpop.xlane.xlu0 %1192
        %v1194 = vsel %vm779, %v1186, -inf
        %1195 = vmax.xlane.f32.xlu0 %v1194
        %v1196 = vpop.xlane.xlu0 %1195
        %v1197 = vsel %vm779, %v1187, -inf
        %1198 = vmax.xlane.f32.xlu0 %v1197
        %v1199 = vpop.xlane.xlu0 %1198
        %v1200 = vsub.f32 %v1184, %v1190
        %v1201 = vsub.f32 %v1185, %v1193
        %v1202 = vsub.f32 %v1186, %v1196
        %v1203 = vsub.f32 %v1187, %v1199
        %v1204 = vmul.f32 %v1200, 1.442695
        %v1205 = vpow.pop %v1204
        %v1206 = vmul.f32 %v1201, 1.442695
        %v1207 = vpow.pop %v1206
        %v1208 = vmul.f32 %v1202, 1.442695
        %v1209 = vpow.pop %v1208
        %v1210 = vmul.f32 %v1203, 1.442695
        %v1211 = vpow.pop %v1210
        %v1212 = vsel %vm779, %v1205, 0.0
        %1213 = vadd.xlane.f32.xlu0 %v1212
        %v1214 = vpop.xlane.xlu0 %1213
        %v1215 = vsel %vm779, %v1207, 0.0
        %1216 = vadd.xlane.f32.xlu0 %v1215
        %v1217 = vpop.xlane.xlu0 %1216
        %v1218 = vsel %vm779, %v1209, 0.0
        %1219 = vadd.xlane.f32.xlu0 %v1218
        %v1220 = vpop.xlane.xlu0 %1219
        %v1221 = vsel %vm779, %v1211, 0.0
        %1222 = vadd.xlane.f32.xlu0 %v1221
        %v1223 = vpop.xlane.xlu0 %1222
        %v1224 = vrcp.pop %v1214
        %v1225 = vrcp.pop %v1217
        %v1226 = vrcp.pop %v1220
        %v1227 = vrcp.pop %v1223
        %v1228 = vmul.f32 %v1205, %v1224
        %v1229 = vmul.f32 %v1207, %v1225
        %v1230 = vmul.f32 %v1209, %v1226
        %v1231 = vmul.f32 %v1211, %v1227
        %v1232 = vadd.f32 %v824, %v1228
        %v1233 = vadd.f32 %v825, %v1229
        %v1234 = vadd.f32 %v826, %v1230
        %v1235 = vadd.f32 %v827, %v1231
        %1236 = vrot.lane.b32.xlu0 %v574, 56
        %v1237 = vpop.permute.xlu0 %1236
        %1238 = vrot.lane.b32.xlu0 %v579, 56
        %v1239 = vpop.permute.xlu0 %1238
        %v1243 = vsel %vm779, %v1228, 0
        %v1246 = vsel %vm779, %v1229, 0
        %1248 = vmatprep.subr.mxu0 0.0
        %1249 = vmatpush1.msra.mxu0 %v1237
        %1250 = vmatprep.subr.mxu0 0.0
        %1251 = vmatpush1.msra.mxu0 %v1239
        %1252 = vmatprep.subr.mxu0 0.0
        %1253 = vmatpush1.msra.mxu0 0.0
        %1254 = vmatprep.subr.mxu0 0.0
        %1255 = vmatpush1.msra.mxu0 0.0
        %1256 = vmatprep.subr.mxu0 0.0
        %1257 = vmatpush1.msra.mxu0 0.0
        %1258 = vmatprep.subr.mxu0 0.0
        %1259 = vmatpush1.msra.mxu0 0.0
        %1260 = vmatprep.subr.mxu0 0.0
        %1261 = vmatpush1.msra.mxu0 0.0
        %1262 = vmatprep.subr.mxu0 0.0
        %1263 = vmatpush1.msra.mxu0 0.0
        %1264 = vmatprep.subr.mxu0 0.0
        %1265 = vmatpush1.msra.mxu0 0.0
        %1266 = vmatprep.subr.mxu0 0.0
        %1267 = vmatpush1.msra.mxu0 0.0
        %1268 = vmatprep.subr.mxu0 0.0
        %1269 = vmatpush1.msra.mxu0 0.0
        %1270 = vmatprep.subr.mxu0 0.0
        %1271 = vmatpush1.msra.mxu0 0.0
        %1272 = vmatprep.subr.mxu0 0.0
        %1273 = vmatpush1.msra.mxu0 0.0
        %1274 = vmatprep.subr.mxu0 0.0
        %1275 = vmatpush1.msra.mxu0 0.0
        %1276 = vmatprep.subr.mxu0 0.0
        %1277 = vmatpush1.msra.mxu0 0.0
        %1278 = vmatprep.subr.mxu0 0.0
        %1279 = vmatpush1.msra.mxu0 0.0
        %1280 = vmatprep.subr.mxu0 0.0
        %1281 = vmatpush1.msra.mxu0 0.0
        %1282 = vmatprep.subr.mxu0 0.0
        %1283 = vmatpush1.msra.mxu0 0.0
        %1284 = vmatprep.subr.mxu0 0.0
        %1285 = vmatpush1.msra.mxu0 0.0
        %1286 = vmatprep.subr.mxu0 0.0
        %1287 = vmatpush1.msra.mxu0 0.0
        %1288 = vmatprep.subr.mxu0 0.0
        %1289 = vmatpush1.msra.mxu0 0.0
        %1290 = vmatprep.subr.mxu0 0.0
        %1291 = vmatpush1.msra.mxu0 0.0
        %1292 = vmatprep.subr.mxu0 0.0
        %1293 = vmatpush1.msra.mxu0 0.0
        %1294 = vmatprep.subr.mxu0 0.0
        %1295 = vmatpush1.msra.mxu0 0.0
        %1296 = vmatprep.subr.mxu0 0.0
        %1297 = vmatpush1.msra.mxu0 0.0
        %1298 = vmatprep.subr.mxu0 0.0
        %1299 = vmatpush1.msra.mxu0 0.0
        %1300 = vmatprep.subr.mxu0 0.0
        %1301 = vmatpush1.msra.mxu0 0.0
        %1302 = vmatprep.subr.mxu0 0.0
        %1303 = vmatpush1.msra.mxu0 0.0
        %1304 = vmatprep.subr.mxu0 0.0
        %1305 = vmatpush1.msra.mxu0 0.0
        %1306 = vmatprep.subr.mxu0 0.0
        %1307 = vmatpush1.msra.mxu0 0.0
        %1308 = vmatprep.subr.mxu0 0.0
        %1309 = vmatpush1.msra.mxu0 0.0
        %1310 = vmatprep.subr.mxu0 0.0
        %1311 = vmatpush1.msra.mxu0 0.0
        %1312 = vmatprep.mubr.f32.mxu0 0.0
        %1313 = vmatmul.mubr.f32.gmra.mrb[0].mxu0 %v1243
        %v1314 = vpop.f32.mrb[0].mxu0
        %v1315 = vadd.f32 0.0, %v1314
        %v1316 = vpop.f32.mrb[0].mxu0
        %1317 = vmatprep.mubr.f32.mxu0 0.0
        %1318 = vmatmul.mubr.f32.gmra.mrb[0].mxu0 %v1246
        %v1319 = vpop.f32.mrb[0].mxu0
        %v1320 = vadd.f32 0.0, %v1319
        %v1321 = vpop.f32.mrb[0].mxu0
        %1322 = vdwg.mxu0
        %1323 = vrot.lane.b32.xlu0 %v584, 56
        %v1324 = vpop.permute.xlu0 %1323
        %1325 = vrot.lane.b32.xlu0 %v589, 56
        %v1326 = vpop.permute.xlu0 %1325
        %v1330 = vsel %vm779, %v1230, 0
        %v1333 = vsel %vm779, %v1231, 0
        %1335 = vmatprep.subr.mxu0 0.0
        %1336 = vmatpush1.msra.mxu0 %v1324
        %1337 = vmatprep.subr.mxu0 0.0
        %1338 = vmatpush1.msra.mxu0 %v1326
        %1339 = vmatprep.subr.mxu0 0.0
        %1340 = vmatpush1.msra.mxu0 0.0
        %1341 = vmatprep.subr.mxu0 0.0
        %1342 = vmatpush1.msra.mxu0 0.0
        %1343 = vmatprep.subr.mxu0 0.0
        %1344 = vmatpush1.msra.mxu0 0.0
        %1345 = vmatprep.subr.mxu0 0.0
        %1346 = vmatpush1.msra.mxu0 0.0
        %1347 = vmatprep.subr.mxu0 0.0
        %1348 = vmatpush1.msra.mxu0 0.0
        %1349 = vmatprep.subr.mxu0 0.0
        %1350 = vmatpush1.msra.mxu0 0.0
        %1351 = vmatprep.subr.mxu0 0.0
        %1352 = vmatpush1.msra.mxu0 0.0
        %1353 = vmatprep.subr.mxu0 0.0
        %1354 = vmatpush1.msra.mxu0 0.0
        %1355 = vmatprep.subr.mxu0 0.0
        %1356 = vmatpush1.msra.mxu0 0.0
        %1357 = vmatprep.subr.mxu0 0.0
        %1358 = vmatpush1.msra.mxu0 0.0
        %1359 = vmatprep.subr.mxu0 0.0
        %1360 = vmatpush1.msra.mxu0 0.0
        %1361 = vmatprep.subr.mxu0 0.0
        %1362 = vmatpush1.msra.mxu0 0.0
        %1363 = vmatprep.subr.mxu0 0.0
        %1364 = vmatpush1.msra.mxu0 0.0
        %1365 = vmatprep.subr.mxu0 0.0
        %1366 = vmatpush1.msra.mxu0 0.0
        %1367 = vmatprep.subr.mxu0 0.0
        %1368 = vmatpush1.msra.mxu0 0.0
        %1369 = vmatprep.subr.mxu0 0.0
        %1370 = vmatpush1.msra.mxu0 0.0
        %1371 = vmatprep.subr.mxu0 0.0
        %1372 = vmatpush1.msra.mxu0 0.0
        %1373 = vmatprep.subr.mxu0 0.0
        %1374 = vmatpush1.msra.mxu0 0.0
        %1375 = vmatprep.subr.mxu0 0.0
        %1376 = vmatpush1.msra.mxu0 0.0
        %1377 = vmatprep.subr.mxu0 0.0
        %1378 = vmatpush1.msra.mxu0 0.0
        %1379 = vmatprep.subr.mxu0 0.0
        %1380 = vmatpush1.msra.mxu0 0.0
        %1381 = vmatprep.subr.mxu0 0.0
        %1382 = vmatpush1.msra.mxu0 0.0
        %1383 = vmatprep.subr.mxu0 0.0
        %1384 = vmatpush1.msra.mxu0 0.0
        %1385 = vmatprep.subr.mxu0 0.0
        %1386 = vmatpush1.msra.mxu0 0.0
        %1387 = vmatprep.subr.mxu0 0.0
        %1388 = vmatpush1.msra.mxu0 0.0
        %1389 = vmatprep.subr.mxu0 0.0
        %1390 = vmatpush1.msra.mxu0 0.0
        %1391 = vmatprep.subr.mxu0 0.0
        %1392 = vmatpush1.msra.mxu0 0.0
        %1393 = vmatprep.subr.mxu0 0.0
        %1394 = vmatpush1.msra.mxu0 0.0
        %1395 = vmatprep.subr.mxu0 0.0
        %1396 = vmatpush1.msra.mxu0 0.0
        %1397 = vmatprep.subr.mxu0 0.0
        %1398 = vmatpush1.msra.mxu0 0.0
        %1399 = vmatprep.mubr.f32.mxu0 0.0
        %1400 = vmatmul.mubr.f32.gmra.mrb[0].mxu0 %v1330
        %v1401 = vpop.f32.mrb[0].mxu0
        %v1402 = vadd.f32 0.0, %v1401
        %v1403 = vpop.f32.mrb[0].mxu0
        %1404 = vmatprep.mubr.f32.mxu0 0.0
        %1405 = vmatmul.mubr.f32.gmra.mrb[0].mxu0 %v1333
        %v1406 = vpop.f32.mrb[0].mxu0
        %v1407 = vadd.f32 0.0, %v1406
        %v1408 = vpop.f32.mrb[0].mxu0
        %1409 = vdwg.mxu0
        %v1411 = vsel %vm602, %v1315, 0
        %v1414 = vsel %vm602, %v1320, 0
        %v1417 = vsel %vm602, %v1402, 0
        %v1420 = vsel %vm602, %v1407, 0
        %1422 = vmatprep.subr.mxu0 0.0
        %1423 = vmatpush1.msra.mxu0 %v593
        %1424 = vmatprep.subr.mxu0 0.0
        %1425 = vmatpush1.msra.mxu0 0.0
        %1426 = vmatprep.subr.mxu0 0.0
        %1427 = vmatpush1.msra.mxu0 0.0
        %1428 = vmatprep.subr.mxu0 0.0
        %1429 = vmatpush1.msra.mxu0 0.0
        %1430 = vmatprep.subr.mxu0 0.0
        %1431 = vmatpush1.msra.mxu0 0.0
        %1432 = vmatprep.subr.mxu0 0.0
        %1433 = vmatpush1.msra.mxu0 0.0
        %1434 = vmatprep.subr.mxu0 0.0
        %1435 = vmatpush1.msra.mxu0 0.0
        %1436 = vmatprep.subr.mxu0 0.0
        %1437 = vmatpush1.msra.mxu0 0.0
        %1438 = vmatprep.subr.mxu0 0.0
        %1439 = vmatpush1.msra.mxu0 0.0
        %1440 = vmatprep.subr.mxu0 0.0
        %1441 = vmatpush1.msra.mxu0 0.0
        %1442 = vmatprep.subr.mxu0 0.0
        %1443 = vmatpush1.msra.mxu0 0.0
        %1444 = vmatprep.subr.mxu0 0.0
        %1445 = vmatpush1.msra.mxu0 0.0
        %1446 = vmatprep.subr.mxu0 0.0
        %1447 = vmatpush1.msra.mxu0 0.0
        %1448 = vmatprep.subr.mxu0 0.0
        %1449 = vmatpush1.msra.mxu0 0.0
        %1450 = vmatprep.subr.mxu0 0.0
        %1451 = vmatpush1.msra.mxu0 0.0
        %1452 = vmatprep.subr.mxu0 0.0
        %1453 = vmatpush1.msra.mxu0 0.0
        %1454 = vmatprep.subr.mxu0 0.0
        %1455 = vmatpush1.msra.mxu0 0.0
        %1456 = vmatprep.subr.mxu0 0.0
        %1457 = vmatpush1.msra.mxu0 0.0
        %1458 = vmatprep.subr.mxu0 0.0
        %1459 = vmatpush1.msra.mxu0 0.0
        %1460 = vmatprep.subr.mxu0 0.0
        %1461 = vmatpush1.msra.mxu0 0.0
        %1462 = vmatprep.subr.mxu0 0.0
        %1463 = vmatpush1.msra.mxu0 0.0
        %1464 = vmatprep.subr.mxu0 0.0
        %1465 = vmatpush1.msra.mxu0 0.0
        %1466 = vmatprep.subr.mxu0 0.0
        %1467 = vmatpush1.msra.mxu0 0.0
        %1468 = vmatprep.subr.mxu0 0.0
        %1469 = vmatpush1.msra.mxu0 0.0
        %1470 = vmatprep.subr.mxu0 0.0
        %1471 = vmatpush1.msra.mxu0 0.0
        %1472 = vmatprep.subr.mxu0 0.0
        %1473 = vmatpush1.msra.mxu0 0.0
        %1474 = vmatprep.subr.mxu0 0.0
        %1475 = vmatpush1.msra.mxu0 0.0
        %1476 = vmatprep.subr.mxu0 0.0
        %1477 = vmatpush1.msra.mxu0 0.0
        %1478 = vmatprep.subr.mxu0 0.0
        %1479 = vmatpush1.msra.mxu0 0.0
        %1480 = vmatprep.subr.mxu0 0.0
        %1481 = vmatpush1.msra.mxu0 0.0
        %1482 = vmatprep.subr.mxu0 0.0
        %1483 = vmatpush1.msra.mxu0 0.0
        %1484 = vmatprep.subr.mxu0 0.0
        %1485 = vmatpush1.msra.mxu0 0.0
        %1486 = vmatprep.mubr.f32.mxu0 0.0
        %1487 = vmatmul.mubr.f32.gmra.mrb[0].mxu0 %v1411
        %v1488 = vpop.f32.mrb[0].mxu0
        %v1489 = vadd.f32 0.0, %v1488
        %v1490 = vpop.f32.mrb[0].mxu0
        %1491 = vmatprep.mubr.f32.mxu0 0.0
        %1492 = vmatmul.mubr.f32.gmra.mrb[0].mxu0 %v1414
        %v1493 = vpop.f32.mrb[0].mxu0
        %v1494 = vadd.f32 0.0, %v1493
        %v1495 = vpop.f32.mrb[0].mxu0
        %1496 = vmatprep.mubr.f32.mxu0 0.0
        %1497 = vmatmul.mubr.f32.gmra.mrb[0].mxu0 %v1417
        %v1498 = vpop.f32.mrb[0].mxu0
        %v1499 = vadd.f32 0.0, %v1498
        %v1500 = vpop.f32.mrb[0].mxu0
        %1501 = vmatprep.mubr.f32.mxu0 0.0
        %1502 = vmatmul.mubr.f32.gmra.mrb[0].mxu0 %v1420
        %v1503 = vpop.f32.mrb[0].mxu0
        %v1504 = vadd.f32 0.0, %v1503
        %v1505 = vpop.f32.mrb[0].mxu0
        %1506 = vdwg.mxu0
        %v1508 = vsel %vm602, %v907, 0
        %v1511 = vsel %vm602, %v912, 0
        %v1514 = vsel %vm602, %v994, 0
        %v1517 = vsel %vm602, %v999, 0
        %1519 = vmatprep.subr.mxu0 0.0
        %1520 = vmatpush1.msra.mxu0 %v592
        %1521 = vmatprep.subr.mxu0 0.0
        %1522 = vmatpush1.msra.mxu0 0.0
        %1523 = vmatprep.subr.mxu0 0.0
        %1524 = vmatpush1.msra.mxu0 0.0
        %1525 = vmatprep.subr.mxu0 0.0
        %1526 = vmatpush1.msra.mxu0 0.0
        %1527 = vmatprep.subr.mxu0 0.0
        %1528 = vmatpush1.msra.mxu0 0.0
        %1529 = vmatprep.subr.mxu0 0.0
        %1530 = vmatpush1.msra.mxu0 0.0
        %1531 = vmatprep.subr.mxu0 0.0
        %1532 = vmatpush1.msra.mxu0 0.0
        %1533 = vmatprep.subr.mxu0 0.0
        %1534 = vmatpush1.msra.mxu0 0.0
        %1535 = vmatprep.subr.mxu0 0.0
        %1536 = vmatpush1.msra.mxu0 0.0
        %1537 = vmatprep.subr.mxu0 0.0
        %1538 = vmatpush1.msra.mxu0 0.0
        %1539 = vmatprep.subr.mxu0 0.0
        %1540 = vmatpush1.msra.mxu0 0.0
        %1541 = vmatprep.subr.mxu0 0.0
        %1542 = vmatpush1.msra.mxu0 0.0
        %1543 = vmatprep.subr.mxu0 0.0
        %1544 = vmatpush1.msra.mxu0 0.0
        %1545 = vmatprep.subr.mxu0 0.0
        %1546 = vmatpush1.msra.mxu0 0.0
        %1547 = vmatprep.subr.mxu0 0.0
        %1548 = vmatpush1.msra.mxu0 0.0
        %1549 = vmatprep.subr.mxu0 0.0
        %1550 = vmatpush1.msra.mxu0 0.0
        %1551 = vmatprep.subr.mxu0 0.0
        %1552 = vmatpush1.msra.mxu0 0.0
        %1553 = vmatprep.subr.mxu0 0.0
        %1554 = vmatpush1.msra.mxu0 0.0
        %1555 = vmatprep.subr.mxu0 0.0
        %1556 = vmatpush1.msra.mxu0 0.0
        %1557 = vmatprep.subr.mxu0 0.0
        %1558 = vmatpush1.msra.mxu0 0.0
        %1559 = vmatprep.subr.mxu0 0.0
        %1560 = vmatpush1.msra.mxu0 0.0
        %1561 = vmatprep.subr.mxu0 0.0
        %1562 = vmatpush1.msra.mxu0 0.0
        %1563 = vmatprep.subr.mxu0 0.0
        %1564 = vmatpush1.msra.mxu0 0.0
        %1565 = vmatprep.subr.mxu0 0.0
        %1566 = vmatpush1.msra.mxu0 0.0
        %1567 = vmatprep.subr.mxu0 0.0
        %1568 = vmatpush1.msra.mxu0 0.0
        %1569 = vmatprep.subr.mxu0 0.0
        %1570 = vmatpush1.msra.mxu0 0.0
        %1571 = vmatprep.subr.mxu0 0.0
        %1572 = vmatpush1.msra.mxu0 0.0
        %1573 = vmatprep.subr.mxu0 0.0
        %1574 = vmatpush1.msra.mxu0 0.0
        %1575 = vmatprep.subr.mxu0 0.0
        %1576 = vmatpush1.msra.mxu0 0.0
        %1577 = vmatprep.subr.mxu0 0.0
        %1578 = vmatpush1.msra.mxu0 0.0
        %1579 = vmatprep.subr.mxu0 0.0
        %1580 = vmatpush1.msra.mxu0 0.0
        %1581 = vmatprep.subr.mxu0 0.0
        %1582 = vmatpush1.msra.mxu0 0.0
        %1583 = vmatprep.mubr.f32.mxu0 0.0
        %1584 = vmatmul.mubr.f32.gmra.mrb[0].mxu0 %v1508
        %v1585 = vpop.f32.mrb[0].mxu0
        %v1586 = vadd.f32 %v1489, %v1585
        %v1587 = vpop.f32.mrb[0].mxu0
        %1588 = vmatprep.mubr.f32.mxu0 0.0
        %1589 = vmatmul.mubr.f32.gmra.mrb[0].mxu0 %v1511
        %v1590 = vpop.f32.mrb[0].mxu0
        %v1591 = vadd.f32 %v1494, %v1590
        %v1592 = vpop.f32.mrb[0].mxu0
        %1593 = vmatprep.mubr.f32.mxu0 0.0
        %1594 = vmatmul.mubr.f32.gmra.mrb[0].mxu0 %v1514
        %v1595 = vpop.f32.mrb[0].mxu0
        %v1596 = vadd.f32 %v1499, %v1595
        %v1597 = vpop.f32.mrb[0].mxu0
        %1598 = vmatprep.mubr.f32.mxu0 0.0
        %1599 = vmatmul.mubr.f32.gmra.mrb[0].mxu0 %v1517
        %v1600 = vpop.f32.mrb[0].mxu0
        %v1601 = vadd.f32 %v1504, %v1600
        %v1602 = vpop.f32.mrb[0].mxu0
        %1603 = vdwg.mxu0
        %1604 = vrot.lane.b32.xlu0 %v574, 112
        %v1605 = vpop.permute.xlu0 %1604
        %1606 = vrot.lane.b32.xlu0 %v579, 112
        %v1607 = vpop.permute.xlu0 %1606
        %1608 = vrot.lane.b32.xlu0 %v574, 80
        %v1609 = vpop.permute.xlu0 %1608
        %1610 = vrot.lane.b32.xlu0 %v579, 80
        %v1611 = vpop.permute.xlu0 %1610
        %v1612 = vsel %vm602, %v1605, 0
        %v1614 = vsel %vm602, %v1607, 0
        %v1616 = vsel %vm602, %v1609, 0
        %v1618 = vsel %vm602, %v1611, 0
        %1620 = vmatprep.subr.mxu0 0.0
        %1621 = vmatpush1.xpose.msra.mxu0 %v1616
        %1622 = vmatprep.subr.mxu0 0.0
        %1623 = vmatpush1.xpose.msra.mxu0 %v1618
        %1624 = vmatprep.subr.mxu0 0.0
        %1625 = vmatpush1.xpose.msra.mxu0 0.0
        %1626 = vmatprep.subr.mxu0 0.0
        %1627 = vmatpush1.xpose.msra.mxu0 0.0
        %1628 = vmatprep.subr.mxu0 0.0
        %1629 = vmatpush1.xpose.msra.mxu0 0.0
        %1630 = vmatprep.subr.mxu0 0.0
        %1631 = vmatpush1.xpose.msra.mxu0 0.0
        %1632 = vmatprep.subr.mxu0 0.0
        %1633 = vmatpush1.xpose.msra.mxu0 0.0
        %1634 = vmatprep.subr.mxu0 0.0
        %1635 = vmatpush1.xpose.msra.mxu0 0.0
        %1636 = vmatprep.subr.mxu0 0.0
        %1637 = vmatpush1.xpose.msra.mxu0 0.0
        %1638 = vmatprep.subr.mxu0 0.0
        %1639 = vmatpush1.xpose.msra.mxu0 0.0
        %1640 = vmatprep.subr.mxu0 0.0
        %1641 = vmatpush1.xpose.msra.mxu0 0.0
        %1642 = vmatprep.subr.mxu0 0.0
        %1643 = vmatpush1.xpose.msra.mxu0 0.0
        %1644 = vmatprep.subr.mxu0 0.0
        %1645 = vmatpush1.xpose.msra.mxu0 0.0
        %1646 = vmatprep.subr.mxu0 0.0
        %1647 = vmatpush1.xpose.msra.mxu0 0.0
        %1648 = vmatprep.subr.mxu0 0.0
        %1649 = vmatpush1.xpose.msra.mxu0 0.0
        %1650 = vmatprep.subr.mxu0 0.0
        %1651 = vmatpush1.xpose.msra.mxu0 0.0
        %1652 = vmatprep.subr.mxu0 0.0
        %1653 = vmatpush1.xpose.msra.mxu0 0.0
        %1654 = vmatprep.subr.mxu0 0.0
        %1655 = vmatpush1.xpose.msra.mxu0 0.0
        %1656 = vmatprep.subr.mxu0 0.0
        %1657 = vmatpush1.xpose.msra.mxu0 0.0
        %1658 = vmatprep.subr.mxu0 0.0
        %1659 = vmatpush1.xpose.msra.mxu0 0.0
        %1660 = vmatprep.subr.mxu0 0.0
        %1661 = vmatpush1.xpose.msra.mxu0 0.0
        %1662 = vmatprep.subr.mxu0 0.0
        %1663 = vmatpush1.xpose.msra.mxu0 0.0
        %1664 = vmatprep.subr.mxu0 0.0
        %1665 = vmatpush1.xpose.msra.mxu0 0.0
        %1666 = vmatprep.subr.mxu0 0.0
        %1667 = vmatpush1.xpose.msra.mxu0 0.0
        %1668 = vmatprep.subr.mxu0 0.0
        %1669 = vmatpush1.xpose.msra.mxu0 0.0
        %1670 = vmatprep.subr.mxu0 0.0
        %1671 = vmatpush1.xpose.msra.mxu0 0.0
        %1672 = vmatprep.subr.mxu0 0.0
        %1673 = vmatpush1.xpose.msra.mxu0 0.0
        %1674 = vmatprep.subr.mxu0 0.0
        %1675 = vmatpush1.xpose.msra.mxu0 0.0
        %1676 = vmatprep.subr.mxu0 0.0
        %1677 = vmatpush1.xpose.msra.mxu0 0.0
        %1678 = vmatprep.subr.mxu0 0.0
        %1679 = vmatpush1.xpose.msra.mxu0 0.0
        %1680 = vmatprep.subr.mxu0 0.0
        %1681 = vmatpush1.xpose.msra.mxu0 0.0
        %1682 = vmatprep.subr.mxu0 0.0
        %1683 = vmatpush1.xpose.msra.mxu0 0.0
        %1684 = vmatprep.mubr.f32.mxu0 0.0
        %1685 = vmatmul.mubr.f32.gmra.mrb[0].mxu0 %v1612
        %v1686 = vpop.f32.mrb[0].mxu0
        %v1687 = vadd.f32 0.0, %v1686
        %v1688 = vpop.f32.mrb[0].mxu0
        %1689 = vmatprep.mubr.f32.mxu0 0.0
        %1690 = vmatmul.mubr.f32.gmra.mrb[0].mxu0 %v1614
        %v1691 = vpop.f32.mrb[0].mxu0
        %v1692 = vadd.f32 0.0, %v1691
        %v1693 = vpop.f32.mrb[0].mxu0
        %1694 = vdwg.mxu0
        %1695 = vrot.lane.b32.xlu0 %v584, 112
        %v1696 = vpop.permute.xlu0 %1695
        %1697 = vrot.lane.b32.xlu0 %v589, 112
        %v1698 = vpop.permute.xlu0 %1697
        %1699 = vrot.lane.b32.xlu0 %v584, 80
        %v1700 = vpop.permute.xlu0 %1699
        %1701 = vrot.lane.b32.xlu0 %v589, 80
        %v1702 = vpop.permute.xlu0 %1701
        %v1703 = vsel %vm602, %v1696, 0
        %v1705 = vsel %vm602, %v1698, 0
        %v1707 = vsel %vm602, %v1700, 0
        %v1709 = vsel %vm602, %v1702, 0
        %1711 = vmatprep.subr.mxu0 0.0
        %1712 = vmatpush1.xpose.msra.mxu0 %v1707
        %1713 = vmatprep.subr.mxu0 0.0
        %1714 = vmatpush1.xpose.msra.mxu0 %v1709
        %1715 = vmatprep.subr.mxu0 0.0
        %1716 = vmatpush1.xpose.msra.mxu0 0.0
        %1717 = vmatprep.subr.mxu0 0.0
        %1718 = vmatpush1.xpose.msra.mxu0 0.0
        %1719 = vmatprep.subr.mxu0 0.0
        %1720 = vmatpush1.xpose.msra.mxu0 0.0
        %1721 = vmatprep.subr.mxu0 0.0
        %1722 = vmatpush1.xpose.msra.mxu0 0.0
        %1723 = vmatprep.subr.mxu0 0.0
        %1724 = vmatpush1.xpose.msra.mxu0 0.0
        %1725 = vmatprep.subr.mxu0 0.0
        %1726 = vmatpush1.xpose.msra.mxu0 0.0
        %1727 = vmatprep.subr.mxu0 0.0
        %1728 = vmatpush1.xpose.msra.mxu0 0.0
        %1729 = vmatprep.subr.mxu0 0.0
        %1730 = vmatpush1.xpose.msra.mxu0 0.0
        %1731 = vmatprep.subr.mxu0 0.0
        %1732 = vmatpush1.xpose.msra.mxu0 0.0
        %1733 = vmatprep.subr.mxu0 0.0
        %1734 = vmatpush1.xpose.msra.mxu0 0.0
        %1735 = vmatprep.subr.mxu0 0.0
        %1736 = vmatpush1.xpose.msra.mxu0 0.0
        %1737 = vmatprep.subr.mxu0 0.0
        %1738 = vmatpush1.xpose.msra.mxu0 0.0
        %1739 = vmatprep.subr.mxu0 0.0
        %1740 = vmatpush1.xpose.msra.mxu0 0.0
        %1741 = vmatprep.subr.mxu0 0.0
        %1742 = vmatpush1.xpose.msra.mxu0 0.0
        %1743 = vmatprep.subr.mxu0 0.0
        %1744 = vmatpush1.xpose.msra.mxu0 0.0
        %1745 = vmatprep.subr.mxu0 0.0
        %1746 = vmatpush1.xpose.msra.mxu0 0.0
        %1747 = vmatprep.subr.mxu0 0.0
        %1748 = vmatpush1.xpose.msra.mxu0 0.0
        %1749 = vmatprep.subr.mxu0 0.0
        %1750 = vmatpush1.xpose.msra.mxu0 0.0
        %1751 = vmatprep.subr.mxu0 0.0
        %1752 = vmatpush1.xpose.msra.mxu0 0.0
        %1753 = vmatprep.subr.mxu0 0.0
        %1754 = vmatpush1.xpose.msra.mxu0 0.0
        %1755 = vmatprep.subr.mxu0 0.0
        %1756 = vmatpush1.xpose.msra.mxu0 0.0
        %1757 = vmatprep.subr.mxu0 0.0
        %1758 = vmatpush1.xpose.msra.mxu0 0.0
        %1759 = vmatprep.subr.mxu0 0.0
        %1760 = vmatpush1.xpose.msra.mxu0 0.0
        %1761 = vmatprep.subr.mxu0 0.0
        %1762 = vmatpush1.xpose.msra.mxu0 0.0
        %1763 = vmatprep.subr.mxu0 0.0
        %1764 = vmatpush1.xpose.msra.mxu0 0.0
        %1765 = vmatprep.subr.mxu0 0.0
        %1766 = vmatpush1.xpose.msra.mxu0 0.0
        %1767 = vmatprep.subr.mxu0 0.0
        %1768 = vmatpush1.xpose.msra.mxu0 0.0
        %1769 = vmatprep.subr.mxu0 0.0
        %1770 = vmatpush1.xpose.msra.mxu0 0.0
        %1771 = vmatprep.subr.mxu0 0.0
        %1772 = vmatpush1.xpose.msra.mxu0 0.0
        %1773 = vmatprep.subr.mxu0 0.0
        %1774 = vmatpush1.xpose.msra.mxu0 0.0
        %1775 = vmatprep.mubr.f32.mxu0 0.0
        %1776 = vmatmul.mubr.f32.gmra.mrb[0].mxu0 %v1703
        %v1777 = vpop.f32.mrb[0].mxu0
        %v1778 = vadd.f32 0.0, %v1777
        %v1779 = vpop.f32.mrb[0].mxu0
        %1780 = vmatprep.mubr.f32.mxu0 0.0
        %1781 = vmatmul.mubr.f32.gmra.mrb[0].mxu0 %v1705
        %v1782 = vpop.f32.mrb[0].mxu0
        %v1783 = vadd.f32 0.0, %v1782
        %v1784 = vpop.f32.mrb[0].mxu0
        %1785 = vdwg.mxu0
        %v1786 = vmul.f32 %v1687, 0.35355338
        %v1787 = vmul.f32 %v1692, 0.35355338
        %v1788 = vmul.f32 %v1778, 0.35355338
        %v1789 = vmul.f32 %v1783, 0.35355338
        %v1790 = vsel %vm779, %v1786, -inf
        %1791 = vmax.xlane.f32.xlu0 %v1790
        %v1792 = vpop.xlane.xlu0 %1791
        %v1793 = vsel %vm779, %v1787, -inf
        %1794 = vmax.xlane.f32.xlu0 %v1793
        %v1795 = vpop.xlane.xlu0 %1794
        %v1796 = vsel %vm779, %v1788, -inf
        %1797 = vmax.xlane.f32.xlu0 %v1796
        %v1798 = vpop.xlane.xlu0 %1797
        %v1799 = vsel %vm779, %v1789, -inf
        %1800 = vmax.xlane.f32.xlu0 %v1799
        %v1801 = vpop.xlane.xlu0 %1800
        %v1802 = vsub.f32 %v1786, %v1792
        %v1803 = vsub.f32 %v1787, %v1795
        %v1804 = vsub.f32 %v1788, %v1798
        %v1805 = vsub.f32 %v1789, %v1801
        %v1806 = vmul.f32 %v1802, 1.442695
        %v1807 = vpow.pop %v1806
        %v1808 = vmul.f32 %v1803, 1.442695
        %v1809 = vpow.pop %v1808
        %v1810 = vmul.f32 %v1804, 1.442695
        %v1811 = vpow.pop %v1810
        %v1812 = vmul.f32 %v1805, 1.442695
        %v1813 = vpow.pop %v1812
        %v1814 = vsel %vm779, %v1807, 0.0
        %1815 = vadd.xlane.f32.xlu0 %v1814
        %v1816 = vpop.xlane.xlu0 %1815
        %v1817 = vsel %vm779, %v1809, 0.0
        %1818 = vadd.xlane.f32.xlu0 %v1817
        %v1819 = vpop.xlane.xlu0 %1818
        %v1820 = vsel %vm779, %v1811, 0.0
        %1821 = vadd.xlane.f32.xlu0 %v1820
        %v1822 = vpop.xlane.xlu0 %1821
        %v1823 = vsel %vm779, %v1813, 0.0
        %1824 = vadd.xlane.f32.xlu0 %v1823
        %v1825 = vpop.xlane.xlu0 %1824
        %v1826 = vrcp.pop %v1816
        %v1827 = vrcp.pop %v1819
        %v1828 = vrcp.pop %v1822
        %v1829 = vrcp.pop %v1825
        %v1830 = vmul.f32 %v1807, %v1826
        %v1831 = vmul.f32 %v1809, %v1827
        %v1832 = vmul.f32 %v1811, %v1828
        %v1833 = vmul.f32 %v1813, %v1829
        %v1834 = vadd.f32 %v1232, %v1830
        %v1835 = vadd.f32 %v1233, %v1831
        %v1836 = vadd.f32 %v1234, %v1832
        %v1837 = vadd.f32 %v1235, %v1833
        %1838 = vrot.lane.b32.xlu0 %v574, 48
        %v1839 = vpop.permute.xlu0 %1838
        %1840 = vrot.lane.b32.xlu0 %v579, 48
        %v1841 = vpop.permute.xlu0 %1840
        %v1845 = vsel %vm779, %v1830, 0
        %v1848 = vsel %vm779, %v1831, 0
        %1850 = vmatprep.subr.mxu0 0.0
        %1851 = vmatpush1.msra.mxu0 %v1839
        %1852 = vmatprep.subr.mxu0 0.0
        %1853 = vmatpush1.msra.mxu0 %v1841
        %1854 = vmatprep.subr.mxu0 0.0
        %1855 = vmatpush1.msra.mxu0 0.0
        %1856 = vmatprep.subr.mxu0 0.0
        %1857 = vmatpush1.msra.mxu0 0.0
        %1858 = vmatprep.subr.mxu0 0.0
        %1859 = vmatpush1.msra.mxu0 0.0
        %1860 = vmatprep.subr.mxu0 0.0
        %1861 = vmatpush1.msra.mxu0 0.0
        %1862 = vmatprep.subr.mxu0 0.0
        %1863 = vmatpush1.msra.mxu0 0.0
        %1864 = vmatprep.subr.mxu0 0.0
        %1865 = vmatpush1.msra.mxu0 0.0
        %1866 = vmatprep.subr.mxu0 0.0
        %1867 = vmatpush1.msra.mxu0 0.0
        %1868 = vmatprep.subr.mxu0 0.0
        %1869 = vmatpush1.msra.mxu0 0.0
        %1870 = vmatprep.subr.mxu0 0.0
        %1871 = vmatpush1.msra.mxu0 0.0
        %1872 = vmatprep.subr.mxu0 0.0
        %1873 = vmatpush1.msra.mxu0 0.0
        %1874 = vmatprep.subr.mxu0 0.0
        %1875 = vmatpush1.msra.mxu0 0.0
        %1876 = vmatprep.subr.mxu0 0.0
        %1877 = vmatpush1.msra.mxu0 0.0
        %1878 = vmatprep.subr.mxu0 0.0
        %1879 = vmatpush1.msra.mxu0 0.0
        %1880 = vmatprep.subr.mxu0 0.0
        %1881 = vmatpush1.msra.mxu0 0.0
        %1882 = vmatprep.subr.mxu0 0.0
        %1883 = vmatpush1.msra.mxu0 0.0
        %1884 = vmatprep.subr.mxu0 0.0
        %1885 = vmatpush1.msra.mxu0 0.0
        %1886 = vmatprep.subr.mxu0 0.0
        %1887 = vmatpush1.msra.mxu0 0.0
        %1888 = vmatprep.subr.mxu0 0.0
        %1889 = vmatpush1.msra.mxu0 0.0
        %1890 = vmatprep.subr.mxu0 0.0
        %1891 = vmatpush1.msra.mxu0 0.0
        %1892 = vmatprep.subr.mxu0 0.0
        %1893 = vmatpush1.msra.mxu0 0.0
        %1894 = vmatprep.subr.mxu0 0.0
        %1895 = vmatpush1.msra.mxu0 0.0
        %1896 = vmatprep.subr.mxu0 0.0
        %1897 = vmatpush1.msra.mxu0 0.0
        %1898 = vmatprep.subr.mxu0 0.0
        %1899 = vmatpush1.msra.mxu0 0.0
        %1900 = vmatprep.subr.mxu0 0.0
        %1901 = vmatpush1.msra.mxu0 0.0
        %1902 = vmatprep.subr.mxu0 0.0
        %1903 = vmatpush1.msra.mxu0 0.0
        %1904 = vmatprep.subr.mxu0 0.0
        %1905 = vmatpush1.msra.mxu0 0.0
        %1906 = vmatprep.subr.mxu0 0.0
        %1907 = vmatpush1.msra.mxu0 0.0
        %1908 = vmatprep.subr.mxu0 0.0
        %1909 = vmatpush1.msra.mxu0 0.0
        %1910 = vmatprep.subr.mxu0 0.0
        %1911 = vmatpush1.msra.mxu0 0.0
        %1912 = vmatprep.subr.mxu0 0.0
        %1913 = vmatpush1.msra.mxu0 0.0
        %1914 = vmatprep.mubr.f32.mxu0 0.0
        %1915 = vmatmul.mubr.f32.gmra.mrb[0].mxu0 %v1845
        %v1916 = vpop.f32.mrb[0].mxu0
        %v1917 = vadd.f32 0.0, %v1916
        %v1918 = vpop.f32.mrb[0].mxu0
        %1919 = vmatprep.mubr.f32.mxu0 0.0
        %1920 = vmatmul.mubr.f32.gmra.mrb[0].mxu0 %v1848
        %v1921 = vpop.f32.mrb[0].mxu0
        %v1922 = vadd.f32 0.0, %v1921
        %v1923 = vpop.f32.mrb[0].mxu0
        %1924 = vdwg.mxu0
        %1925 = vrot.lane.b32.xlu0 %v584, 48
        %v1926 = vpop.permute.xlu0 %1925
        %1927 = vrot.lane.b32.xlu0 %v589, 48
        %v1928 = vpop.permute.xlu0 %1927
        %v1932 = vsel %vm779, %v1832, 0
        %v1935 = vsel %vm779, %v1833, 0
        %1937 = vmatprep.subr.mxu0 0.0
        %1938 = vmatpush1.msra.mxu0 %v1926
        %1939 = vmatprep.subr.mxu0 0.0
        %1940 = vmatpush1.msra.mxu0 %v1928
        %1941 = vmatprep.subr.mxu0 0.0
        %1942 = vmatpush1.msra.mxu0 0.0
        %1943 = vmatprep.subr.mxu0 0.0
        %1944 = vmatpush1.msra.mxu0 0.0
        %1945 = vmatprep.subr.mxu0 0.0
        %1946 = vmatpush1.msra.mxu0 0.0
        %1947 = vmatprep.subr.mxu0 0.0
        %1948 = vmatpush1.msra.mxu0 0.0
        %1949 = vmatprep.subr.mxu0 0.0
        %1950 = vmatpush1.msra.mxu0 0.0
        %1951 = vmatprep.subr.mxu0 0.0
        %1952 = vmatpush1.msra.mxu0 0.0
        %1953 = vmatprep.subr.mxu0 0.0
        %1954 = vmatpush1.msra.mxu0 0.0
        %1955 = vmatprep.subr.mxu0 0.0
        %1956 = vmatpush1.msra.mxu0 0.0
        %1957 = vmatprep.subr.mxu0 0.0
        %1958 = vmatpush1.msra.mxu0 0.0
        %1959 = vmatprep.subr.mxu0 0.0
        %1960 = vmatpush1.msra.mxu0 0.0
        %1961 = vmatprep.subr.mxu0 0.0
        %1962 = vmatpush1.msra.mxu0 0.0
        %1963 = vmatprep.subr.mxu0 0.0
        %1964 = vmatpush1.msra.mxu0 0.0
        %1965 = vmatprep.subr.mxu0 0.0
        %1966 = vmatpush1.msra.mxu0 0.0
        %1967 = vmatprep.subr.mxu0 0.0
        %1968 = vmatpush1.msra.mxu0 0.0
        %1969 = vmatprep.subr.mxu0 0.0
        %1970 = vmatpush1.msra.mxu0 0.0
        %1971 = vmatprep.subr.mxu0 0.0
        %1972 = vmatpush1.msra.mxu0 0.0
        %1973 = vmatprep.subr.mxu0 0.0
        %1974 = vmatpush1.msra.mxu0 0.0
        %1975 = vmatprep.subr.mxu0 0.0
        %1976 = vmatpush1.msra.mxu0 0.0
        %1977 = vmatprep.subr.mxu0 0.0
        %1978 = vmatpush1.msra.mxu0 0.0
        %1979 = vmatprep.subr.mxu0 0.0
        %1980 = vmatpush1.msra.mxu0 0.0
        %1981 = vmatprep.subr.mxu0 0.0
        %1982 = vmatpush1.msra.mxu0 0.0
        %1983 = vmatprep.subr.mxu0 0.0
        %1984 = vmatpush1.msra.mxu0 0.0
        %1985 = vmatprep.subr.mxu0 0.0
        %1986 = vmatpush1.msra.mxu0 0.0
        %1987 = vmatprep.subr.mxu0 0.0
        %1988 = vmatpush1.msra.mxu0 0.0
        %1989 = vmatprep.subr.mxu0 0.0
        %1990 = vmatpush1.msra.mxu0 0.0
        %1991 = vmatprep.subr.mxu0 0.0
        %1992 = vmatpush1.msra.mxu0 0.0
        %1993 = vmatprep.subr.mxu0 0.0
        %1994 = vmatpush1.msra.mxu0 0.0
        %1995 = vmatprep.subr.mxu0 0.0
        %1996 = vmatpush1.msra.mxu0 0.0
        %1997 = vmatprep.subr.mxu0 0.0
        %1998 = vmatpush1.msra.mxu0 0.0
        %1999 = vmatprep.subr.mxu0 0.0
        %2000 = vmatpush1.msra.mxu0 0.0
        %2001 = vmatprep.mubr.f32.mxu0 0.0
        %2002 = vmatmul.mubr.f32.gmra.mrb[0].mxu0 %v1932
        %v2003 = vpop.f32.mrb[0].mxu0
        %v2004 = vadd.f32 0.0, %v2003
        %v2005 = vpop.f32.mrb[0].mxu0
        %2006 = vmatprep.mubr.f32.mxu0 0.0
        %2007 = vmatmul.mubr.f32.gmra.mrb[0].mxu0 %v1935
        %v2008 = vpop.f32.mrb[0].mxu0
        %v2009 = vadd.f32 0.0, %v2008
        %v2010 = vpop.f32.mrb[0].mxu0
        %2011 = vdwg.mxu0
        %v2013 = vsel %vm602, %v1917, 0
        %v2016 = vsel %vm602, %v1922, 0
        %v2019 = vsel %vm602, %v2004, 0
        %v2022 = vsel %vm602, %v2009, 0
        %2024 = vmatprep.subr.mxu0 0.0
        %2025 = vmatpush1.msra.mxu0 %v594
        %2026 = vmatprep.subr.mxu0 0.0
        %2027 = vmatpush1.msra.mxu0 0.0
        %2028 = vmatprep.subr.mxu0 0.0
        %2029 = vmatpush1.msra.mxu0 0.0
        %2030 = vmatprep.subr.mxu0 0.0
        %2031 = vmatpush1.msra.mxu0 0.0
        %2032 = vmatprep.subr.mxu0 0.0
        %2033 = vmatpush1.msra.mxu0 0.0
        %2034 = vmatprep.subr.mxu0 0.0
        %2035 = vmatpush1.msra.mxu0 0.0
        %2036 = vmatprep.subr.mxu0 0.0
        %2037 = vmatpush1.msra.mxu0 0.0
        %2038 = vmatprep.subr.mxu0 0.0
        %2039 = vmatpush1.msra.mxu0 0.0
        %2040 = vmatprep.subr.mxu0 0.0
        %2041 = vmatpush1.msra.mxu0 0.0
        %2042 = vmatprep.subr.mxu0 0.0
        %2043 = vmatpush1.msra.mxu0 0.0
        %2044 = vmatprep.subr.mxu0 0.0
        %2045 = vmatpush1.msra.mxu0 0.0
        %2046 = vmatprep.subr.mxu0 0.0
        %2047 = vmatpush1.msra.mxu0 0.0
        %2048 = vmatprep.subr.mxu0 0.0
        %2049 = vmatpush1.msra.mxu0 0.0
        %2050 = vmatprep.subr.mxu0 0.0
        %2051 = vmatpush1.msra.mxu0 0.0
        %2052 = vmatprep.subr.mxu0 0.0
        %2053 = vmatpush1.msra.mxu0 0.0
        %2054 = vmatprep.subr.mxu0 0.0
        %2055 = vmatpush1.msra.mxu0 0.0
        %2056 = vmatprep.subr.mxu0 0.0
        %2057 = vmatpush1.msra.mxu0 0.0
        %2058 = vmatprep.subr.mxu0 0.0
        %2059 = vmatpush1.msra.mxu0 0.0
        %2060 = vmatprep.subr.mxu0 0.0
        %2061 = vmatpush1.msra.mxu0 0.0
        %2062 = vmatprep.subr.mxu0 0.0
        %2063 = vmatpush1.msra.mxu0 0.0
        %2064 = vmatprep.subr.mxu0 0.0
        %2065 = vmatpush1.msra.mxu0 0.0
        %2066 = vmatprep.subr.mxu0 0.0
        %2067 = vmatpush1.msra.mxu0 0.0
        %2068 = vmatprep.subr.mxu0 0.0
        %2069 = vmatpush1.msra.mxu0 0.0
        %2070 = vmatprep.subr.mxu0 0.0
        %2071 = vmatpush1.msra.mxu0 0.0
        %2072 = vmatprep.subr.mxu0 0.0
        %2073 = vmatpush1.msra.mxu0 0.0
        %2074 = vmatprep.subr.mxu0 0.0
        %2075 = vmatpush1.msra.mxu0 0.0
        %2076 = vmatprep.subr.mxu0 0.0
        %2077 = vmatpush1.msra.mxu0 0.0
        %2078 = vmatprep.subr.mxu0 0.0
        %2079 = vmatpush1.msra.mxu0 0.0
        %2080 = vmatprep.subr.mxu0 0.0
        %2081 = vmatpush1.msra.mxu0 0.0
        %2082 = vmatprep.subr.mxu0 0.0
        %2083 = vmatpush1.msra.mxu0 0.0
        %2084 = vmatprep.subr.mxu0 0.0
        %2085 = vmatpush1.msra.mxu0 0.0
        %2086 = vmatprep.subr.mxu0 0.0
        %2087 = vmatpush1.msra.mxu0 0.0
        %2088 = vmatprep.mubr.f32.mxu0 0.0
        %2089 = vmatmul.mubr.f32.gmra.mrb[0].mxu0 %v2013
        %v2090 = vpop.f32.mrb[0].mxu0
        %v2091 = vadd.f32 0.0, %v2090
        %v2092 = vpop.f32.mrb[0].mxu0
        %2093 = vmatprep.mubr.f32.mxu0 0.0
        %2094 = vmatmul.mubr.f32.gmra.mrb[0].mxu0 %v2016
        %v2095 = vpop.f32.mrb[0].mxu0
        %v2096 = vadd.f32 0.0, %v2095
        %v2097 = vpop.f32.mrb[0].mxu0
        %2098 = vmatprep.mubr.f32.mxu0 0.0
        %2099 = vmatmul.mubr.f32.gmra.mrb[0].mxu0 %v2019
        %v2100 = vpop.f32.mrb[0].mxu0
        %v2101 = vadd.f32 0.0, %v2100
        %v2102 = vpop.f32.mrb[0].mxu0
        %2103 = vmatprep.mubr.f32.mxu0 0.0
        %2104 = vmatmul.mubr.f32.gmra.mrb[0].mxu0 %v2022
        %v2105 = vpop.f32.mrb[0].mxu0
        %v2106 = vadd.f32 0.0, %v2105
        %v2107 = vpop.f32.mrb[0].mxu0
        %2108 = vdwg.mxu0
        %v2109 = vadd.f32 %v1586, %v2091
        %v2110 = vadd.f32 %v1591, %v2096
        %v2111 = vadd.f32 %v1596, %v2101
        %v2112 = vadd.f32 %v1601, %v2106
        %2113 = vrot.lane.b32.xlu0 %v574, 104
        %v2114 = vpop.permute.xlu0 %2113
        %2115 = vrot.lane.b32.xlu0 %v579, 104
        %v2116 = vpop.permute.xlu0 %2115
        %2117 = vrot.lane.b32.xlu0 %v574, 72
        %v2118 = vpop.permute.xlu0 %2117
        %2119 = vrot.lane.b32.xlu0 %v579, 72
        %v2120 = vpop.permute.xlu0 %2119
        %v2121 = vsel %vm602, %v2114, 0
        %v2123 = vsel %vm602, %v2116, 0
        %v2125 = vsel %vm602, %v2118, 0
        %v2127 = vsel %vm602, %v2120, 0
        %2129 = vmatprep.subr.mxu0 0.0
        %2130 = vmatpush1.xpose.msra.mxu0 %v2125
        %2131 = vmatprep.subr.mxu0 0.0
        %2132 = vmatpush1.xpose.msra.mxu0 %v2127
        %2133 = vmatprep.subr.mxu0 0.0
        %2134 = vmatpush1.xpose.msra.mxu0 0.0
        %2135 = vmatprep.subr.mxu0 0.0
        %2136 = vmatpush1.xpose.msra.mxu0 0.0
        %2137 = vmatprep.subr.mxu0 0.0
        %2138 = vmatpush1.xpose.msra.mxu0 0.0
        %2139 = vmatprep.subr.mxu0 0.0
        %2140 = vmatpush1.xpose.msra.mxu0 0.0
        %2141 = vmatprep.subr.mxu0 0.0
        %2142 = vmatpush1.xpose.msra.mxu0 0.0
        %2143 = vmatprep.subr.mxu0 0.0
        %2144 = vmatpush1.xpose.msra.mxu0 0.0
        %2145 = vmatprep.subr.mxu0 0.0
        %2146 = vmatpush1.xpose.msra.mxu0 0.0
        %2147 = vmatprep.subr.mxu0 0.0
        %2148 = vmatpush1.xpose.msra.mxu0 0.0
        %2149 = vmatprep.subr.mxu0 0.0
        %2150 = vmatpush1.xpose.msra.mxu0 0.0
        %2151 = vmatprep.subr.mxu0 0.0
        %2152 = vmatpush1.xpose.msra.mxu0 0.0
        %2153 = vmatprep.subr.mxu0 0.0
        %2154 = vmatpush1.xpose.msra.mxu0 0.0
        %2155 = vmatprep.subr.mxu0 0.0
        %2156 = vmatpush1.xpose.msra.mxu0 0.0
        %2157 = vmatprep.subr.mxu0 0.0
        %2158 = vmatpush1.xpose.msra.mxu0 0.0
        %2159 = vmatprep.subr.mxu0 0.0
        %2160 = vmatpush1.xpose.msra.mxu0 0.0
        %2161 = vmatprep.subr.mxu0 0.0
        %2162 = vmatpush1.xpose.msra.mxu0 0.0
        %2163 = vmatprep.subr.mxu0 0.0
        %2164 = vmatpush1.xpose.msra.mxu0 0.0
        %2165 = vmatprep.subr.mxu0 0.0
        %2166 = vmatpush1.xpose.msra.mxu0 0.0
        %2167 = vmatprep.subr.mxu0 0.0
        %2168 = vmatpush1.xpose.msra.mxu0 0.0
        %2169 = vmatprep.subr.mxu0 0.0
        %2170 = vmatpush1.xpose.msra.mxu0 0.0
        %2171 = vmatprep.subr.mxu0 0.0
        %2172 = vmatpush1.xpose.msra.mxu0 0.0
        %2173 = vmatprep.subr.mxu0 0.0
        %2174 = vmatpush1.xpose.msra.mxu0 0.0
        %2175 = vmatprep.subr.mxu0 0.0
        %2176 = vmatpush1.xpose.msra.mxu0 0.0
        %2177 = vmatprep.subr.mxu0 0.0
        %2178 = vmatpush1.xpose.msra.mxu0 0.0
        %2179 = vmatprep.subr.mxu0 0.0
        %2180 = vmatpush1.xpose.msra.mxu0 0.0
        %2181 = vmatprep.subr.mxu0 0.0
        %2182 = vmatpush1.xpose.msra.mxu0 0.0
        %2183 = vmatprep.subr.mxu0 0.0
        %2184 = vmatpush1.xpose.msra.mxu0 0.0
        %2185 = vmatprep.subr.mxu0 0.0
        %2186 = vmatpush1.xpose.msra.mxu0 0.0
        %2187 = vmatprep.subr.mxu0 0.0
        %2188 = vmatpush1.xpose.msra.mxu0 0.0
        %2189 = vmatprep.subr.mxu0 0.0
        %2190 = vmatpush1.xpose.msra.mxu0 0.0
        %2191 = vmatprep.subr.mxu0 0.0
        %2192 = vmatpush1.xpose.msra.mxu0 0.0
        %2193 = vmatprep.mubr.f32.mxu0 0.0
        %2194 = vmatmul.mubr.f32.gmra.mrb[0].mxu0 %v2121
        %v2195 = vpop.f32.mrb[0].mxu0
        %v2196 = vadd.f32 0.0, %v2195
        %v2197 = vpop.f32.mrb[0].mxu0
        %2198 = vmatprep.mubr.f32.mxu0 0.0
        %2199 = vmatmul.mubr.f32.gmra.mrb[0].mxu0 %v2123
        %v2200 = vpop.f32.mrb[0].mxu0
        %v2201 = vadd.f32 0.0, %v2200
        %v2202 = vpop.f32.mrb[0].mxu0
        %2203 = vdwg.mxu0
        %2204 = vrot.lane.b32.xlu0 %v584, 104
        %v2205 = vpop.permute.xlu0 %2204
        %2206 = vrot.lane.b32.xlu0 %v589, 104
        %v2207 = vpop.permute.xlu0 %2206
        %2208 = vrot.lane.b32.xlu0 %v584, 72
        %v2209 = vpop.permute.xlu0 %2208
        %2210 = vrot.lane.b32.xlu0 %v589, 72
        %v2211 = vpop.permute.xlu0 %2210
        %v2212 = vsel %vm602, %v2205, 0
        %v2214 = vsel %vm602, %v2207, 0
        %v2216 = vsel %vm602, %v2209, 0
        %v2218 = vsel %vm602, %v2211, 0
        %2220 = vmatprep.subr.mxu0 0.0
        %2221 = vmatpush1.xpose.msra.mxu0 %v2216
        %2222 = vmatprep.subr.mxu0 0.0
        %2223 = vmatpush1.xpose.msra.mxu0 %v2218
        %2224 = vmatprep.subr.mxu0 0.0
        %2225 = vmatpush1.xpose.msra.mxu0 0.0
        %2226 = vmatprep.subr.mxu0 0.0
        %2227 = vmatpush1.xpose.msra.mxu0 0.0
        %2228 = vmatprep.subr.mxu0 0.0
        %2229 = vmatpush1.xpose.msra.mxu0 0.0
        %2230 = vmatprep.subr.mxu0 0.0
        %2231 = vmatpush1.xpose.msra.mxu0 0.0
        %2232 = vmatprep.subr.mxu0 0.0
        %2233 = vmatpush1.xpose.msra.mxu0 0.0
        %2234 = vmatprep.subr.mxu0 0.0
        %2235 = vmatpush1.xpose.msra.mxu0 0.0
        %2236 = vmatprep.subr.mxu0 0.0
        %2237 = vmatpush1.xpose.msra.mxu0 0.0
        %2238 = vmatprep.subr.mxu0 0.0
        %2239 = vmatpush1.xpose.msra.mxu0 0.0
        %2240 = vmatprep.subr.mxu0 0.0
        %2241 = vmatpush1.xpose.msra.mxu0 0.0
        %2242 = vmatprep.subr.mxu0 0.0
        %2243 = vmatpush1.xpose.msra.mxu0 0.0
        %2244 = vmatprep.subr.mxu0 0.0
        %2245 = vmatpush1.xpose.msra.mxu0 0.0
        %2246 = vmatprep.subr.mxu0 0.0
        %2247 = vmatpush1.xpose.msra.mxu0 0.0
        %2248 = vmatprep.subr.mxu0 0.0
        %2249 = vmatpush1.xpose.msra.mxu0 0.0
        %2250 = vmatprep.subr.mxu0 0.0
        %2251 = vmatpush1.xpose.msra.mxu0 0.0
        %2252 = vmatprep.subr.mxu0 0.0
        %2253 = vmatpush1.xpose.msra.mxu0 0.0
        %2254 = vmatprep.subr.mxu0 0.0
        %2255 = vmatpush1.xpose.msra.mxu0 0.0
        %2256 = vmatprep.subr.mxu0 0.0
        %2257 = vmatpush1.xpose.msra.mxu0 0.0
        %2258 = vmatprep.subr.mxu0 0.0
        %2259 = vmatpush1.xpose.msra.mxu0 0.0
        %2260 = vmatprep.subr.mxu0 0.0
        %2261 = vmatpush1.xpose.msra.mxu0 0.0
        %2262 = vmatprep.subr.mxu0 0.0
        %2263 = vmatpush1.xpose.msra.mxu0 0.0
        %2264 = vmatprep.subr.mxu0 0.0
        %2265 = vmatpush1.xpose.msra.mxu0 0.0
        %2266 = vmatprep.subr.mxu0 0.0
        %2267 = vmatpush1.xpose.msra.mxu0 0.0
        %2268 = vmatprep.subr.mxu0 0.0
        %2269 = vmatpush1.xpose.msra.mxu0 0.0
        %2270 = vmatprep.subr.mxu0 0.0
        %2271 = vmatpush1.xpose.msra.mxu0 0.0
        %2272 = vmatprep.subr.mxu0 0.0
        %2273 = vmatpush1.xpose.msra.mxu0 0.0
        %2274 = vmatprep.subr.mxu0 0.0
        %2275 = vmatpush1.xpose.msra.mxu0 0.0
        %2276 = vmatprep.subr.mxu0 0.0
        %2277 = vmatpush1.xpose.msra.mxu0 0.0
        %2278 = vmatprep.subr.mxu0 0.0
        %2279 = vmatpush1.xpose.msra.mxu0 0.0
        %2280 = vmatprep.subr.mxu0 0.0
        %2281 = vmatpush1.xpose.msra.mxu0 0.0
        %2282 = vmatprep.subr.mxu0 0.0
        %2283 = vmatpush1.xpose.msra.mxu0 0.0
        %2284 = vmatprep.mubr.f32.mxu0 0.0
        %2285 = vmatmul.mubr.f32.gmra.mrb[0].mxu0 %v2212
        %v2286 = vpop.f32.mrb[0].mxu0
        %v2287 = vadd.f32 0.0, %v2286
        %v2288 = vpop.f32.mrb[0].mxu0
        %2289 = vmatprep.mubr.f32.mxu0 0.0
        %2290 = vmatmul.mubr.f32.gmra.mrb[0].mxu0 %v2214
        %v2291 = vpop.f32.mrb[0].mxu0
        %v2292 = vadd.f32 0.0, %v2291
        %v2293 = vpop.f32.mrb[0].mxu0
        %2294 = vdwg.mxu0
        %v2295 = vmul.f32 %v2196, 0.35355338
        %v2296 = vmul.f32 %v2201, 0.35355338
        %v2297 = vmul.f32 %v2287, 0.35355338
        %v2298 = vmul.f32 %v2292, 0.35355338
        %v2299 = vsel %vm779, %v2295, -inf
        %2300 = vmax.xlane.f32.xlu0 %v2299
        %v2301 = vpop.xlane.xlu0 %2300
        %v2302 = vsel %vm779, %v2296, -inf
        %2303 = vmax.xlane.f32.xlu0 %v2302
        %v2304 = vpop.xlane.xlu0 %2303
        %v2305 = vsel %vm779, %v2297, -inf
        %2306 = vmax.xlane.f32.xlu0 %v2305
        %v2307 = vpop.xlane.xlu0 %2306
        %v2308 = vsel %vm779, %v2298, -inf
        %2309 = vmax.xlane.f32.xlu0 %v2308
        %v2310 = vpop.xlane.xlu0 %2309
        %v2311 = vsub.f32 %v2295, %v2301
        %v2312 = vsub.f32 %v2296, %v2304
        %v2313 = vsub.f32 %v2297, %v2307
        %v2314 = vsub.f32 %v2298, %v2310
        %v2315 = vmul.f32 %v2311, 1.442695
        %v2316 = vpow.pop %v2315
        %v2317 = vmul.f32 %v2312, 1.442695
        %v2318 = vpow.pop %v2317
        %v2319 = vmul.f32 %v2313, 1.442695
        %v2320 = vpow.pop %v2319
        %v2321 = vmul.f32 %v2314, 1.442695
        %v2322 = vpow.pop %v2321
        %v2323 = vsel %vm779, %v2316, 0.0
        %2324 = vadd.xlane.f32.xlu0 %v2323
        %v2325 = vpop.xlane.xlu0 %2324
        %v2326 = vsel %vm779, %v2318, 0.0
        %2327 = vadd.xlane.f32.xlu0 %v2326
        %v2328 = vpop.xlane.xlu0 %2327
        %v2329 = vsel %vm779, %v2320, 0.0
        %2330 = vadd.xlane.f32.xlu0 %v2329
        %v2331 = vpop.xlane.xlu0 %2330
        %v2332 = vsel %vm779, %v2322, 0.0
        %2333 = vadd.xlane.f32.xlu0 %v2332
        %v2334 = vpop.xlane.xlu0 %2333
        %v2335 = vrcp.pop %v2325
        %v2336 = vrcp.pop %v2328
        %v2337 = vrcp.pop %v2331
        %v2338 = vrcp.pop %v2334
        %v2339 = vmul.f32 %v2316, %v2335
        %v2340 = vmul.f32 %v2318, %v2336
        %v2341 = vmul.f32 %v2320, %v2337
        %v2342 = vmul.f32 %v2322, %v2338
        %v2343 = vadd.f32 %v1834, %v2339
        %v2344 = vadd.f32 %v1835, %v2340
        %v2345 = vadd.f32 %v1836, %v2341
        %v2346 = vadd.f32 %v1837, %v2342
        %2347 = vrot.lane.b32.xlu0 %v574, 40
        %v2348 = vpop.permute.xlu0 %2347
        %2349 = vrot.lane.b32.xlu0 %v579, 40
        %v2350 = vpop.permute.xlu0 %2349
        %v2354 = vsel %vm779, %v2339, 0
        %v2357 = vsel %vm779, %v2340, 0
        %2359 = vmatprep.subr.mxu0 0.0
        %2360 = vmatpush1.msra.mxu0 %v2348
        %2361 = vmatprep.subr.mxu0 0.0
        %2362 = vmatpush1.msra.mxu0 %v2350
        %2363 = vmatprep.subr.mxu0 0.0
        %2364 = vmatpush1.msra.mxu0 0.0
        %2365 = vmatprep.subr.mxu0 0.0
        %2366 = vmatpush1.msra.mxu0 0.0
        %2367 = vmatprep.subr.mxu0 0.0
        %2368 = vmatpush1.msra.mxu0 0.0
        %2369 = vmatprep.subr.mxu0 0.0
        %2370 = vmatpush1.msra.mxu0 0.0
        %2371 = vmatprep.subr.mxu0 0.0
        %2372 = vmatpush1.msra.mxu0 0.0
        %2373 = vmatprep.subr.mxu0 0.0
        %2374 = vmatpush1.msra.mxu0 0.0
        %2375 = vmatprep.subr.mxu0 0.0
        %2376 = vmatpush1.msra.mxu0 0.0
        %2377 = vmatprep.subr.mxu0 0.0
        %2378 = vmatpush1.msra.mxu0 0.0
        %2379 = vmatprep.subr.mxu0 0.0
        %2380 = vmatpush1.msra.mxu0 0.0
        %2381 = vmatprep.subr.mxu0 0.0
        %2382 = vmatpush1.msra.mxu0 0.0
        %2383 = vmatprep.subr.mxu0 0.0
        %2384 = vmatpush1.msra.mxu0 0.0
        %2385 = vmatprep.subr.mxu0 0.0
        %2386 = vmatpush1.msra.mxu0 0.0
        %2387 = vmatprep.subr.mxu0 0.0
        %2388 = vmatpush1.msra.mxu0 0.0
        %2389 = vmatprep.subr.mxu0 0.0
        %2390 = vmatpush1.msra.mxu0 0.0
        %2391 = vmatprep.subr.mxu0 0.0
        %2392 = vmatpush1.msra.mxu0 0.0
        %2393 = vmatprep.subr.mxu0 0.0
        %2394 = vmatpush1.msra.mxu0 0.0
        %2395 = vmatprep.subr.mxu0 0.0
        %2396 = vmatpush1.msra.mxu0 0.0
        %2397 = vmatprep.subr.mxu0 0.0
        %2398 = vmatpush1.msra.mxu0 0.0
        %2399 = vmatprep.subr.mxu0 0.0
        %2400 = vmatpush1.msra.mxu0 0.0
        %2401 = vmatprep.subr.mxu0 0.0
        %2402 = vmatpush1.msra.mxu0 0.0
        %2403 = vmatprep.subr.mxu0 0.0
        %2404 = vmatpush1.msra.mxu0 0.0
        %2405 = vmatprep.subr.mxu0 0.0
        %2406 = vmatpush1.msra.mxu0 0.0
        %2407 = vmatprep.subr.mxu0 0.0
        %2408 = vmatpush1.msra.mxu0 0.0
        %2409 = vmatprep.subr.mxu0 0.0
        %2410 = vmatpush1.msra.mxu0 0.0
        %2411 = vmatprep.subr.mxu0 0.0
        %2412 = vmatpush1.msra.mxu0 0.0
        %2413 = vmatprep.subr.mxu0 0.0
        %2414 = vmatpush1.msra.mxu0 0.0
        %2415 = vmatprep.subr.mxu0 0.0
        %2416 = vmatpush1.msra.mxu0 0.0
        %2417 = vmatprep.subr.mxu0 0.0
        %2418 = vmatpush1.msra.mxu0 0.0
        %2419 = vmatprep.subr.mxu0 0.0
        %2420 = vmatpush1.msra.mxu0 0.0
        %2421 = vmatprep.subr.mxu0 0.0
        %2422 = vmatpush1.msra.mxu0 0.0
        %2423 = vmatprep.mubr.f32.mxu0 0.0
        %2424 = vmatmul.mubr.f32.gmra.mrb[0].mxu0 %v2354
        %v2425 = vpop.f32.mrb[0].mxu0
        %v2426 = vadd.f32 0.0, %v2425
        %v2427 = vpop.f32.mrb[0].mxu0
        %2428 = vmatprep.mubr.f32.mxu0 0.0
        %2429 = vmatmul.mubr.f32.gmra.mrb[0].mxu0 %v2357
        %v2430 = vpop.f32.mrb[0].mxu0
        %v2431 = vadd.f32 0.0, %v2430
        %v2432 = vpop.f32.mrb[0].mxu0
        %2433 = vdwg.mxu0
        %2434 = vrot.lane.b32.xlu0 %v584, 40
        %v2435 = vpop.permute.xlu0 %2434
        %2436 = vrot.lane.b32.xlu0 %v589, 40
        %v2437 = vpop.permute.xlu0 %2436
        %v2441 = vsel %vm779, %v2341, 0
        %v2444 = vsel %vm779, %v2342, 0
        %2446 = vmatprep.subr.mxu0 0.0
        %2447 = vmatpush1.msra.mxu0 %v2435
        %2448 = vmatprep.subr.mxu0 0.0
        %2449 = vmatpush1.msra.mxu0 %v2437
        %2450 = vmatprep.subr.mxu0 0.0
        %2451 = vmatpush1.msra.mxu0 0.0
        %2452 = vmatprep.subr.mxu0 0.0
        %2453 = vmatpush1.msra.mxu0 0.0
        %2454 = vmatprep.subr.mxu0 0.0
        %2455 = vmatpush1.msra.mxu0 0.0
        %2456 = vmatprep.subr.mxu0 0.0
        %2457 = vmatpush1.msra.mxu0 0.0
        %2458 = vmatprep.subr.mxu0 0.0
        %2459 = vmatpush1.msra.mxu0 0.0
        %2460 = vmatprep.subr.mxu0 0.0
        %2461 = vmatpush1.msra.mxu0 0.0
        %2462 = vmatprep.subr.mxu0 0.0
        %2463 = vmatpush1.msra.mxu0 0.0
        %2464 = vmatprep.subr.mxu0 0.0
        %2465 = vmatpush1.msra.mxu0 0.0
        %2466 = vmatprep.subr.mxu0 0.0
        %2467 = vmatpush1.msra.mxu0 0.0
        %2468 = vmatprep.subr.mxu0 0.0
        %2469 = vmatpush1.msra.mxu0 0.0
        %2470 = vmatprep.subr.mxu0 0.0
        %2471 = vmatpush1.msra.mxu0 0.0
        %2472 = vmatprep.subr.mxu0 0.0
        %2473 = vmatpush1.msra.mxu0 0.0
        %2474 = vmatprep.subr.mxu0 0.0
        %2475 = vmatpush1.msra.mxu0 0.0
        %2476 = vmatprep.subr.mxu0 0.0
        %2477 = vmatpush1.msra.mxu0 0.0
        %2478 = vmatprep.subr.mxu0 0.0
        %2479 = vmatpush1.msra.mxu0 0.0
        %2480 = vmatprep.subr.mxu0 0.0
        %2481 = vmatpush1.msra.mxu0 0.0
        %2482 = vmatprep.subr.mxu0 0.0
        %2483 = vmatpush1.msra.mxu0 0.0
        %2484 = vmatprep.subr.mxu0 0.0
        %2485 = vmatpush1.msra.mxu0 0.0
        %2486 = vmatprep.subr.mxu0 0.0
        %2487 = vmatpush1.msra.mxu0 0.0
        %2488 = vmatprep.subr.mxu0 0.0
        %2489 = vmatpush1.msra.mxu0 0.0
        %2490 = vmatprep.subr.mxu0 0.0
        %2491 = vmatpush1.msra.mxu0 0.0
        %2492 = vmatprep.subr.mxu0 0.0
        %2493 = vmatpush1.msra.mxu0 0.0
        %2494 = vmatprep.subr.mxu0 0.0
        %2495 = vmatpush1.msra.mxu0 0.0
        %2496 = vmatprep.subr.mxu0 0.0
        %2497 = vmatpush1.msra.mxu0 0.0
        %2498 = vmatprep.subr.mxu0 0.0
        %2499 = vmatpush1.msra.mxu0 0.0
        %2500 = vmatprep.subr.mxu0 0.0
        %2501 = vmatpush1.msra.mxu0 0.0
        %2502 = vmatprep.subr.mxu0 0.0
        %2503 = vmatpush1.msra.mxu0 0.0
        %2504 = vmatprep.subr.mxu0 0.0
        %2505 = vmatpush1.msra.mxu0 0.0
        %2506 = vmatprep.subr.mxu0 0.0
        %2507 = vmatpush1.msra.mxu0 0.0
        %2508 = vmatprep.subr.mxu0 0.0
        %2509 = vmatpush1.msra.mxu0 0.0
        %2510 = vmatprep.mubr.f32.mxu0 0.0
        %2511 = vmatmul.mubr.f32.gmra.mrb[0].mxu0 %v2441
        %v2512 = vpop.f32.mrb[0].mxu0
        %v2513 = vadd.f32 0.0, %v2512
        %v2514 = vpop.f32.mrb[0].mxu0
        %2515 = vmatprep.mubr.f32.mxu0 0.0
        %2516 = vmatmul.mubr.f32.gmra.mrb[0].mxu0 %v2444
        %v2517 = vpop.f32.mrb[0].mxu0
        %v2518 = vadd.f32 0.0, %v2517
        %v2519 = vpop.f32.mrb[0].mxu0
        %2520 = vdwg.mxu0
        %v2522 = vsel %vm602, %v2426, 0
        %v2525 = vsel %vm602, %v2431, 0
        %v2528 = vsel %vm602, %v2513, 0
        %v2531 = vsel %vm602, %v2518, 0
        %2533 = vmatprep.subr.mxu0 0.0
        %2534 = vmatpush1.msra.mxu0 %v595
        %2535 = vmatprep.subr.mxu0 0.0
        %2536 = vmatpush1.msra.mxu0 0.0
        %2537 = vmatprep.subr.mxu0 0.0
        %2538 = vmatpush1.msra.mxu0 0.0
        %2539 = vmatprep.subr.mxu0 0.0
        %2540 = vmatpush1.msra.mxu0 0.0
        %2541 = vmatprep.subr.mxu0 0.0
        %2542 = vmatpush1.msra.mxu0 0.0
        %2543 = vmatprep.subr.mxu0 0.0
        %2544 = vmatpush1.msra.mxu0 0.0
        %2545 = vmatprep.subr.mxu0 0.0
        %2546 = vmatpush1.msra.mxu0 0.0
        %2547 = vmatprep.subr.mxu0 0.0
        %2548 = vmatpush1.msra.mxu0 0.0
        %2549 = vmatprep.subr.mxu0 0.0
        %2550 = vmatpush1.msra.mxu0 0.0
        %2551 = vmatprep.subr.mxu0 0.0
        %2552 = vmatpush1.msra.mxu0 0.0
        %2553 = vmatprep.subr.mxu0 0.0
        %2554 = vmatpush1.msra.mxu0 0.0
        %2555 = vmatprep.subr.mxu0 0.0
        %2556 = vmatpush1.msra.mxu0 0.0
        %2557 = vmatprep.subr.mxu0 0.0
        %2558 = vmatpush1.msra.mxu0 0.0
        %2559 = vmatprep.subr.mxu0 0.0
        %2560 = vmatpush1.msra.mxu0 0.0
        %2561 = vmatprep.subr.mxu0 0.0
        %2562 = vmatpush1.msra.mxu0 0.0
        %2563 = vmatprep.subr.mxu0 0.0
        %2564 = vmatpush1.msra.mxu0 0.0
        %2565 = vmatprep.subr.mxu0 0.0
        %2566 = vmatpush1.msra.mxu0 0.0
        %2567 = vmatprep.subr.mxu0 0.0
        %2568 = vmatpush1.msra.mxu0 0.0
        %2569 = vmatprep.subr.mxu0 0.0
        %2570 = vmatpush1.msra.mxu0 0.0
        %2571 = vmatprep.subr.mxu0 0.0
        %2572 = vmatpush1.msra.mxu0 0.0
        %2573 = vmatprep.subr.mxu0 0.0
        %2574 = vmatpush1.msra.mxu0 0.0
        %2575 = vmatprep.subr.mxu0 0.0
        %2576 = vmatpush1.msra.mxu0 0.0
        %2577 = vmatprep.subr.mxu0 0.0
        %2578 = vmatpush1.msra.mxu0 0.0
        %2579 = vmatprep.subr.mxu0 0.0
        %2580 = vmatpush1.msra.mxu0 0.0
        %2581 = vmatprep.subr.mxu0 0.0
        %2582 = vmatpush1.msra.mxu0 0.0
        %2583 = vmatprep.subr.mxu0 0.0
        %2584 = vmatpush1.msra.mxu0 0.0
        %2585 = vmatprep.subr.mxu0 0.0
        %2586 = vmatpush1.msra.mxu0 0.0
        %2587 = vmatprep.subr.mxu0 0.0
        %2588 = vmatpush1.msra.mxu0 0.0
        %2589 = vmatprep.subr.mxu0 0.0
        %2590 = vmatpush1.msra.mxu0 0.0
        %2591 = vmatprep.subr.mxu0 0.0
        %2592 = vmatpush1.msra.mxu0 0.0
        %2593 = vmatprep.subr.mxu0 0.0
        %2594 = vmatpush1.msra.mxu0 0.0
        %2595 = vmatprep.subr.mxu0 0.0
        %2596 = vmatpush1.msra.mxu0 0.0
        %2597 = vmatprep.mubr.f32.mxu0 0.0
        %2598 = vmatmul.mubr.f32.gmra.mrb[0].mxu0 %v2522
        %v2599 = vpop.f32.mrb[0].mxu0
        %v2600 = vadd.f32 0.0, %v2599
        %v2601 = vpop.f32.mrb[0].mxu0
        %2602 = vmatprep.mubr.f32.mxu0 0.0
        %2603 = vmatmul.mubr.f32.gmra.mrb[0].mxu0 %v2525
        %v2604 = vpop.f32.mrb[0].mxu0
        %v2605 = vadd.f32 0.0, %v2604
        %v2606 = vpop.f32.mrb[0].mxu0
        %2607 = vmatprep.mubr.f32.mxu0 0.0
        %2608 = vmatmul.mubr.f32.gmra.mrb[0].mxu0 %v2528
        %v2609 = vpop.f32.mrb[0].mxu0
        %v2610 = vadd.f32 0.0, %v2609
        %v2611 = vpop.f32.mrb[0].mxu0
        %2612 = vmatprep.mubr.f32.mxu0 0.0
        %2613 = vmatmul.mubr.f32.gmra.mrb[0].mxu0 %v2531
        %v2614 = vpop.f32.mrb[0].mxu0
        %v2615 = vadd.f32 0.0, %v2614
        %v2616 = vpop.f32.mrb[0].mxu0
        %2617 = vdwg.mxu0
        %v2618 = vadd.f32 %v2109, %v2600
        %v2619 = vadd.f32 %v2110, %v2605
        %v2620 = vadd.f32 %v2111, %v2610
        %v2621 = vadd.f32 %v2112, %v2615
        %v2622 = vld [vmem:[%s5] sm:$0x1]
        %v2624 = vlaneseq
        %v2625 = vshrl.u32 %v2624, 7
        %v2626 = vsub.s32 0, %v2625
        %v2627 = vrot.slane %v2622, %v2626
        %v2629 = vadd.f32 %v2618, %v2627
        %v2630 = vadd.f32 %v2619, %v2627
        %v2631 = vadd.f32 %v2620, %v2627
        %v2632 = vadd.f32 %v2621, %v2627
        %v2633 = vadd.f32 %v479, %v2629
        %v2634 = vadd.f32 %v480, %v2630
        %v2635 = vadd.f32 %v481, %v2631
        %v2636 = vadd.f32 %v482, %v2632
        %v2637 = vsel %vm494, %v2633, 0.0
        %2638 = vadd.xlane.f32.xlu0 %v2637
        %v2639 = vpop.xlane.xlu0 %2638
        %v2640 = vsel %vm494, %v2634, 0.0
        %2641 = vadd.xlane.f32.xlu0 %v2640
        %v2642 = vpop.xlane.xlu0 %2641
        %v2643 = vsel %vm494, %v2635, 0.0
        %2644 = vadd.xlane.f32.xlu0 %v2643
        %v2645 = vpop.xlane.xlu0 %2644
        %v2646 = vsel %vm494, %v2636, 0.0
        %2647 = vadd.xlane.f32.xlu0 %v2646
        %v2648 = vpop.xlane.xlu0 %2647
        %v2649 = vrcp.pop 32.0
        %v2650 = vmul.f32 %v2639, %v2649
        %v2651 = vmul.f32 %v2642, %v2649
        %v2652 = vmul.f32 %v2645, %v2649
        %v2653 = vmul.f32 %v2648, %v2649
        %v2654 = vsub.f32 %v2633, %v2650
        %v2655 = vsub.f32 %v2634, %v2651
        %v2656 = vsub.f32 %v2635, %v2652
        %v2657 = vsub.f32 %v2636, %v2653
        %v2658 = vmul.f32 %v2654, %v2654
        %v2659 = vmul.f32 %v2655, %v2655
        %v2660 = vmul.f32 %v2656, %v2656
        %v2661 = vmul.f32 %v2657, %v2657
        %v2662 = vsel %vm494, %v2658, 0.0
        %2663 = vadd.xlane.f32.xlu0 %v2662
        %v2664 = vpop.xlane.xlu0 %2663
        %v2665 = vsel %vm494, %v2659, 0.0
        %2666 = vadd.xlane.f32.xlu0 %v2665
        %v2667 = vpop.xlane.xlu0 %2666
        %v2668 = vsel %vm494, %v2660, 0.0
        %2669 = vadd.xlane.f32.xlu0 %v2668
        %v2670 = vpop.xlane.xlu0 %2669
        %v2671 = vsel %vm494, %v2661, 0.0
        %2672 = vadd.xlane.f32.xlu0 %v2671
        %v2673 = vpop.xlane.xlu0 %2672
        %v2674 = vmul.f32 %v2664, %v2649
        %v2675 = vmul.f32 %v2667, %v2649
        %v2676 = vmul.f32 %v2670, %v2649
        %v2677 = vmul.f32 %v2673, %v2649
        %v2678 = vadd.f32 %v2674, 1e-05
        %v2679 = vadd.f32 %v2675, 1e-05
        %v2680 = vadd.f32 %v2676, 1e-05
        %v2681 = vadd.f32 %v2677, 1e-05
        %v2682 = vrsqrt.pop %v2678
        %v2683 = vrsqrt.pop %v2679
        %v2684 = vrsqrt.pop %v2680
        %v2685 = vrsqrt.pop %v2681
        %v2686 = vmul.f32 %v2654, %v2682
        %v2687 = vmul.f32 %v2655, %v2683
        %v2688 = vmul.f32 %v2656, %v2684
        %v2689 = vmul.f32 %v2657, %v2685
        %v2690 = vld [vmem:[%s6] sm:$0x1]
        %v2692 = vlaneseq
        %v2693 = vshrl.u32 %v2692, 7
        %v2694 = vsub.s32 0, %v2693
        %v2695 = vrot.slane %v2690, %v2694
        %v2697 = vmul.f32 %v2686, %v2695
        %v2698 = vmul.f32 %v2687, %v2695
        %v2699 = vmul.f32 %v2688, %v2695
        %v2700 = vmul.f32 %v2689, %v2695
        %v2701 = vld [vmem:[%s7] sm:$0x1]
        %v2703 = vlaneseq
        %v2704 = vshrl.u32 %v2703, 7
        %v2705 = vsub.s32 0, %v2704
        %v2706 = vrot.slane %v2701, %v2705
        %v2708 = vadd.f32 %v2697, %v2706
        %v2709 = vadd.f32 %v2698, %v2706
        %v2710 = vadd.f32 %v2699, %v2706
        %v2711 = vadd.f32 %v2700, %v2706
        %v2712 = vld [vmem:[%s8] sm:$0xff]
        %v2713 = vld [vmem:[%s8 + $0x8] sm:$0xff]
        %v2714 = vld [vmem:[%s8 + $0x10] sm:$0xff]
        %v2715 = vld [vmem:[%s8 + $0x18] sm:$0xff]
        %v2716 = vld [vmem:[%s9] sm:$0x1]
        %v2718 = vlaneseq
        %v2719 = vshrl.u32 %v2718, 7
        %v2720 = vsub.s32 0, %v2719
        %v2721 = vrot.slane %v2716, %v2720
        %v2724 = vsel %vm494, %v2708, 0
        %v2727 = vsel %vm494, %v2709, 0
        %v2730 = vsel %vm494, %v2710, 0
        %v2733 = vsel %vm494, %v2711, 0
        %2735 = vmatprep.subr.mxu0 0.0
        %2736 = vmatpush1.msra.mxu0 %v2712
        %2737 = vmatprep.subr.mxu0 0.0
        %2738 = vmatpush1.msra.mxu0 %v2713
        %2739 = vmatprep.subr.mxu0 0.0
        %2740 = vmatpush1.msra.mxu0 %v2714
        %2741 = vmatprep.subr.mxu0 0.0
        %2742 = vmatpush1.msra.mxu0 %v2715
        %2743 = vmatprep.subr.mxu0 0.0
        %2744 = vmatpush1.msra.mxu0 0.0
        %2745 = vmatprep.subr.mxu0 0.0
        %2746 = vmatpush1.msra.mxu0 0.0
        %2747 = vmatprep.subr.mxu0 0.0
        %2748 = vmatpush1.msra.mxu0 0.0
        %2749 = vmatprep.subr.mxu0 0.0
        %2750 = vmatpush1.msra.mxu0 0.0
        %2751 = vmatprep.subr.mxu0 0.0
        %2752 = vmatpush1.msra.mxu0 0.0
        %2753 = vmatprep.subr.mxu0 0.0
        %2754 = vmatpush1.msra.mxu0 0.0
        %2755 = vmatprep.subr.mxu0 0.0
        %2756 = vmatpush1.msra.mxu0 0.0
        %2757 = vmatprep.subr.mxu0 0.0
        %2758 = vmatpush1.msra.mxu0 0.0
        %2759 = vmatprep.subr.mxu0 0.0
        %2760 = vmatpush1.msra.mxu0 0.0
        %2761 = vmatprep.subr.mxu0 0.0
        %2762 = vmatpush1.msra.mxu0 0.0
        %2763 = vmatprep.subr.mxu0 0.0
        %2764 = vmatpush1.msra.mxu0 0.0
        %2765 = vmatprep.subr.mxu0 0.0
        %2766 = vmatpush1.msra.mxu0 0.0
        %2767 = vmatprep.subr.mxu0 0.0
        %2768 = vmatpush1.msra.mxu0 0.0
        %2769 = vmatprep.subr.mxu0 0.0
        %2770 = vmatpush1.msra.mxu0 0.0
        %2771 = vmatprep.subr.mxu0 0.0
        %2772 = vmatpush1.msra.mxu0 0.0
        %2773 = vmatprep.subr.mxu0 0.0
        %2774 = vmatpush1.msra.mxu0 0.0
        %2775 = vmatprep.subr.mxu0 0.0
        %2776 = vmatpush1.msra.mxu0 0.0
        %2777 = vmatprep.subr.mxu0 0.0
        %2778 = vmatpush1.msra.mxu0 0.0
        %2779 = vmatprep.subr.mxu0 0.0
        %2780 = vmatpush1.msra.mxu0 0.0
        %2781 = vmatprep.subr.mxu0 0.0
        %2782 = vmatpush1.msra.mxu0 0.0
        %2783 = vmatprep.subr.mxu0 0.0
        %2784 = vmatpush1.msra.mxu0 0.0
        %2785 = vmatprep.subr.mxu0 0.0
        %2786 = vmatpush1.msra.mxu0 0.0
        %2787 = vmatprep.subr.mxu0 0.0
        %2788 = vmatpush1.msra.mxu0 0.0
        %2789 = vmatprep.subr.mxu0 0.0
        %2790 = vmatpush1.msra.mxu0 0.0
        %2791 = vmatprep.subr.mxu0 0.0
        %2792 = vmatpush1.msra.mxu0 0.0
        %2793 = vmatprep.subr.mxu0 0.0
        %2794 = vmatpush1.msra.mxu0 0.0
        %2795 = vmatprep.subr.mxu0 0.0
        %2796 = vmatpush1.msra.mxu0 0.0
        %2797 = vmatprep.subr.mxu0 0.0
        %2798 = vmatpush1.msra.mxu0 0.0
        %2799 = vmatprep.mubr.f32.mxu0 0.0
        %2800 = vmatmul.mubr.f32.gmra.mrb[0].mxu0 %v2724
        %v2801 = vpop.f32.mrb[0].mxu0
        %v2802 = vadd.f32 %v2721, %v2801
        %v2803 = vpop.f32.mrb[0].mxu0
        %2804 = vmatprep.mubr.f32.mxu0 0.0
        %2805 = vmatmul.mubr.f32.gmra.mrb[0].mxu0 %v2727
        %v2806 = vpop.f32.mrb[0].mxu0
        %v2807 = vadd.f32 %v2721, %v2806
        %v2808 = vpop.f32.mrb[0].mxu0
        %2809 = vmatprep.mubr.f32.mxu0 0.0
        %2810 = vmatmul.mubr.f32.gmra.mrb[0].mxu0 %v2730
        %v2811 = vpop.f32.mrb[0].mxu0
        %v2812 = vadd.f32 %v2721, %v2811
        %v2813 = vpop.f32.mrb[0].mxu0
        %2814 = vmatprep.mubr.f32.mxu0 0.0
        %2815 = vmatmul.mubr.f32.gmra.mrb[0].mxu0 %v2733
        %v2816 = vpop.f32.mrb[0].mxu0
        %v2817 = vadd.f32 %v2721, %v2816
        %v2818 = vpop.f32.mrb[0].mxu0
        %2819 = vdwg.mxu0
        %v2820 = vmax.f32 %v2802, 0.0
        %v2821 = vmax.f32 %v2807, 0.0
        %v2822 = vmax.f32 %v2812, 0.0
        %v2823 = vmax.f32 %v2817, 0.0
        %v2824 = vld [vmem:[%s10] sm:$0xff]
        %v2825 = vld [vmem:[%s10 + $0x8] sm:$0xff]
        %v2826 = vld [vmem:[%s10 + $0x10] sm:$0xff]
        %v2827 = vld [vmem:[%s10 + $0x18] sm:$0xff]
        %v2828 = vld [vmem:[%s10 + $0x20] sm:$0xff]
        %v2829 = vld [vmem:[%s10 + $0x28] sm:$0xff]
        %v2830 = vld [vmem:[%s10 + $0x30] sm:$0xff]
        %v2831 = vld [vmem:[%s10 + $0x38] sm:$0xff]
        %v2832 = vld [vmem:[%s11] sm:$0x1]
        %v2834 = vlaneseq
        %v2835 = vshrl.u32 %v2834, 7
        %v2836 = vsub.s32 0, %v2835
        %v2837 = vrot.slane %v2832, %v2836
        %vm2839 = vcmask 523264
        %v2841 = vsel %vm2839, %v2820, 0
        %v2844 = vsel %vm2839, %v2821, 0
        %v2847 = vsel %vm2839, %v2822, 0
        %v2850 = vsel %vm2839, %v2823, 0
        %2852 = vmatprep.subr.mxu0 0.0
        %2853 = vmatpush1.msra.mxu0 %v2824
        %2854 = vmatprep.subr.mxu0 0.0
        %2855 = vmatpush1.msra.mxu0 %v2825
        %2856 = vmatprep.subr.mxu0 0.0
        %2857 = vmatpush1.msra.mxu0 %v2826
        %2858 = vmatprep.subr.mxu0 0.0
        %2859 = vmatpush1.msra.mxu0 %v2827
        %2860 = vmatprep.subr.mxu0 0.0
        %2861 = vmatpush1.msra.mxu0 %v2828
        %2862 = vmatprep.subr.mxu0 0.0
        %2863 = vmatpush1.msra.mxu0 %v2829
        %2864 = vmatprep.subr.mxu0 0.0
        %2865 = vmatpush1.msra.mxu0 %v2830
        %2866 = vmatprep.subr.mxu0 0.0
        %2867 = vmatpush1.msra.mxu0 %v2831
        %2868 = vmatprep.subr.mxu0 0.0
        %2869 = vmatpush1.msra.mxu0 0.0
        %2870 = vmatprep.subr.mxu0 0.0
        %2871 = vmatpush1.msra.mxu0 0.0
        %2872 = vmatprep.subr.mxu0 0.0
        %2873 = vmatpush1.msra.mxu0 0.0
        %2874 = vmatprep.subr.mxu0 0.0
        %2875 = vmatpush1.msra.mxu0 0.0
        %2876 = vmatprep.subr.mxu0 0.0
        %2877 = vmatpush1.msra.mxu0 0.0
        %2878 = vmatprep.subr.mxu0 0.0
        %2879 = vmatpush1.msra.mxu0 0.0
        %2880 = vmatprep.subr.mxu0 0.0
        %2881 = vmatpush1.msra.mxu0 0.0
        %2882 = vmatprep.subr.mxu0 0.0
        %2883 = vmatpush1.msra.mxu0 0.0
        %2884 = vmatprep.subr.mxu0 0.0
        %2885 = vmatpush1.msra.mxu0 0.0
        %2886 = vmatprep.subr.mxu0 0.0
        %2887 = vmatpush1.msra.mxu0 0.0
        %2888 = vmatprep.subr.mxu0 0.0
        %2889 = vmatpush1.msra.mxu0 0.0
        %2890 = vmatprep.subr.mxu0 0.0
        %2891 = vmatpush1.msra.mxu0 0.0
        %2892 = vmatprep.subr.mxu0 0.0
        %2893 = vmatpush1.msra.mxu0 0.0
        %2894 = vmatprep.subr.mxu0 0.0
        %2895 = vmatpush1.msra.mxu0 0.0
        %2896 = vmatprep.subr.mxu0 0.0
        %2897 = vmatpush1.msra.mxu0 0.0
        %2898 = vmatprep.subr.mxu0 0.0
        %2899 = vmatpush1.msra.mxu0 0.0
        %2900 = vmatprep.subr.mxu0 0.0
        %2901 = vmatpush1.msra.mxu0 0.0
        %2902 = vmatprep.subr.mxu0 0.0
        %2903 = vmatpush1.msra.mxu0 0.0
        %2904 = vmatprep.subr.mxu0 0.0
        %2905 = vmatpush1.msra.mxu0 0.0
        %2906 = vmatprep.subr.mxu0 0.0
        %2907 = vmatpush1.msra.mxu0 0.0
        %2908 = vmatprep.subr.mxu0 0.0
        %2909 = vmatpush1.msra.mxu0 0.0
        %2910 = vmatprep.subr.mxu0 0.0
        %2911 = vmatpush1.msra.mxu0 0.0
        %2912 = vmatprep.subr.mxu0 0.0
        %2913 = vmatpush1.msra.mxu0 0.0
        %2914 = vmatprep.subr.mxu0 0.0
        %2915 = vmatpush1.msra.mxu0 0.0
        %2916 = vmatprep.mubr.f32.mxu0 0.0
        %2917 = vmatmul.mubr.f32.gmra.mrb[0].mxu0 %v2841
        %v2918 = vpop.f32.mrb[0].mxu0
        %v2919 = vadd.f32 %v2837, %v2918
        %v2920 = vpop.f32.mrb[0].mxu0
        %2921 = vmatprep.mubr.f32.mxu0 0.0
        %2922 = vmatmul.mubr.f32.gmra.mrb[0].mxu0 %v2844
        %v2923 = vpop.f32.mrb[0].mxu0
        %v2924 = vadd.f32 %v2837, %v2923
        %v2925 = vpop.f32.mrb[0].mxu0
        %2926 = vmatprep.mubr.f32.mxu0 0.0
        %2927 = vmatmul.mubr.f32.gmra.mrb[0].mxu0 %v2847
        %v2928 = vpop.f32.mrb[0].mxu0
        %v2929 = vadd.f32 %v2837, %v2928
        %v2930 = vpop.f32.mrb[0].mxu0
        %2931 = vmatprep.mubr.f32.mxu0 0.0
        %2932 = vmatmul.mubr.f32.gmra.mrb[0].mxu0 %v2850
        %v2933 = vpop.f32.mrb[0].mxu0
        %v2934 = vadd.f32 %v2837, %v2933
        %v2935 = vpop.f32.mrb[0].mxu0
        %2936 = vdwg.mxu0
        %v2937 = vadd.f32 %v2708, %v2919
        %v2938 = vadd.f32 %v2709, %v2924
        %v2939 = vadd.f32 %v2710, %v2929
        %v2940 = vadd.f32 %v2711, %v2934
        %v2941 = vsel %vm494, %v2937, 0.0
        %2942 = vadd.xlane.f32.xlu0 %v2941
        %v2943 = vpop.xlane.xlu0 %2942
        %v2944 = vsel %vm494, %v2938, 0.0
        %2945 = vadd.xlane.f32.xlu0 %v2944
        %v2946 = vpop.xlane.xlu0 %2945
        %v2947 = vsel %vm494, %v2939, 0.0
        %2948 = vadd.xlane.f32.xlu0 %v2947
        %v2949 = vpop.xlane.xlu0 %2948
        %v2950 = vsel %vm494, %v2940, 0.0
        %2951 = vadd.xlane.f32.xlu0 %v2950
        %v2952 = vpop.xlane.xlu0 %2951
        %v2953 = vmul.f32 %v2943, %v2649
        %v2954 = vmul.f32 %v2946, %v2649
        %v2955 = vmul.f32 %v2949, %v2649
        %v2956 = vmul.f32 %v2952, %v2649
        %v2957 = vsub.f32 %v2937, %v2953
        %v2958 = vsub.f32 %v2938, %v2954
        %v2959 = vsub.f32 %v2939, %v2955
        %v2960 = vsub.f32 %v2940, %v2956
        %v2961 = vmul.f32 %v2957, %v2957
        %v2962 = vmul.f32 %v2958, %v2958
        %v2963 = vmul.f32 %v2959, %v2959
        %v2964 = vmul.f32 %v2960, %v2960
        %v2965 = vsel %vm494, %v2961, 0.0
        %2966 = vadd.xlane.f32.xlu0 %v2965
        %v2967 = vpop.xlane.xlu0 %2966
        %v2968 = vsel %vm494, %v2962, 0.0
        %2969 = vadd.xlane.f32.xlu0 %v2968
        %v2970 = vpop.xlane.xlu0 %2969
        %v2971 = vsel %vm494, %v2963, 0.0
        %2972 = vadd.xlane.f32.xlu0 %v2971
        %v2973 = vpop.xlane.xlu0 %2972
        %v2974 = vsel %vm494, %v2964, 0.0
        %2975 = vadd.xlane.f32.xlu0 %v2974
        %v2976 = vpop.xlane.xlu0 %2975
        %v2977 = vmul.f32 %v2967, %v2649
        %v2978 = vmul.f32 %v2970, %v2649
        %v2979 = vmul.f32 %v2973, %v2649
        %v2980 = vmul.f32 %v2976, %v2649
        %v2981 = vadd.f32 %v2977, 1e-05
        %v2982 = vadd.f32 %v2978, 1e-05
        %v2983 = vadd.f32 %v2979, 1e-05
        %v2984 = vadd.f32 %v2980, 1e-05
        %v2985 = vrsqrt.pop %v2981
        %v2986 = vrsqrt.pop %v2982
        %v2987 = vrsqrt.pop %v2983
        %v2988 = vrsqrt.pop %v2984
        %v2989 = vmul.f32 %v2957, %v2985
        %v2990 = vmul.f32 %v2958, %v2986
        %v2991 = vmul.f32 %v2959, %v2987
        %v2992 = vmul.f32 %v2960, %v2988
        %v2993 = vld [vmem:[%s12] sm:$0x1]
        %v2995 = vlaneseq
        %v2996 = vshrl.u32 %v2995, 7
        %v2997 = vsub.s32 0, %v2996
        %v2998 = vrot.slane %v2993, %v2997
        %v3000 = vmul.f32 %v2989, %v2998
        %v3001 = vmul.f32 %v2990, %v2998
        %v3002 = vmul.f32 %v2991, %v2998
        %v3003 = vmul.f32 %v2992, %v2998
        %v3004 = vld [vmem:[%s13] sm:$0x1]
        %v3006 = vlaneseq
        %v3007 = vshrl.u32 %v3006, 7
        %v3008 = vsub.s32 0, %v3007
        %v3009 = vrot.slane %v3004, %v3008
        %v3011 = vadd.f32 %v3000, %v3009
        %v3012 = vadd.f32 %v3001, %v3009
        %v3013 = vadd.f32 %v3002, %v3009
        %v3014 = vadd.f32 %v3003, %v3009
        %3015 = vst.msk [vmem:[#allocation2] sm:$0xff] %vm494, %v3011
        %3016 = vst.msk [vmem:[#allocation2 + $0x8] sm:$0xff] %vm494, %v3012
        %3017 = vst.msk [vmem:[#allocation2 + $0x10] sm:$0xff] %vm494, %v3013
        %3018 = vst.msk [vmem:[#allocation2 + $0x18] sm:$0xff] %vm494, %v3014
        %p3019 = scmp.eq.s32.totalorder %s29, 2
        // Predicated region
        $region81: #{res_transformer_forward.5} parent=75 // pred_check
          %p3020 = pneg %p3019
        $region82: #{res_transformer_forward.5} parent=75 // pred_check_branch
          %3022 = sbr.rel (%p3020) target = $region84
        $region83: #{res_transformer_forward.5} parent=75 // pred_region
          %3023 = vst.msk [vmem:[#allocation3] sm:$0xff] %vm494, %v3011
          %3024 = vst.msk [vmem:[#allocation3 + $0x8] sm:$0xff] %vm494, %v3012
          %3025 = vst.msk [vmem:[#allocation3 + $0x10] sm:$0xff] %vm494, %v3013
          %3026 = vst.msk [vmem:[#allocation3 + $0x18] sm:$0xff] %vm494, %v3014
          %v3027 = vmul.f32 %v2343, 0.25
          %v3028 = vmul.f32 %v2344, 0.25
          %v3029 = vmul.f32 %v2345, 0.25
          %v3030 = vmul.f32 %v2346, 0.25
          %3031 = vst.msk [vmem:[#allocation5] sm:$0xff] %vm779, %v3027
          %3032 = vst.msk [vmem:[#allocation5 + $0x8] sm:$0xff] %vm779, %v3028
          %3033 = vst.msk [vmem:[#allocation5 + $0x10] sm:$0xff] %vm779, %v3029
          %3034 = vst.msk [vmem:[#allocation5 + $0x18] sm:$0xff] %vm779, %v3030
        $region84: #{res_transformer_forward.5} parent=75 // pred_fallthru
          _
        // Predicated region
        $region85: #{res_transformer_forward.5} parent=75 // pred_check
          %p3035 = pneg %p336
        $region86: #{res_transformer_forward.5} parent=75 // pred_check_branch
          %3037 = sbr.rel (%p3035) target = $region88
        $region87: #{res_transformer_forward.5} parent=75 // pred_region
          %s3039 = ssub.s32 512, 512
          %3040 = vsyncadd [#allocation4], %s3039
          %s3041 = sshll.u32 [#allocation3], 4
          %s3042 = int_to_ptr.vmem [resolvable:$true] %s3041
          %3047 = dma.vmem_to_hbm [thread:$0]  %s3042, 512, %s14, [#allocation4], 128, 128, 8
        $region88: #{res_transformer_forward.5} parent=75 // pred_fallthru
          _
        // Predicated region
        $region89: #{res_transformer_forward.5} parent=75 // pred_check
          %p3048 = pneg %p357
        $region90: #{res_transformer_forward.5} parent=75 // pred_check_branch
          %3050 = sbr.rel (%p3048) target = $region92
        $region91: #{res_transformer_forward.5} parent=75 // pred_region
          %s3052 = ssub.s32 512, 512
          %3053 = vsyncadd [#allocation6], %s3052
          %s3054 = sshll.u32 [#allocation5], 4
          %s3055 = int_to_ptr.vmem [resolvable:$true] %s3054
          %3060 = dma.vmem_to_hbm [thread:$0]  %s3055, 512, %s15, [#allocation6], 128, 128, 8
        $region92: #{res_transformer_forward.5} parent=75 // pred_fallthru
          _
        // Predicated region
        $region93: #{res_transformer_forward.5} parent=75 // pred_check
          %p3061 = pneg %p336
        $region94: #{res_transformer_forward.5} parent=75 // pred_check_branch
          %3063 = sbr.rel (%p3061) target = $region96
        $region95: #{res_transformer_forward.5} parent=75 // pred_region
          %3064 = dma.done [#allocation4], 512
        $region96: #{res_transformer_forward.5} parent=75 // pred_fallthru
          _
        // Predicated region
        $region97: #{res_transformer_forward.5} parent=75 // pred_check
          %p3065 = pneg %p357
        $region98: #{res_transformer_forward.5} parent=75 // pred_check_branch
          %3067 = sbr.rel (%p3065) target = $region100
        $region99: #{res_transformer_forward.5} parent=75 // pred_region
          %3068 = dma.done [#allocation6], 512
        $region100: #{res_transformer_forward.5} parent=75 // pred_fallthru
          _
      $region76: #{res_transformer_forward.5} parent=5 // pred_fallthru
        _
      %p3069 = scmp.le.s32.totalorder 2, %s24
      // Predicated region
      $region101: #{res_transformer_forward.5} parent=5 // pred_check
        %p3070 = pneg %p3069
      $region102: #{res_transformer_forward.5} parent=5 // pred_check_branch
        %3072 = sbr.rel (%p3070) target = $region104
      $region103: #{res_transformer_forward.5} parent=5 // pred_region
        %s3073 = ssub.s32 %s24, 2
      $region104: #{res_transformer_forward.5} parent=5 // pred_fallthru
        _
    $region6: #{res_transformer_forward.5} parent=1 // loop_footer
      %s28 = sadd.s32 1, %s24
    $region7: #{res_transformer_forward.5} parent=1 // loop_footer_branch
      %23 = sbr.rel target = $region3
    $region8: #{res_transformer_forward.5} parent=1 // loop_exit
      _
    %3074 = vsyncpa [#allocation4], 1
    %s3075 = scalar_lea.sflag [#allocation4], 1
    %3076 = vsyncpa %s3075, 1
    %3077 = vsyncpa [#allocation6], 1

</llo_original>
